<compile_context>
chip_gen: v6e
topology: v6e:2x2x1
jax: 0.10.0
libtpu: 0.0.40
codegen_flags: <defaults>
</compile_context>

<pallas_src>
import jax
import jax.numpy as jnp
import numpy as np
from jax.experimental import pallas as pl
from jax.experimental.pallas import tpu as pltpu


def _make_pool_matrix(h, w):
    """(h*w, (h//2)*(w//2)) operator; right-multiplying == 2x2 average pool."""
    hw = h * w
    h2, w2 = h // 2, w // 2
    p = np.arange(hw)
    q = (p // w // 2) * w2 + (p % w) // 2
    mat = np.zeros((hw, h2 * w2), np.float32)
    mat[p, q] = 0.25
    return jnp.asarray(mat)


def inpainting_loss_forward(inp, mask, output, gt, params):
    B, C, H, W = output.shape
    if C not in (1, 3):
        raise ValueError('only gray an')
    n_stages = len(params)
    assert H % (2 ** n_stages) == 0 and W % (2 ** n_stages) == 0
    HW = H * W

    # Lane-dense 2D views: (B, C, H*W); spatial axis (256) lives on lanes.
    inp2 = inp.reshape(B, C, HW)
    mask2 = mask.reshape(B, C, HW)
    out2 = output.reshape(B, C, HW)
    gt2 = gt.reshape(B, C, HW)

    # W-direction TV validity mask (1.0 where the right neighbour belongs to
    # the same image row); host-built constant, lane-broadcast in kernel.
    wmask = jnp.asarray(
        ((np.arange(HW - 1) % W) != (W - 1)).astype(np.float32).reshape(1, HW - 1))

    # Per-stage operands: transposed 1x1-conv weight (Cout, Cin), bias column
    # (Cout, 1) and the matmul average-pool operator (hw_in, hw_in // 4).
    stage_args = []
    feat_shapes = []          # (Cout, pooled H*W) per stage (static)
    h, w = H, W
    for (wmat, bvec) in params:
        stage_args += [wmat.T, bvec.reshape(-1, 1), _make_pool_matrix(h, w)]
        h, w = h // 2, w // 2
        feat_shapes.append((wmat.shape[1], h * w))

    def kernel(inp_ref, mask_ref, out_ref, gt_ref, wmask_ref, *rest):
        stage_refs = [rest[3 * s: 3 * s + 3] for s in range(n_stages)]
        loss_ref = rest[3 * n_stages]      # (1, 5) SMEM output
        acc_ref = rest[3 * n_stages + 1]   # (5,)  SMEM scratch accumulator

        b = pl.program_id(0)

        @pl.when(b == 0)
        def _init():
            for i in range(5):
                acc_ref[i] = jnp.float32(0.0)

        x_in = inp_ref[0]     # (C, HW)
        m = mask_ref[0]
        x_out = out_ref[0]
        x_gt = gt_ref[0]
        wm = wmask_ref[...]   # (1, HW - 1)

        comp = m * x_in + (1.0 - m) * x_out

        # hole / valid: nn.L1Loss (mean over B*C*H*W) -> accumulate normalized
        # per-batch partial sums in f32, divide denominator statically.
        inv_n_img = 1.0 / (B * C * HW)
        hole_c = jnp.sum(jnp.abs((1.0 - m) * x_out - (1.0 - m) * x_gt)) * inv_n_img
        valid_c = jnp.sum(jnp.abs(m * x_out - m * x_gt)) * inv_n_img

        # total variation on comp, on the lane-dense (C, H*W) layout.
        d_w = comp[:, :-1] - comp[:, 1:]         # horizontal neighbours
        tv_w = jnp.sum(jnp.abs(d_w) * wm)        # drop row-crossing pairs
        d_h = comp[:, : HW - W] - comp[:, W:]    # vertical neighbours
        tv_h = jnp.sum(jnp.abs(d_h))
        tv_c = (tv_w / (B * C * H * (W - 1))) + (tv_h / (B * C * (H - 1) * W))

        # Synthetic extractor on [comp, output, gt], fully in-register.
        if C == 1:
            feats = [jnp.broadcast_to(t, (3, HW)) for t in (comp, x_out, x_gt)]
        else:
            feats = [comp, x_out, x_gt]

        prc_c = 0.0
        style_c = 0.0
        for s, (wt_ref, bb_ref, pp_ref) in enumerate(stage_refs):
            wt = wt_ref[...]   # (Cout, Cin)
            bb = bb_ref[...]   # (Cout, 1)
            pp = pp_ref[...]   # (hw_in, hw_in // 4)
            feats = [
                jnp.dot(
                    jnp.maximum(
                        jnp.dot(wt, f, preferred_element_type=jnp.float32) + bb,
                        0.0),
                    pp, preferred_element_type=jnp.float32)
                for f in feats
            ]
            f_comp, f_out, f_gt = feats
            c_s, hw_s = feat_shapes[s]

            prc_c += jnp.sum(jnp.abs(f_out - f_gt)) / (B * c_s * hw_s)
            prc_c += jnp.sum(jnp.abs(f_comp - f_gt)) / (B * c_s * hw_s)

            grams = [
                jax.lax.dot_general(f, f, (((1,), (1,)), ((), ())),
                                    preferred_element_type=jnp.float32)
                / (c_s * hw_s)
                for f in feats
            ]
            g_comp, g_out, g_gt = grams
            style_c += jnp.sum(jnp.abs(g_out - g_gt)) / (B * c_s * c_s)
            style_c += jnp.sum(jnp.abs(g_comp - g_gt)) / (B * c_s * c_s)

        acc_ref[0] += hole_c
        acc_ref[1] += valid_c
        acc_ref[2] += tv_c
        acc_ref[3] += prc_c
        acc_ref[4] += style_c

        @pl.when(b == B - 1)
        def _finalize():
            for i in range(5):
                loss_ref[0, i] = acc_ref[i]

    img_spec = pl.BlockSpec((1, C, HW), lambda b: (b, 0, 0))

    def const2d(arr):
        return pl.BlockSpec(arr.shape, lambda b: (0, 0))

    losses = pl.pallas_call(
        kernel,
        out_shape=jax.ShapeDtypeStruct((1, 5), jnp.float32),
        grid=(B,),
        in_specs=[img_spec, img_spec, img_spec, img_spec, const2d(wmask)]
                 + [const2d(a) for a in stage_args],
        out_specs=pl.BlockSpec((1, 5), lambda b: (0, 0),
                               memory_space=pltpu.MemorySpace.SMEM),
        scratch_shapes=[pltpu.SMEM((5,), jnp.float32)],
        compiler_params=pltpu.CompilerParams(
            # batch axis is a reduction (all losses are whole-batch means)
            dimension_semantics=("arbitrary",)),
    )(inp2, mask2, out2, gt2, wmask, *stage_args)

    return {
        'hole': losses[0, 0],
        'valid': losses[0, 1],
        'prc': losses[0, 3],
        'style': losses[0, 4],
        'tv': losses[0, 2],
    }


def make_extractor_params(key):
    widths = [(3, 8), (8, 16), (16, 32)]
    params = []
    for i, (cin, cout) in enumerate(widths):
        kw, kb = jax.random.split(jax.random.fold_in(key, i))
        w = jax.random.normal(kw, (cin, cout), jnp.float32) * 0.5
        b = jax.random.normal(kb, (cout,), jnp.float32) * 0.1
        params.append((w, b))
    return params


if __name__ == "__main__":
    key = jax.random.PRNGKey(0)
    k_in, k_out, k_gt, k_mask, k_par = jax.random.split(key, 5)

    B, C, H, W = 2, 3, 16, 16
    inp = jax.random.normal(k_in, (B, C, H, W), jnp.float32)
    output = jax.random.normal(k_out, (B, C, H, W), jnp.float32)
    gt = jax.random.normal(k_gt, (B, C, H, W), jnp.float32)
    mask = (jax.random.uniform(k_mask, (B, C, H, W)) > 0.5).astype(jnp.float32)

    params = make_extractor_params(k_par)

    loss_dict = jax.jit(inpainting_loss_forward)(inp, mask, output, gt, params)
    loss_dict = jax.tree_util.tree_map(jax.block_until_ready, loss_dict)

    # touch every value to make sure the kernel produced all loss terms
    _ = {k: float(v) for k, v in loss_dict.items()}
    print("KERNEL_OK")
</pallas_src>

<mosaic_0001>
module attributes {stable_mosaic.version = 11 : i64} {
  func.func @kernel(%arg0: i32, %arg1: memref<1x3x256xf32, #tpu.memory_space<vmem>>, %arg2: memref<1x3x256xf32, #tpu.memory_space<vmem>>, %arg3: memref<1x3x256xf32, #tpu.memory_space<vmem>>, %arg4: memref<1x3x256xf32, #tpu.memory_space<vmem>>, %arg5: memref<1x255xf32, #tpu.memory_space<vmem>>, %arg6: memref<8x3xf32, #tpu.memory_space<vmem>>, %arg7: memref<8x1xf32, #tpu.memory_space<vmem>>, %arg8: memref<256x64xf32, #tpu.memory_space<vmem>>, %arg9: memref<16x8xf32, #tpu.memory_space<vmem>>, %arg10: memref<16x1xf32, #tpu.memory_space<vmem>>, %arg11: memref<64x16xf32, #tpu.memory_space<vmem>>, %arg12: memref<32x16xf32, #tpu.memory_space<vmem>>, %arg13: memref<32x1xf32, #tpu.memory_space<vmem>>, %arg14: memref<16x4xf32, #tpu.memory_space<vmem>>, %arg15: memref<1x5xf32, #tpu.memory_space<smem>>, %arg16: memref<5xf32, #tpu.memory_space<smem>>) attributes {dimension_semantics = [#tpu.dimension_semantics<arbitrary>], iteration_bounds = array<i64: 2>, scalar_prefetch = 0 : i64, scratch_operands = 1 : i64, tpu.core_type = #tpu.core_type<tc>, window_params = [{transform_indices = @transform_0, window_bounds = array<i64: 1, 3, 256>}, {transform_indices = @transform_1, window_bounds = array<i64: 1, 3, 256>}, {transform_indices = @transform_2, window_bounds = array<i64: 1, 3, 256>}, {transform_indices = @transform_3, window_bounds = array<i64: 1, 3, 256>}, {pipeline_mode = #tpu.pipeline_mode<synchronous>, transform_indices = @transform_4, window_bounds = array<i64: 1, 255>}, {pipeline_mode = #tpu.pipeline_mode<synchronous>, transform_indices = @transform_5, window_bounds = array<i64: 8, 3>}, {pipeline_mode = #tpu.pipeline_mode<synchronous>, transform_indices = @transform_6, window_bounds = array<i64: 8, 1>}, {pipeline_mode = #tpu.pipeline_mode<synchronous>, transform_indices = @transform_7, window_bounds = array<i64: 256, 64>}, {pipeline_mode = #tpu.pipeline_mode<synchronous>, transform_indices = @transform_8, window_bounds = array<i64: 16, 8>}, {pipeline_mode = #tpu.pipeline_mode<synchronous>, transform_indices = @transform_9, window_bounds = array<i64: 16, 1>}, {pipeline_mode = #tpu.pipeline_mode<synchronous>, transform_indices = @transform_10, window_bounds = array<i64: 64, 16>}, {pipeline_mode = #tpu.pipeline_mode<synchronous>, transform_indices = @transform_11, window_bounds = array<i64: 32, 16>}, {pipeline_mode = #tpu.pipeline_mode<synchronous>, transform_indices = @transform_12, window_bounds = array<i64: 32, 1>}, {pipeline_mode = #tpu.pipeline_mode<synchronous>, transform_indices = @transform_13, window_bounds = array<i64: 16, 4>}, {transform_indices = @transform_14, window_bounds = array<i64: 1, 5>}]} {
    %c0_i32 = arith.constant 0 : i32
    %0 = arith.cmpi eq, %arg0, %c0_i32 : i32
    %1 = arith.extui %0 : i1 to i32
    %c0_i32_0 = arith.constant 0 : i32
    %2 = arith.cmpi ne, %1, %c0_i32_0 : i32
    scf.if %2 {
      %cst_120 = arith.constant 0.000000e+00 : f32
      %c0_121 = arith.constant 0 : index
      %264 = memref.load %arg16[%c0_121] : memref<5xf32, #tpu.memory_space<smem>>
      memref.store %cst_120, %arg16[%c0_121] : memref<5xf32, #tpu.memory_space<smem>>
      %cst_122 = arith.constant 0.000000e+00 : f32
      %c1_123 = arith.constant 1 : index
      %265 = memref.load %arg16[%c1_123] : memref<5xf32, #tpu.memory_space<smem>>
      memref.store %cst_122, %arg16[%c1_123] : memref<5xf32, #tpu.memory_space<smem>>
      %cst_124 = arith.constant 0.000000e+00 : f32
      %c2_125 = arith.constant 2 : index
      %266 = memref.load %arg16[%c2_125] : memref<5xf32, #tpu.memory_space<smem>>
      memref.store %cst_124, %arg16[%c2_125] : memref<5xf32, #tpu.memory_space<smem>>
      %cst_126 = arith.constant 0.000000e+00 : f32
      %c3_127 = arith.constant 3 : index
      %267 = memref.load %arg16[%c3_127] : memref<5xf32, #tpu.memory_space<smem>>
      memref.store %cst_126, %arg16[%c3_127] : memref<5xf32, #tpu.memory_space<smem>>
      %cst_128 = arith.constant 0.000000e+00 : f32
      %c4_129 = arith.constant 4 : index
      %268 = memref.load %arg16[%c4_129] : memref<5xf32, #tpu.memory_space<smem>>
      memref.store %cst_128, %arg16[%c4_129] : memref<5xf32, #tpu.memory_space<smem>>
    } else {
    }
    %c0 = arith.constant 0 : index
    %c0_1 = arith.constant 0 : index
    %c0_2 = arith.constant 0 : index
    %3 = vector.load %arg1[%c0, %c0_1, %c0_2] : memref<1x3x256xf32, #tpu.memory_space<vmem>>, vector<1x3x256xf32>
    %4 = vector.shape_cast %3 : vector<1x3x256xf32> to vector<3x256xf32>
    %c0_3 = arith.constant 0 : index
    %c0_4 = arith.constant 0 : index
    %c0_5 = arith.constant 0 : index
    %5 = vector.load %arg2[%c0_3, %c0_4, %c0_5] : memref<1x3x256xf32, #tpu.memory_space<vmem>>, vector<1x3x256xf32>
    %6 = vector.shape_cast %5 : vector<1x3x256xf32> to vector<3x256xf32>
    %c0_6 = arith.constant 0 : index
    %c0_7 = arith.constant 0 : index
    %c0_8 = arith.constant 0 : index
    %7 = vector.load %arg3[%c0_6, %c0_7, %c0_8] : memref<1x3x256xf32, #tpu.memory_space<vmem>>, vector<1x3x256xf32>
    %8 = vector.shape_cast %7 : vector<1x3x256xf32> to vector<3x256xf32>
    %c0_9 = arith.constant 0 : index
    %c0_10 = arith.constant 0 : index
    %c0_11 = arith.constant 0 : index
    %9 = vector.load %arg4[%c0_9, %c0_10, %c0_11] : memref<1x3x256xf32, #tpu.memory_space<vmem>>, vector<1x3x256xf32>
    %10 = vector.shape_cast %9 : vector<1x3x256xf32> to vector<3x256xf32>
    %c0_12 = arith.constant 0 : index
    %c0_13 = arith.constant 0 : index
    %11 = vector.load %arg5[%c0_12, %c0_13] : memref<1x255xf32, #tpu.memory_space<vmem>>, vector<1x255xf32>
    %12 = arith.mulf %6, %4 : vector<3x256xf32>
    %cst = arith.constant 1.000000e+00 : f32
    %13 = vector.broadcast %cst : f32 to vector<3x256xf32>
    %14 = arith.subf %13, %6 : vector<3x256xf32>
    %15 = arith.mulf %14, %8 : vector<3x256xf32>
    %16 = arith.addf %12, %15 : vector<3x256xf32>
    %cst_14 = arith.constant 1.000000e+00 : f32
    %17 = vector.broadcast %cst_14 : f32 to vector<3x256xf32>
    %18 = arith.subf %17, %6 : vector<3x256xf32>
    %19 = arith.mulf %18, %8 : vector<3x256xf32>
    %cst_15 = arith.constant 1.000000e+00 : f32
    %20 = vector.broadcast %cst_15 : f32 to vector<3x256xf32>
    %21 = arith.subf %20, %6 : vector<3x256xf32>
    %22 = arith.mulf %21, %10 : vector<3x256xf32>
    %23 = arith.subf %19, %22 : vector<3x256xf32>
    %24 = math.absf %23 : vector<3x256xf32>
    %25 = vector.shape_cast %24 : vector<3x256xf32> to vector<1x3x256xf32>
    %cst_16 = arith.constant dense<0.000000e+00> : vector<1xf32>
    %26 = vector.multi_reduction <add>, %25, %cst_16 [1, 2] : vector<1x3x256xf32> to vector<1xf32>
    %27 = vector.shape_cast %26 : vector<1xf32> to vector<1x1x1xf32>
    %28 = vector.extract %27[0, 0, 0] : f32 from vector<1x1x1xf32>
    %cst_17 = arith.constant 6.51041686E-4 : f32
    %29 = arith.mulf %28, %cst_17 : f32
    %30 = arith.mulf %6, %8 : vector<3x256xf32>
    %31 = arith.mulf %6, %10 : vector<3x256xf32>
    %32 = arith.subf %30, %31 : vector<3x256xf32>
    %33 = math.absf %32 : vector<3x256xf32>
    %34 = vector.shape_cast %33 : vector<3x256xf32> to vector<1x3x256xf32>
    %cst_18 = arith.constant dense<0.000000e+00> : vector<1xf32>
    %35 = vector.multi_reduction <add>, %34, %cst_18 [1, 2] : vector<1x3x256xf32> to vector<1xf32>
    %36 = vector.shape_cast %35 : vector<1xf32> to vector<1x1x1xf32>
    %37 = vector.extract %36[0, 0, 0] : f32 from vector<1x1x1xf32>
    %cst_19 = arith.constant 6.51041686E-4 : f32
    %38 = arith.mulf %37, %cst_19 : f32
    %39 = vector.extract_strided_slice %16 {offsets = [0, 0], sizes = [3, 255], strides = [1, 1]} : vector<3x256xf32> to vector<3x255xf32>
    %40 = vector.extract_strided_slice %16 {offsets = [0, 1], sizes = [3, 255], strides = [1, 1]} : vector<3x256xf32> to vector<3x255xf32>
    %41 = arith.subf %39, %40 : vector<3x255xf32>
    %42 = math.absf %41 : vector<3x255xf32>
    %43 = vector.broadcast %11 : vector<1x255xf32> to vector<3x255xf32>
    %44 = arith.mulf %42, %43 : vector<3x255xf32>
    %45 = vector.shape_cast %44 : vector<3x255xf32> to vector<1x3x255xf32>
    %cst_20 = arith.constant dense<0.000000e+00> : vector<1xf32>
    %46 = vector.multi_reduction <add>, %45, %cst_20 [1, 2] : vector<1x3x255xf32> to vector<1xf32>
    %47 = vector.shape_cast %46 : vector<1xf32> to vector<1x1x1xf32>
    %48 = vector.extract %47[0, 0, 0] : f32 from vector<1x1x1xf32>
    %49 = vector.extract_strided_slice %16 {offsets = [0, 0], sizes = [3, 240], strides = [1, 1]} : vector<3x256xf32> to vector<3x240xf32>
    %50 = vector.extract_strided_slice %16 {offsets = [0, 16], sizes = [3, 240], strides = [1, 1]} : vector<3x256xf32> to vector<3x240xf32>
    %51 = arith.subf %49, %50 : vector<3x240xf32>
    %52 = math.absf %51 : vector<3x240xf32>
    %53 = vector.shape_cast %52 : vector<3x240xf32> to vector<1x3x240xf32>
    %cst_21 = arith.constant dense<0.000000e+00> : vector<1xf32>
    %54 = vector.multi_reduction <add>, %53, %cst_21 [1, 2] : vector<1x3x240xf32> to vector<1xf32>
    %55 = vector.shape_cast %54 : vector<1xf32> to vector<1x1x1xf32>
    %56 = vector.extract %55[0, 0, 0] : f32 from vector<1x1x1xf32>
    %cst_22 = arith.constant 1.440000e+03 : f32
    %57 = arith.divf %48, %cst_22 : f32
    %cst_23 = arith.constant 1.440000e+03 : f32
    %58 = arith.divf %56, %cst_23 : f32
    %59 = arith.addf %57, %58 : f32
    %c0_24 = arith.constant 0 : index
    %c0_25 = arith.constant 0 : index
    %60 = vector.load %arg6[%c0_24, %c0_25] : memref<8x3xf32, #tpu.memory_space<vmem>>, vector<8x3xf32>
    %c0_26 = arith.constant 0 : index
    %c0_27 = arith.constant 0 : index
    %61 = vector.load %arg7[%c0_26, %c0_27] : memref<8x1xf32, #tpu.memory_space<vmem>>, vector<8x1xf32>
    %c0_28 = arith.constant 0 : index
    %c0_29 = arith.constant 0 : index
    %62 = vector.load %arg8[%c0_28, %c0_29] : memref<256x64xf32, #tpu.memory_space<vmem>>, vector<256x64xf32>
    %cst_30 = arith.constant dense<0.000000e+00> : vector<8x256xf32>
    %63 = tpu.matmul %60, %16, %cst_30 {dimension_numbers = #tpu.dot_dimension_numbers<[1], [0], [0], [1], [0, 0, 1, 1], [], []>} : vector<8x3xf32>, vector<3x256xf32>, vector<8x256xf32> -> vector<8x256xf32>
    %64 = vector.broadcast %61 : vector<8x1xf32> to vector<8x256xf32>
    %65 = arith.addf %63, %64 : vector<8x256xf32>
    %cst_31 = arith.constant 0.000000e+00 : f32
    %66 = vector.broadcast %cst_31 : f32 to vector<8x256xf32>
    %67 = arith.maximumf %65, %66 : vector<8x256xf32>
    %cst_32 = arith.constant dense<0.000000e+00> : vector<8x64xf32>
    %68 = tpu.matmul %67, %62, %cst_32 {dimension_numbers = #tpu.dot_dimension_numbers<[1], [0], [0], [1], [0, 0, 1, 1], [], []>} : vector<8x256xf32>, vector<256x64xf32>, vector<8x64xf32> -> vector<8x64xf32>
    %cst_33 = arith.constant dense<0.000000e+00> : vector<8x256xf32>
    %69 = tpu.matmul %60, %8, %cst_33 {dimension_numbers = #tpu.dot_dimension_numbers<[1], [0], [0], [1], [0, 0, 1, 1], [], []>} : vector<8x3xf32>, vector<3x256xf32>, vector<8x256xf32> -> vector<8x256xf32>
    %70 = vector.broadcast %61 : vector<8x1xf32> to vector<8x256xf32>
    %71 = arith.addf %69, %70 : vector<8x256xf32>
    %cst_34 = arith.constant 0.000000e+00 : f32
    %72 = vector.broadcast %cst_34 : f32 to vector<8x256xf32>
    %73 = arith.maximumf %71, %72 : vector<8x256xf32>
    %cst_35 = arith.constant dense<0.000000e+00> : vector<8x64xf32>
    %74 = tpu.matmul %73, %62, %cst_35 {dimension_numbers = #tpu.dot_dimension_numbers<[1], [0], [0], [1], [0, 0, 1, 1], [], []>} : vector<8x256xf32>, vector<256x64xf32>, vector<8x64xf32> -> vector<8x64xf32>
    %cst_36 = arith.constant dense<0.000000e+00> : vector<8x256xf32>
    %75 = tpu.matmul %60, %10, %cst_36 {dimension_numbers = #tpu.dot_dimension_numbers<[1], [0], [0], [1], [0, 0, 1, 1], [], []>} : vector<8x3xf32>, vector<3x256xf32>, vector<8x256xf32> -> vector<8x256xf32>
    %76 = vector.broadcast %61 : vector<8x1xf32> to vector<8x256xf32>
    %77 = arith.addf %75, %76 : vector<8x256xf32>
    %cst_37 = arith.constant 0.000000e+00 : f32
    %78 = vector.broadcast %cst_37 : f32 to vector<8x256xf32>
    %79 = arith.maximumf %77, %78 : vector<8x256xf32>
    %cst_38 = arith.constant dense<0.000000e+00> : vector<8x64xf32>
    %80 = tpu.matmul %79, %62, %cst_38 {dimension_numbers = #tpu.dot_dimension_numbers<[1], [0], [0], [1], [0, 0, 1, 1], [], []>} : vector<8x256xf32>, vector<256x64xf32>, vector<8x64xf32> -> vector<8x64xf32>
    %81 = arith.subf %74, %80 : vector<8x64xf32>
    %82 = math.absf %81 : vector<8x64xf32>
    %83 = vector.shape_cast %82 : vector<8x64xf32> to vector<1x8x64xf32>
    %cst_39 = arith.constant dense<0.000000e+00> : vector<1xf32>
    %84 = vector.multi_reduction <add>, %83, %cst_39 [1, 2] : vector<1x8x64xf32> to vector<1xf32>
    %85 = vector.shape_cast %84 : vector<1xf32> to vector<1x1x1xf32>
    %86 = vector.extract %85[0, 0, 0] : f32 from vector<1x1x1xf32>
    %cst_40 = arith.constant 1.024000e+03 : f32
    %87 = arith.divf %86, %cst_40 : f32
    %cst_41 = arith.constant 0.000000e+00 : f32
    %88 = arith.addf %cst_41, %87 : f32
    %89 = arith.subf %68, %80 : vector<8x64xf32>
    %90 = math.absf %89 : vector<8x64xf32>
    %91 = vector.shape_cast %90 : vector<8x64xf32> to vector<1x8x64xf32>
    %cst_42 = arith.constant dense<0.000000e+00> : vector<1xf32>
    %92 = vector.multi_reduction <add>, %91, %cst_42 [1, 2] : vector<1x8x64xf32> to vector<1xf32>
    %93 = vector.shape_cast %92 : vector<1xf32> to vector<1x1x1xf32>
    %94 = vector.extract %93[0, 0, 0] : f32 from vector<1x1x1xf32>
    %cst_43 = arith.constant 1.024000e+03 : f32
    %95 = arith.divf %94, %cst_43 : f32
    %96 = arith.addf %88, %95 : f32
    %cst_44 = arith.constant dense<0.000000e+00> : vector<8x8xf32>
    %97 = tpu.matmul %68, %68, %cst_44 {dimension_numbers = #tpu.dot_dimension_numbers<[1], [1], [0], [0], [0, 0, 1, 0], [], []>} : vector<8x64xf32>, vector<8x64xf32>, vector<8x8xf32> -> vector<8x8xf32>
    %cst_45 = arith.constant 5.120000e+02 : f32
    %98 = vector.broadcast %cst_45 : f32 to vector<8x8xf32>
    %99 = arith.divf %97, %98 : vector<8x8xf32>
    %cst_46 = arith.constant dense<0.000000e+00> : vector<8x8xf32>
    %100 = tpu.matmul %74, %74, %cst_46 {dimension_numbers = #tpu.dot_dimension_numbers<[1], [1], [0], [0], [0, 0, 1, 0], [], []>} : vector<8x64xf32>, vector<8x64xf32>, vector<8x8xf32> -> vector<8x8xf32>
    %cst_47 = arith.constant 5.120000e+02 : f32
    %101 = vector.broadcast %cst_47 : f32 to vector<8x8xf32>
    %102 = arith.divf %100, %101 : vector<8x8xf32>
    %cst_48 = arith.constant dense<0.000000e+00> : vector<8x8xf32>
    %103 = tpu.matmul %80, %80, %cst_48 {dimension_numbers = #tpu.dot_dimension_numbers<[1], [1], [0], [0], [0, 0, 1, 0], [], []>} : vector<8x64xf32>, vector<8x64xf32>, vector<8x8xf32> -> vector<8x8xf32>
    %cst_49 = arith.constant 5.120000e+02 : f32
    %104 = vector.broadcast %cst_49 : f32 to vector<8x8xf32>
    %105 = arith.divf %103, %104 : vector<8x8xf32>
    %106 = arith.subf %102, %105 : vector<8x8xf32>
    %107 = math.absf %106 : vector<8x8xf32>
    %108 = vector.shape_cast %107 : vector<8x8xf32> to vector<1x8x8xf32>
    %cst_50 = arith.constant dense<0.000000e+00> : vector<1xf32>
    %109 = vector.multi_reduction <add>, %108, %cst_50 [1, 2] : vector<1x8x8xf32> to vector<1xf32>
    %110 = vector.shape_cast %109 : vector<1xf32> to vector<1x1x1xf32>
    %111 = vector.extract %110[0, 0, 0] : f32 from vector<1x1x1xf32>
    %cst_51 = arith.constant 1.280000e+02 : f32
    %112 = arith.divf %111, %cst_51 : f32
    %cst_52 = arith.constant 0.000000e+00 : f32
    %113 = arith.addf %cst_52, %112 : f32
    %114 = arith.subf %99, %105 : vector<8x8xf32>
    %115 = math.absf %114 : vector<8x8xf32>
    %116 = vector.shape_cast %115 : vector<8x8xf32> to vector<1x8x8xf32>
    %cst_53 = arith.constant dense<0.000000e+00> : vector<1xf32>
    %117 = vector.multi_reduction <add>, %116, %cst_53 [1, 2] : vector<1x8x8xf32> to vector<1xf32>
    %118 = vector.shape_cast %117 : vector<1xf32> to vector<1x1x1xf32>
    %119 = vector.extract %118[0, 0, 0] : f32 from vector<1x1x1xf32>
    %cst_54 = arith.constant 1.280000e+02 : f32
    %120 = arith.divf %119, %cst_54 : f32
    %121 = arith.addf %113, %120 : f32
    %c0_55 = arith.constant 0 : index
    %c0_56 = arith.constant 0 : index
    %122 = vector.load %arg9[%c0_55, %c0_56] : memref<16x8xf32, #tpu.memory_space<vmem>>, vector<16x8xf32>
    %c0_57 = arith.constant 0 : index
    %c0_58 = arith.constant 0 : index
    %123 = vector.load %arg10[%c0_57, %c0_58] : memref<16x1xf32, #tpu.memory_space<vmem>>, vector<16x1xf32>
    %c0_59 = arith.constant 0 : index
    %c0_60 = arith.constant 0 : index
    %124 = vector.load %arg11[%c0_59, %c0_60] : memref<64x16xf32, #tpu.memory_space<vmem>>, vector<64x16xf32>
    %cst_61 = arith.constant dense<0.000000e+00> : vector<16x64xf32>
    %125 = tpu.matmul %122, %68, %cst_61 {dimension_numbers = #tpu.dot_dimension_numbers<[1], [0], [0], [1], [0, 0, 1, 1], [], []>} : vector<16x8xf32>, vector<8x64xf32>, vector<16x64xf32> -> vector<16x64xf32>
    %126 = vector.broadcast %123 : vector<16x1xf32> to vector<16x64xf32>
    %127 = arith.addf %125, %126 : vector<16x64xf32>
    %cst_62 = arith.constant 0.000000e+00 : f32
    %128 = vector.broadcast %cst_62 : f32 to vector<16x64xf32>
    %129 = arith.maximumf %127, %128 : vector<16x64xf32>
    %cst_63 = arith.constant dense<0.000000e+00> : vector<16x16xf32>
    %130 = tpu.matmul %129, %124, %cst_63 {dimension_numbers = #tpu.dot_dimension_numbers<[1], [0], [0], [1], [0, 0, 1, 1], [], []>} : vector<16x64xf32>, vector<64x16xf32>, vector<16x16xf32> -> vector<16x16xf32>
    %cst_64 = arith.constant dense<0.000000e+00> : vector<16x64xf32>
    %131 = tpu.matmul %122, %74, %cst_64 {dimension_numbers = #tpu.dot_dimension_numbers<[1], [0], [0], [1], [0, 0, 1, 1], [], []>} : vector<16x8xf32>, vector<8x64xf32>, vector<16x64xf32> -> vector<16x64xf32>
    %132 = vector.broadcast %123 : vector<16x1xf32> to vector<16x64xf32>
    %133 = arith.addf %131, %132 : vector<16x64xf32>
    %cst_65 = arith.constant 0.000000e+00 : f32
    %134 = vector.broadcast %cst_65 : f32 to vector<16x64xf32>
    %135 = arith.maximumf %133, %134 : vector<16x64xf32>
    %cst_66 = arith.constant dense<0.000000e+00> : vector<16x16xf32>
    %136 = tpu.matmul %135, %124, %cst_66 {dimension_numbers = #tpu.dot_dimension_numbers<[1], [0], [0], [1], [0, 0, 1, 1], [], []>} : vector<16x64xf32>, vector<64x16xf32>, vector<16x16xf32> -> vector<16x16xf32>
    %cst_67 = arith.constant dense<0.000000e+00> : vector<16x64xf32>
    %137 = tpu.matmul %122, %80, %cst_67 {dimension_numbers = #tpu.dot_dimension_numbers<[1], [0], [0], [1], [0, 0, 1, 1], [], []>} : vector<16x8xf32>, vector<8x64xf32>, vector<16x64xf32> -> vector<16x64xf32>
    %138 = vector.broadcast %123 : vector<16x1xf32> to vector<16x64xf32>
    %139 = arith.addf %137, %138 : vector<16x64xf32>
    %cst_68 = arith.constant 0.000000e+00 : f32
    %140 = vector.broadcast %cst_68 : f32 to vector<16x64xf32>
    %141 = arith.maximumf %139, %140 : vector<16x64xf32>
    %cst_69 = arith.constant dense<0.000000e+00> : vector<16x16xf32>
    %142 = tpu.matmul %141, %124, %cst_69 {dimension_numbers = #tpu.dot_dimension_numbers<[1], [0], [0], [1], [0, 0, 1, 1], [], []>} : vector<16x64xf32>, vector<64x16xf32>, vector<16x16xf32> -> vector<16x16xf32>
    %143 = arith.subf %136, %142 : vector<16x16xf32>
    %144 = math.absf %143 : vector<16x16xf32>
    %145 = vector.shape_cast %144 : vector<16x16xf32> to vector<1x16x16xf32>
    %cst_70 = arith.constant dense<0.000000e+00> : vector<1xf32>
    %146 = vector.multi_reduction <add>, %145, %cst_70 [1, 2] : vector<1x16x16xf32> to vector<1xf32>
    %147 = vector.shape_cast %146 : vector<1xf32> to vector<1x1x1xf32>
    %148 = vector.extract %147[0, 0, 0] : f32 from vector<1x1x1xf32>
    %cst_71 = arith.constant 5.120000e+02 : f32
    %149 = arith.divf %148, %cst_71 : f32
    %150 = arith.addf %96, %149 : f32
    %151 = arith.subf %130, %142 : vector<16x16xf32>
    %152 = math.absf %151 : vector<16x16xf32>
    %153 = vector.shape_cast %152 : vector<16x16xf32> to vector<1x16x16xf32>
    %cst_72 = arith.constant dense<0.000000e+00> : vector<1xf32>
    %154 = vector.multi_reduction <add>, %153, %cst_72 [1, 2] : vector<1x16x16xf32> to vector<1xf32>
    %155 = vector.shape_cast %154 : vector<1xf32> to vector<1x1x1xf32>
    %156 = vector.extract %155[0, 0, 0] : f32 from vector<1x1x1xf32>
    %cst_73 = arith.constant 5.120000e+02 : f32
    %157 = arith.divf %156, %cst_73 : f32
    %158 = arith.addf %150, %157 : f32
    %cst_74 = arith.constant dense<0.000000e+00> : vector<16x16xf32>
    %159 = tpu.matmul %130, %130, %cst_74 {dimension_numbers = #tpu.dot_dimension_numbers<[1], [1], [0], [0], [0, 0, 1, 0], [], []>} : vector<16x16xf32>, vector<16x16xf32>, vector<16x16xf32> -> vector<16x16xf32>
    %cst_75 = arith.constant 2.560000e+02 : f32
    %160 = vector.broadcast %cst_75 : f32 to vector<16x16xf32>
    %161 = arith.divf %159, %160 : vector<16x16xf32>
    %cst_76 = arith.constant dense<0.000000e+00> : vector<16x16xf32>
    %162 = tpu.matmul %136, %136, %cst_76 {dimension_numbers = #tpu.dot_dimension_numbers<[1], [1], [0], [0], [0, 0, 1, 0], [], []>} : vector<16x16xf32>, vector<16x16xf32>, vector<16x16xf32> -> vector<16x16xf32>
    %cst_77 = arith.constant 2.560000e+02 : f32
    %163 = vector.broadcast %cst_77 : f32 to vector<16x16xf32>
    %164 = arith.divf %162, %163 : vector<16x16xf32>
    %cst_78 = arith.constant dense<0.000000e+00> : vector<16x16xf32>
    %165 = tpu.matmul %142, %142, %cst_78 {dimension_numbers = #tpu.dot_dimension_numbers<[1], [1], [0], [0], [0, 0, 1, 0], [], []>} : vector<16x16xf32>, vector<16x16xf32>, vector<16x16xf32> -> vector<16x16xf32>
    %cst_79 = arith.constant 2.560000e+02 : f32
    %166 = vector.broadcast %cst_79 : f32 to vector<16x16xf32>
    %167 = arith.divf %165, %166 : vector<16x16xf32>
    %168 = arith.subf %164, %167 : vector<16x16xf32>
    %169 = math.absf %168 : vector<16x16xf32>
    %170 = vector.shape_cast %169 : vector<16x16xf32> to vector<1x16x16xf32>
    %cst_80 = arith.constant dense<0.000000e+00> : vector<1xf32>
    %171 = vector.multi_reduction <add>, %170, %cst_80 [1, 2] : vector<1x16x16xf32> to vector<1xf32>
    %172 = vector.shape_cast %171 : vector<1xf32> to vector<1x1x1xf32>
    %173 = vector.extract %172[0, 0, 0] : f32 from vector<1x1x1xf32>
    %cst_81 = arith.constant 5.120000e+02 : f32
    %174 = arith.divf %173, %cst_81 : f32
    %175 = arith.addf %121, %174 : f32
    %176 = arith.subf %161, %167 : vector<16x16xf32>
    %177 = math.absf %176 : vector<16x16xf32>
    %178 = vector.shape_cast %177 : vector<16x16xf32> to vector<1x16x16xf32>
    %cst_82 = arith.constant dense<0.000000e+00> : vector<1xf32>
    %179 = vector.multi_reduction <add>, %178, %cst_82 [1, 2] : vector<1x16x16xf32> to vector<1xf32>
    %180 = vector.shape_cast %179 : vector<1xf32> to vector<1x1x1xf32>
    %181 = vector.extract %180[0, 0, 0] : f32 from vector<1x1x1xf32>
    %cst_83 = arith.constant 5.120000e+02 : f32
    %182 = arith.divf %181, %cst_83 : f32
    %183 = arith.addf %175, %182 : f32
    %c0_84 = arith.constant 0 : index
    %c0_85 = arith.constant 0 : index
    %184 = vector.load %arg12[%c0_84, %c0_85] : memref<32x16xf32, #tpu.memory_space<vmem>>, vector<32x16xf32>
    %c0_86 = arith.constant 0 : index
    %c0_87 = arith.constant 0 : index
    %185 = vector.load %arg13[%c0_86, %c0_87] : memref<32x1xf32, #tpu.memory_space<vmem>>, vector<32x1xf32>
    %c0_88 = arith.constant 0 : index
    %c0_89 = arith.constant 0 : index
    %186 = vector.load %arg14[%c0_88, %c0_89] : memref<16x4xf32, #tpu.memory_space<vmem>>, vector<16x4xf32>
    %cst_90 = arith.constant dense<0.000000e+00> : vector<32x16xf32>
    %187 = tpu.matmul %184, %130, %cst_90 {dimension_numbers = #tpu.dot_dimension_numbers<[1], [0], [0], [1], [0, 0, 1, 1], [], []>} : vector<32x16xf32>, vector<16x16xf32>, vector<32x16xf32> -> vector<32x16xf32>
    %188 = vector.broadcast %185 : vector<32x1xf32> to vector<32x16xf32>
    %189 = arith.addf %187, %188 : vector<32x16xf32>
    %cst_91 = arith.constant 0.000000e+00 : f32
    %190 = vector.broadcast %cst_91 : f32 to vector<32x16xf32>
    %191 = arith.maximumf %189, %190 : vector<32x16xf32>
    %cst_92 = arith.constant dense<0.000000e+00> : vector<32x4xf32>
    %192 = tpu.matmul %191, %186, %cst_92 {dimension_numbers = #tpu.dot_dimension_numbers<[1], [0], [0], [1], [0, 0, 1, 1], [], []>} : vector<32x16xf32>, vector<16x4xf32>, vector<32x4xf32> -> vector<32x4xf32>
    %cst_93 = arith.constant dense<0.000000e+00> : vector<32x16xf32>
    %193 = tpu.matmul %184, %136, %cst_93 {dimension_numbers = #tpu.dot_dimension_numbers<[1], [0], [0], [1], [0, 0, 1, 1], [], []>} : vector<32x16xf32>, vector<16x16xf32>, vector<32x16xf32> -> vector<32x16xf32>
    %194 = vector.broadcast %185 : vector<32x1xf32> to vector<32x16xf32>
    %195 = arith.addf %193, %194 : vector<32x16xf32>
    %cst_94 = arith.constant 0.000000e+00 : f32
    %196 = vector.broadcast %cst_94 : f32 to vector<32x16xf32>
    %197 = arith.maximumf %195, %196 : vector<32x16xf32>
    %cst_95 = arith.constant dense<0.000000e+00> : vector<32x4xf32>
    %198 = tpu.matmul %197, %186, %cst_95 {dimension_numbers = #tpu.dot_dimension_numbers<[1], [0], [0], [1], [0, 0, 1, 1], [], []>} : vector<32x16xf32>, vector<16x4xf32>, vector<32x4xf32> -> vector<32x4xf32>
    %cst_96 = arith.constant dense<0.000000e+00> : vector<32x16xf32>
    %199 = tpu.matmul %184, %142, %cst_96 {dimension_numbers = #tpu.dot_dimension_numbers<[1], [0], [0], [1], [0, 0, 1, 1], [], []>} : vector<32x16xf32>, vector<16x16xf32>, vector<32x16xf32> -> vector<32x16xf32>
    %200 = vector.broadcast %185 : vector<32x1xf32> to vector<32x16xf32>
    %201 = arith.addf %199, %200 : vector<32x16xf32>
    %cst_97 = arith.constant 0.000000e+00 : f32
    %202 = vector.broadcast %cst_97 : f32 to vector<32x16xf32>
    %203 = arith.maximumf %201, %202 : vector<32x16xf32>
    %cst_98 = arith.constant dense<0.000000e+00> : vector<32x4xf32>
    %204 = tpu.matmul %203, %186, %cst_98 {dimension_numbers = #tpu.dot_dimension_numbers<[1], [0], [0], [1], [0, 0, 1, 1], [], []>} : vector<32x16xf32>, vector<16x4xf32>, vector<32x4xf32> -> vector<32x4xf32>
    %205 = arith.subf %198, %204 : vector<32x4xf32>
    %206 = math.absf %205 : vector<32x4xf32>
    %207 = vector.shape_cast %206 : vector<32x4xf32> to vector<1x32x4xf32>
    %cst_99 = arith.constant dense<0.000000e+00> : vector<1xf32>
    %208 = vector.multi_reduction <add>, %207, %cst_99 [1, 2] : vector<1x32x4xf32> to vector<1xf32>
    %209 = vector.shape_cast %208 : vector<1xf32> to vector<1x1x1xf32>
    %210 = vector.extract %209[0, 0, 0] : f32 from vector<1x1x1xf32>
    %cst_100 = arith.constant 2.560000e+02 : f32
    %211 = arith.divf %210, %cst_100 : f32
    %212 = arith.addf %158, %211 : f32
    %213 = arith.subf %192, %204 : vector<32x4xf32>
    %214 = math.absf %213 : vector<32x4xf32>
    %215 = vector.shape_cast %214 : vector<32x4xf32> to vector<1x32x4xf32>
    %cst_101 = arith.constant dense<0.000000e+00> : vector<1xf32>
    %216 = vector.multi_reduction <add>, %215, %cst_101 [1, 2] : vector<1x32x4xf32> to vector<1xf32>
    %217 = vector.shape_cast %216 : vector<1xf32> to vector<1x1x1xf32>
    %218 = vector.extract %217[0, 0, 0] : f32 from vector<1x1x1xf32>
    %cst_102 = arith.constant 2.560000e+02 : f32
    %219 = arith.divf %218, %cst_102 : f32
    %220 = arith.addf %212, %219 : f32
    %cst_103 = arith.constant dense<0.000000e+00> : vector<32x32xf32>
    %221 = tpu.matmul %192, %192, %cst_103 {dimension_numbers = #tpu.dot_dimension_numbers<[1], [1], [0], [0], [0, 0, 1, 0], [], []>} : vector<32x4xf32>, vector<32x4xf32>, vector<32x32xf32> -> vector<32x32xf32>
    %cst_104 = arith.constant 1.280000e+02 : f32
    %222 = vector.broadcast %cst_104 : f32 to vector<32x32xf32>
    %223 = arith.divf %221, %222 : vector<32x32xf32>
    %cst_105 = arith.constant dense<0.000000e+00> : vector<32x32xf32>
    %224 = tpu.matmul %198, %198, %cst_105 {dimension_numbers = #tpu.dot_dimension_numbers<[1], [1], [0], [0], [0, 0, 1, 0], [], []>} : vector<32x4xf32>, vector<32x4xf32>, vector<32x32xf32> -> vector<32x32xf32>
    %cst_106 = arith.constant 1.280000e+02 : f32
    %225 = vector.broadcast %cst_106 : f32 to vector<32x32xf32>
    %226 = arith.divf %224, %225 : vector<32x32xf32>
    %cst_107 = arith.constant dense<0.000000e+00> : vector<32x32xf32>
    %227 = tpu.matmul %204, %204, %cst_107 {dimension_numbers = #tpu.dot_dimension_numbers<[1], [1], [0], [0], [0, 0, 1, 0], [], []>} : vector<32x4xf32>, vector<32x4xf32>, vector<32x32xf32> -> vector<32x32xf32>
    %cst_108 = arith.constant 1.280000e+02 : f32
    %228 = vector.broadcast %cst_108 : f32 to vector<32x32xf32>
    %229 = arith.divf %227, %228 : vector<32x32xf32>
    %230 = arith.subf %226, %229 : vector<32x32xf32>
    %231 = math.absf %230 : vector<32x32xf32>
    %232 = vector.shape_cast %231 : vector<32x32xf32> to vector<1x32x32xf32>
    %cst_109 = arith.constant dense<0.000000e+00> : vector<1xf32>
    %233 = vector.multi_reduction <add>, %232, %cst_109 [1, 2] : vector<1x32x32xf32> to vector<1xf32>
    %234 = vector.shape_cast %233 : vector<1xf32> to vector<1x1x1xf32>
    %235 = vector.extract %234[0, 0, 0] : f32 from vector<1x1x1xf32>
    %cst_110 = arith.constant 2.048000e+03 : f32
    %236 = arith.divf %235, %cst_110 : f32
    %237 = arith.addf %183, %236 : f32
    %238 = arith.subf %223, %229 : vector<32x32xf32>
    %239 = math.absf %238 : vector<32x32xf32>
    %240 = vector.shape_cast %239 : vector<32x32xf32> to vector<1x32x32xf32>
    %cst_111 = arith.constant dense<0.000000e+00> : vector<1xf32>
    %241 = vector.multi_reduction <add>, %240, %cst_111 [1, 2] : vector<1x32x32xf32> to vector<1xf32>
    %242 = vector.shape_cast %241 : vector<1xf32> to vector<1x1x1xf32>
    %243 = vector.extract %242[0, 0, 0] : f32 from vector<1x1x1xf32>
    %cst_112 = arith.constant 2.048000e+03 : f32
    %244 = arith.divf %243, %cst_112 : f32
    %245 = arith.addf %237, %244 : f32
    %c0_113 = arith.constant 0 : index
    %246 = memref.load %arg16[%c0_113] : memref<5xf32, #tpu.memory_space<smem>>
    %247 = arith.addf %246, %29 : f32
    %c0_114 = arith.constant 0 : index
    %248 = memref.load %arg16[%c0_114] : memref<5xf32, #tpu.memory_space<smem>>
    memref.store %247, %arg16[%c0_114] : memref<5xf32, #tpu.memory_space<smem>>
    %c1 = arith.constant 1 : index
    %249 = memref.load %arg16[%c1] : memref<5xf32, #tpu.memory_space<smem>>
    %250 = arith.addf %249, %38 : f32
    %c1_115 = arith.constant 1 : index
    %251 = memref.load %arg16[%c1_115] : memref<5xf32, #tpu.memory_space<smem>>
    memref.store %250, %arg16[%c1_115] : memref<5xf32, #tpu.memory_space<smem>>
    %c2 = arith.constant 2 : index
    %252 = memref.load %arg16[%c2] : memref<5xf32, #tpu.memory_space<smem>>
    %253 = arith.addf %252, %59 : f32
    %c2_116 = arith.constant 2 : index
    %254 = memref.load %arg16[%c2_116] : memref<5xf32, #tpu.memory_space<smem>>
    memref.store %253, %arg16[%c2_116] : memref<5xf32, #tpu.memory_space<smem>>
    %c3 = arith.constant 3 : index
    %255 = memref.load %arg16[%c3] : memref<5xf32, #tpu.memory_space<smem>>
    %256 = arith.addf %255, %220 : f32
    %c3_117 = arith.constant 3 : index
    %257 = memref.load %arg16[%c3_117] : memref<5xf32, #tpu.memory_space<smem>>
    memref.store %256, %arg16[%c3_117] : memref<5xf32, #tpu.memory_space<smem>>
    %c4 = arith.constant 4 : index
    %258 = memref.load %arg16[%c4] : memref<5xf32, #tpu.memory_space<smem>>
    %259 = arith.addf %258, %245 : f32
    %c4_118 = arith.constant 4 : index
    %260 = memref.load %arg16[%c4_118] : memref<5xf32, #tpu.memory_space<smem>>
    memref.store %259, %arg16[%c4_118] : memref<5xf32, #tpu.memory_space<smem>>
    %c1_i32 = arith.constant 1 : i32
    %261 = arith.cmpi eq, %arg0, %c1_i32 : i32
    %262 = arith.extui %261 : i1 to i32
    %c0_i32_119 = arith.constant 0 : i32
    %263 = arith.cmpi ne, %262, %c0_i32_119 : i32
    scf.if %263 {
      %c0_120 = arith.constant 0 : index
      %264 = memref.load %arg16[%c0_120] : memref<5xf32, #tpu.memory_space<smem>>
      %c0_121 = arith.constant 0 : index
      %c0_122 = arith.constant 0 : index
      %265 = memref.load %arg15[%c0_121, %c0_122] : memref<1x5xf32, #tpu.memory_space<smem>>
      memref.store %264, %arg15[%c0_121, %c0_122] : memref<1x5xf32, #tpu.memory_space<smem>>
      %c1_123 = arith.constant 1 : index
      %266 = memref.load %arg16[%c1_123] : memref<5xf32, #tpu.memory_space<smem>>
      %c0_124 = arith.constant 0 : index
      %c1_125 = arith.constant 1 : index
      %267 = memref.load %arg15[%c0_124, %c1_125] : memref<1x5xf32, #tpu.memory_space<smem>>
      memref.store %266, %arg15[%c0_124, %c1_125] : memref<1x5xf32, #tpu.memory_space<smem>>
      %c2_126 = arith.constant 2 : index
      %268 = memref.load %arg16[%c2_126] : memref<5xf32, #tpu.memory_space<smem>>
      %c0_127 = arith.constant 0 : index
      %c2_128 = arith.constant 2 : index
      %269 = memref.load %arg15[%c0_127, %c2_128] : memref<1x5xf32, #tpu.memory_space<smem>>
      memref.store %268, %arg15[%c0_127, %c2_128] : memref<1x5xf32, #tpu.memory_space<smem>>
      %c3_129 = arith.constant 3 : index
      %270 = memref.load %arg16[%c3_129] : memref<5xf32, #tpu.memory_space<smem>>
      %c0_130 = arith.constant 0 : index
      %c3_131 = arith.constant 3 : index
      %271 = memref.load %arg15[%c0_130, %c3_131] : memref<1x5xf32, #tpu.memory_space<smem>>
      memref.store %270, %arg15[%c0_130, %c3_131] : memref<1x5xf32, #tpu.memory_space<smem>>
      %c4_132 = arith.constant 4 : index
      %272 = memref.load %arg16[%c4_132] : memref<5xf32, #tpu.memory_space<smem>>
      %c0_133 = arith.constant 0 : index
      %c4_134 = arith.constant 4 : index
      %273 = memref.load %arg15[%c0_133, %c4_134] : memref<1x5xf32, #tpu.memory_space<smem>>
      memref.store %272, %arg15[%c0_133, %c4_134] : memref<1x5xf32, #tpu.memory_space<smem>>
    } else {
    }
    return
  }
  func.func @transform_0(%arg0: i32) -> (i32, i32, i32) {
    %c0_i32 = arith.constant 0 : i32
    %c0_i32_0 = arith.constant 0 : i32
    %c0_i32_1 = arith.constant 0 : i32
    return %arg0, %c0_i32, %c0_i32_0 : i32, i32, i32
  }
  func.func @transform_1(%arg0: i32) -> (i32, i32, i32) {
    %c0_i32 = arith.constant 0 : i32
    %c0_i32_0 = arith.constant 0 : i32
    %c0_i32_1 = arith.constant 0 : i32
    return %arg0, %c0_i32, %c0_i32_0 : i32, i32, i32
  }
  func.func @transform_2(%arg0: i32) -> (i32, i32, i32) {
    %c0_i32 = arith.constant 0 : i32
    %c0_i32_0 = arith.constant 0 : i32
    %c0_i32_1 = arith.constant 0 : i32
    return %arg0, %c0_i32, %c0_i32_0 : i32, i32, i32
  }
  func.func @transform_3(%arg0: i32) -> (i32, i32, i32) {
    %c0_i32 = arith.constant 0 : i32
    %c0_i32_0 = arith.constant 0 : i32
    %c0_i32_1 = arith.constant 0 : i32
    return %arg0, %c0_i32, %c0_i32_0 : i32, i32, i32
  }
  func.func @transform_4(%arg0: i32) -> (i32, i32) {
    %c0_i32 = arith.constant 0 : i32
    %c0_i32_0 = arith.constant 0 : i32
    %c0_i32_1 = arith.constant 0 : i32
    return %c0_i32, %c0_i32_0 : i32, i32
  }
  func.func @transform_5(%arg0: i32) -> (i32, i32) {
    %c0_i32 = arith.constant 0 : i32
    %c0_i32_0 = arith.constant 0 : i32
    %c0_i32_1 = arith.constant 0 : i32
    return %c0_i32, %c0_i32_0 : i32, i32
  }
  func.func @transform_6(%arg0: i32) -> (i32, i32) {
    %c0_i32 = arith.constant 0 : i32
    %c0_i32_0 = arith.constant 0 : i32
    %c0_i32_1 = arith.constant 0 : i32
    return %c0_i32, %c0_i32_0 : i32, i32
  }
  func.func @transform_7(%arg0: i32) -> (i32, i32) {
    %c0_i32 = arith.constant 0 : i32
    %c0_i32_0 = arith.constant 0 : i32
    %c0_i32_1 = arith.constant 0 : i32
    return %c0_i32, %c0_i32_0 : i32, i32
  }
  func.func @transform_8(%arg0: i32) -> (i32, i32) {
    %c0_i32 = arith.constant 0 : i32
    %c0_i32_0 = arith.constant 0 : i32
    %c0_i32_1 = arith.constant 0 : i32
    return %c0_i32, %c0_i32_0 : i32, i32
  }
  func.func @transform_9(%arg0: i32) -> (i32, i32) {
    %c0_i32 = arith.constant 0 : i32
    %c0_i32_0 = arith.constant 0 : i32
    %c0_i32_1 = arith.constant 0 : i32
    return %c0_i32, %c0_i32_0 : i32, i32
  }
  func.func @transform_10(%arg0: i32) -> (i32, i32) {
    %c0_i32 = arith.constant 0 : i32
    %c0_i32_0 = arith.constant 0 : i32
    %c0_i32_1 = arith.constant 0 : i32
    return %c0_i32, %c0_i32_0 : i32, i32
  }
  func.func @transform_11(%arg0: i32) -> (i32, i32) {
    %c0_i32 = arith.constant 0 : i32
    %c0_i32_0 = arith.constant 0 : i32
    %c0_i32_1 = arith.constant 0 : i32
    return %c0_i32, %c0_i32_0 : i32, i32
  }
  func.func @transform_12(%arg0: i32) -> (i32, i32) {
    %c0_i32 = arith.constant 0 : i32
    %c0_i32_0 = arith.constant 0 : i32
    %c0_i32_1 = arith.constant 0 : i32
    return %c0_i32, %c0_i32_0 : i32, i32
  }
  func.func @transform_13(%arg0: i32) -> (i32, i32) {
    %c0_i32 = arith.constant 0 : i32
    %c0_i32_0 = arith.constant 0 : i32
    %c0_i32_1 = arith.constant 0 : i32
    return %c0_i32, %c0_i32_0 : i32, i32
  }
  func.func @transform_14(%arg0: i32) -> (i32, i32) {
    %c0_i32 = arith.constant 0 : i32
    %c0_i32_0 = arith.constant 0 : i32
    %c0_i32_1 = arith.constant 0 : i32
    return %c0_i32, %c0_i32_0 : i32, i32
  }
}

</mosaic_0001>

<llo_original>
// kernel: inpainting_loss_forward.1
$region0: #{inpainting_loss_forward.1}
  #allocation0 [shape = 'u32[]', space=smem, size = 0x4, offset = 0x4, fixed_abs, tag = 'smem constant byte address 0x4 - core index']
  #allocation1 [shape = 'u32[144,128]{1,0:T(1,128)}', space=vmem, size = 0x12000, scoped, tag = 'internal scratch']
  #allocation2 [shape = 'f32[5]{0:T(128)}', space=smem, size = 0x200, scoped, tag = 'scratch operand']
  %s0 = inlined_call_operand.vmem [shape: f32[2,3,256], index: 0, kind: input, shape index: {}]
  %s1 = inlined_call_operand.vmem [shape: f32[2,3,256], index: 1, kind: input, shape index: {}]
  %s2 = inlined_call_operand.vmem [shape: f32[2,3,256], index: 2, kind: input, shape index: {}]
  %s3 = inlined_call_operand.vmem [shape: f32[2,3,256], index: 3, kind: input, shape index: {}]
  %s4 = inlined_call_operand.vmem [shape: f32[1,255], index: 4, kind: input, shape index: {}]
  %s5 = inlined_call_operand.vmem [shape: f32[8,3], index: 5, kind: input, shape index: {}]
  %s6 = inlined_call_operand.vmem [shape: f32[8,1], index: 6, kind: input, shape index: {}]
  %s7 = inlined_call_operand.vmem [shape: f32[256,64], index: 7, kind: input, shape index: {}]
  %s8 = inlined_call_operand.vmem [shape: f32[16,8], index: 8, kind: input, shape index: {}]
  %s9 = inlined_call_operand.vmem [shape: f32[16,1], index: 9, kind: input, shape index: {}]
  %s10 = inlined_call_operand.hbm [shape: f32[64,16], index: 10, kind: input, shape index: {}]
  %s11 = inlined_call_operand.vmem [shape: f32[32,16], index: 11, kind: input, shape index: {}]
  %s12 = inlined_call_operand.vmem [shape: f32[32,1], index: 12, kind: input, shape index: {}]
  %s13 = inlined_call_operand.vmem [shape: f32[16,4], index: 13, kind: input, shape index: {}]
  %s14 = inlined_call_operand.vmem [shape: f32[1,5], index: 14, kind: output, shape index: {}]
  %s15 = sld [smem:[#allocation0]]
  $region101: #{inpainting_loss_forward.1} parent=0
    _
  %s17 = ssub.s32 1, %s15
  %s18 = scalar_select 0, %s17, %s15
  $region1: #{inpainting_loss_forward.1} parent=0
    #allocation3 [shape = 'u8[32768]{0}', space=vmem, size = 0x8000, scoped, tag = 'input window, operand 10, single buffered']
    #allocation4 [shape = 's32[2]{0}', space=sflag, size = 0x8, scoped, tag = 'scoped memory for inpainting_loss_forward.1']
    #allocation5 [shape = 's32[2]{0}', space=sflag, size = 0x8, scoped, tag = 'scoped memory for inpainting_loss_forward.1']
    #allocation6 [shape = 'u8[512]{0}', space=smem, size = 0x200, scoped, tag = 'output window, operand 0, single buffered']
    %19 = vsyncpa [#allocation4], 0
    %20 = vsyncpa [#allocation5], 0
    loop: start=0, step=1, limit=4
    $region2: #{inpainting_loss_forward.1} parent=1 // loop_pre_header
      _
    $region3: #{inpainting_loss_forward.1} parent=1 // loop_header
      %s22 = sphi 0, %s26
      %p23 = scmp.ge.s32.totalorder %s22, 4
      %s32 = sphi 0, %s34
      %s35 = sphi 0, %s32
      %s36 = sphi 0, %s35
      %s52 = sphi 0, %s36
      %s58 = sphi 0, %s60
      %s61 = sphi 0, %s58
      %s62 = sphi 0, %s61
      %s78 = sphi 0, %s62
      %s84 = sphi 0, %s86
      %s87 = sphi 0, %s84
      %s88 = sphi 0, %s87
      %s104 = sphi 0, %s88
      %s110 = sphi 0, %s112
      %s113 = sphi 0, %s110
      %s114 = sphi 0, %s113
      %s130 = sphi 0, %s114
      %s134 = sphi 0, %s134
      %s136 = sphi 0, %s134
      %s137 = sphi 0, %s136
      %s151 = sphi 0, %s137
      %s155 = sphi 0, %s155
      %s157 = sphi 0, %s155
      %s158 = sphi 0, %s157
      %s172 = sphi 0, %s158
      %s176 = sphi 0, %s176
      %s178 = sphi 0, %s176
      %s179 = sphi 0, %s178
      %s193 = sphi 0, %s179
      %s197 = sphi 0, %s197
      %s199 = sphi 0, %s197
      %s200 = sphi 0, %s199
      %s214 = sphi 0, %s200
      %s218 = sphi 0, %s218
      %s220 = sphi 0, %s218
      %s221 = sphi 0, %s220
      %s235 = sphi 0, %s221
      %s239 = sphi 0, %s239
      %s241 = sphi 0, %s239
      %s242 = sphi 0, %s241
      %s256 = sphi 0, %s242
      %s260 = sphi 0, %s260
      %s262 = sphi 0, %s260
      %s263 = sphi 0, %s262
      %s277 = sphi 0, %s263
      %s281 = sphi 0, %s281
      %s283 = sphi 0, %s281
      %s284 = sphi 0, %s283
      %s298 = sphi 0, %s284
      %s302 = sphi 0, %s302
      %s304 = sphi 0, %s302
      %s305 = sphi 0, %s304
      %s319 = sphi 0, %s305
      %s323 = sphi 0, %s323
      %s325 = sphi 0, %s323
      %s326 = sphi 0, %s325
      %s340 = sphi 0, %s326
      %s344 = sphi 0, %s344
      %s346 = sphi 0, %s344
      %s347 = sphi 0, %s346
      %s361 = sphi 0, %s347
    $region4: #{inpainting_loss_forward.1} parent=1 // loop_header_branch
      %25 = sbr.rel (%p23) target = $region8
    $region5: #{inpainting_loss_forward.1} parent=1 // loop_body
      %s27 = ssub.s32 %s22, 1
      %s28 = ssub.s32 %s22, 2
      %s29 = sadd.s32 %s22, 1
      %s30 = ssub.s32 %s22, %s29
      %p31 = scmp.eq.s32.totalorder %s30, 0
      %s33 = sadd.s32 %s32, 1
      %s34 = scalar_select %p31, %s32, %s33
      %p37 = pneg %p31
      %p38 = scmp.eq.s32.totalorder %s22, 1
      %p39 = por %p37, %p38
      %p40 = scmp.ne.s32.totalorder %s32, %s35
      %p41 = scmp.eq.s32.totalorder %s22, 0
      %p42 = por %p40, %p41
      %p43 = scmp.ne.s32.totalorder %s32, %s35
      %p44 = scmp.eq.s32.totalorder %s27, 1
      %p45 = por %p43, %p44
      %p46 = scmp.ne.s32.totalorder %s35, %s36
      %p47 = scmp.eq.s32.totalorder %s27, 0
      %p48 = por %p46, %p47
      %p49 = scmp.ne.s32.totalorder %s35, %s36
      %p50 = scmp.eq.s32.totalorder %s28, 1
      %p51 = por %p49, %p50
      %p53 = scmp.ne.s32.totalorder %s36, %s52
      %p54 = scmp.eq.s32.totalorder %s28, 0
      %p55 = por %p53, %p54
      %s56 = ssub.s32 %s22, %s29
      %p57 = scmp.eq.s32.totalorder %s56, 0
      %s59 = sadd.s32 %s58, 1
      %s60 = scalar_select %p57, %s58, %s59
      %p63 = pneg %p57
      %p64 = scmp.eq.s32.totalorder %s22, 1
      %p65 = por %p63, %p64
      %p66 = scmp.ne.s32.totalorder %s58, %s61
      %p67 = scmp.eq.s32.totalorder %s22, 0
      %p68 = por %p66, %p67
      %p69 = scmp.ne.s32.totalorder %s58, %s61
      %p70 = scmp.eq.s32.totalorder %s27, 1
      %p71 = por %p69, %p70
      %p72 = scmp.ne.s32.totalorder %s61, %s62
      %p73 = scmp.eq.s32.totalorder %s27, 0
      %p74 = por %p72, %p73
      %p75 = scmp.ne.s32.totalorder %s61, %s62
      %p76 = scmp.eq.s32.totalorder %s28, 1
      %p77 = por %p75, %p76
      %p79 = scmp.ne.s32.totalorder %s62, %s78
      %p80 = scmp.eq.s32.totalorder %s28, 0
      %p81 = por %p79, %p80
      %s82 = ssub.s32 %s22, %s29
      %p83 = scmp.eq.s32.totalorder %s82, 0
      %s85 = sadd.s32 %s84, 1
      %s86 = scalar_select %p83, %s84, %s85
      %p89 = pneg %p83
      %p90 = scmp.eq.s32.totalorder %s22, 1
      %p91 = por %p89, %p90
      %p92 = scmp.ne.s32.totalorder %s84, %s87
      %p93 = scmp.eq.s32.totalorder %s22, 0
      %p94 = por %p92, %p93
      %p95 = scmp.ne.s32.totalorder %s84, %s87
      %p96 = scmp.eq.s32.totalorder %s27, 1
      %p97 = por %p95, %p96
      %p98 = scmp.ne.s32.totalorder %s87, %s88
      %p99 = scmp.eq.s32.totalorder %s27, 0
      %p100 = por %p98, %p99
      %p101 = scmp.ne.s32.totalorder %s87, %s88
      %p102 = scmp.eq.s32.totalorder %s28, 1
      %p103 = por %p101, %p102
      %p105 = scmp.ne.s32.totalorder %s88, %s104
      %p106 = scmp.eq.s32.totalorder %s28, 0
      %p107 = por %p105, %p106
      %s108 = ssub.s32 %s22, %s29
      %p109 = scmp.eq.s32.totalorder %s108, 0
      %s111 = sadd.s32 %s110, 1
      %s112 = scalar_select %p109, %s110, %s111
      %p115 = pneg %p109
      %p116 = scmp.eq.s32.totalorder %s22, 1
      %p117 = por %p115, %p116
      %p118 = scmp.ne.s32.totalorder %s110, %s113
      %p119 = scmp.eq.s32.totalorder %s22, 0
      %p120 = por %p118, %p119
      %p121 = scmp.ne.s32.totalorder %s110, %s113
      %p122 = scmp.eq.s32.totalorder %s27, 1
      %p123 = por %p121, %p122
      %p124 = scmp.ne.s32.totalorder %s113, %s114
      %p125 = scmp.eq.s32.totalorder %s27, 0
      %p126 = por %p124, %p125
      %p127 = scmp.ne.s32.totalorder %s113, %s114
      %p128 = scmp.eq.s32.totalorder %s28, 1
      %p129 = por %p127, %p128
      %p131 = scmp.ne.s32.totalorder %s114, %s130
      %p132 = scmp.eq.s32.totalorder %s28, 0
      %p133 = por %p131, %p132
      %s135 = sadd.s32 %s134, 1
      %p138 = scmp.eq.s32.totalorder %s22, 1
      %p139 = scmp.ne.s32.totalorder %s134, %s136
      %p140 = scmp.eq.s32.totalorder %s22, 0
      %p141 = por %p139, %p140
      %p142 = scmp.ne.s32.totalorder %s134, %s136
      %p143 = scmp.eq.s32.totalorder %s27, 1
      %p144 = por %p142, %p143
      %p145 = scmp.ne.s32.totalorder %s136, %s137
      %p146 = scmp.eq.s32.totalorder %s27, 0
      %p147 = por %p145, %p146
      %p148 = scmp.ne.s32.totalorder %s136, %s137
      %p149 = scmp.eq.s32.totalorder %s28, 1
      %p150 = por %p148, %p149
      %p152 = scmp.ne.s32.totalorder %s137, %s151
      %p153 = scmp.eq.s32.totalorder %s28, 0
      %p154 = por %p152, %p153
      %s156 = sadd.s32 %s155, 1
      %p159 = scmp.eq.s32.totalorder %s22, 1
      %p160 = scmp.ne.s32.totalorder %s155, %s157
      %p161 = scmp.eq.s32.totalorder %s22, 0
      %p162 = por %p160, %p161
      %p163 = scmp.ne.s32.totalorder %s155, %s157
      %p164 = scmp.eq.s32.totalorder %s27, 1
      %p165 = por %p163, %p164
      %p166 = scmp.ne.s32.totalorder %s157, %s158
      %p167 = scmp.eq.s32.totalorder %s27, 0
      %p168 = por %p166, %p167
      %p169 = scmp.ne.s32.totalorder %s157, %s158
      %p170 = scmp.eq.s32.totalorder %s28, 1
      %p171 = por %p169, %p170
      %p173 = scmp.ne.s32.totalorder %s158, %s172
      %p174 = scmp.eq.s32.totalorder %s28, 0
      %p175 = por %p173, %p174
      %s177 = sadd.s32 %s176, 1
      %p180 = scmp.eq.s32.totalorder %s22, 1
      %p181 = scmp.ne.s32.totalorder %s176, %s178
      %p182 = scmp.eq.s32.totalorder %s22, 0
      %p183 = por %p181, %p182
      %p184 = scmp.ne.s32.totalorder %s176, %s178
      %p185 = scmp.eq.s32.totalorder %s27, 1
      %p186 = por %p184, %p185
      %p187 = scmp.ne.s32.totalorder %s178, %s179
      %p188 = scmp.eq.s32.totalorder %s27, 0
      %p189 = por %p187, %p188
      %p190 = scmp.ne.s32.totalorder %s178, %s179
      %p191 = scmp.eq.s32.totalorder %s28, 1
      %p192 = por %p190, %p191
      %p194 = scmp.ne.s32.totalorder %s179, %s193
      %p195 = scmp.eq.s32.totalorder %s28, 0
      %p196 = por %p194, %p195
      %s198 = sadd.s32 %s197, 1
      %p201 = scmp.eq.s32.totalorder %s22, 1
      %p202 = scmp.ne.s32.totalorder %s197, %s199
      %p203 = scmp.eq.s32.totalorder %s22, 0
      %p204 = por %p202, %p203
      %p205 = scmp.ne.s32.totalorder %s197, %s199
      %p206 = scmp.eq.s32.totalorder %s27, 1
      %p207 = por %p205, %p206
      %p208 = scmp.ne.s32.totalorder %s199, %s200
      %p209 = scmp.eq.s32.totalorder %s27, 0
      %p210 = por %p208, %p209
      %p211 = scmp.ne.s32.totalorder %s199, %s200
      %p212 = scmp.eq.s32.totalorder %s28, 1
      %p213 = por %p211, %p212
      %p215 = scmp.ne.s32.totalorder %s200, %s214
      %p216 = scmp.eq.s32.totalorder %s28, 0
      %p217 = por %p215, %p216
      %s219 = sadd.s32 %s218, 1
      %p222 = scmp.eq.s32.totalorder %s22, 1
      %p223 = scmp.ne.s32.totalorder %s218, %s220
      %p224 = scmp.eq.s32.totalorder %s22, 0
      %p225 = por %p223, %p224
      %p226 = scmp.ne.s32.totalorder %s218, %s220
      %p227 = scmp.eq.s32.totalorder %s27, 1
      %p228 = por %p226, %p227
      %p229 = scmp.ne.s32.totalorder %s220, %s221
      %p230 = scmp.eq.s32.totalorder %s27, 0
      %p231 = por %p229, %p230
      %p232 = scmp.ne.s32.totalorder %s220, %s221
      %p233 = scmp.eq.s32.totalorder %s28, 1
      %p234 = por %p232, %p233
      %p236 = scmp.ne.s32.totalorder %s221, %s235
      %p237 = scmp.eq.s32.totalorder %s28, 0
      %p238 = por %p236, %p237
      %s240 = sadd.s32 %s239, 1
      %p243 = scmp.eq.s32.totalorder %s22, 1
      %p244 = scmp.ne.s32.totalorder %s239, %s241
      %p245 = scmp.eq.s32.totalorder %s22, 0
      %p246 = por %p244, %p245
      %p247 = scmp.ne.s32.totalorder %s239, %s241
      %p248 = scmp.eq.s32.totalorder %s27, 1
      %p249 = por %p247, %p248
      %p250 = scmp.ne.s32.totalorder %s241, %s242
      %p251 = scmp.eq.s32.totalorder %s27, 0
      %p252 = por %p250, %p251
      %p253 = scmp.ne.s32.totalorder %s241, %s242
      %p254 = scmp.eq.s32.totalorder %s28, 1
      %p255 = por %p253, %p254
      %p257 = scmp.ne.s32.totalorder %s242, %s256
      %p258 = scmp.eq.s32.totalorder %s28, 0
      %p259 = por %p257, %p258
      %s261 = sadd.s32 %s260, 1
      %p264 = scmp.eq.s32.totalorder %s22, 1
      %p265 = scmp.ne.s32.totalorder %s260, %s262
      %p266 = scmp.eq.s32.totalorder %s22, 0
      %p267 = por %p265, %p266
      %p268 = scmp.ne.s32.totalorder %s260, %s262
      %p269 = scmp.eq.s32.totalorder %s27, 1
      %p270 = por %p268, %p269
      %p271 = scmp.ne.s32.totalorder %s262, %s263
      %p272 = scmp.eq.s32.totalorder %s27, 0
      %p273 = por %p271, %p272
      %p274 = scmp.ne.s32.totalorder %s262, %s263
      %p275 = scmp.eq.s32.totalorder %s28, 1
      %p276 = por %p274, %p275
      %p278 = scmp.ne.s32.totalorder %s263, %s277
      %p279 = scmp.eq.s32.totalorder %s28, 0
      %p280 = por %p278, %p279
      %s282 = sadd.s32 %s281, 1
      %p285 = scmp.eq.s32.totalorder %s22, 1
      %p286 = scmp.ne.s32.totalorder %s281, %s283
      %p287 = scmp.eq.s32.totalorder %s22, 0
      %p288 = por %p286, %p287
      %p289 = scmp.ne.s32.totalorder %s281, %s283
      %p290 = scmp.eq.s32.totalorder %s27, 1
      %p291 = por %p289, %p290
      %p292 = scmp.ne.s32.totalorder %s283, %s284
      %p293 = scmp.eq.s32.totalorder %s27, 0
      %p294 = por %p292, %p293
      %p295 = scmp.ne.s32.totalorder %s283, %s284
      %p296 = scmp.eq.s32.totalorder %s28, 1
      %p297 = por %p295, %p296
      %p299 = scmp.ne.s32.totalorder %s284, %s298
      %p300 = scmp.eq.s32.totalorder %s28, 0
      %p301 = por %p299, %p300
      %s303 = sadd.s32 %s302, 1
      %p306 = scmp.eq.s32.totalorder %s22, 1
      %p307 = scmp.ne.s32.totalorder %s302, %s304
      %p308 = scmp.eq.s32.totalorder %s22, 0
      %p309 = por %p307, %p308
      %p310 = scmp.ne.s32.totalorder %s302, %s304
      %p311 = scmp.eq.s32.totalorder %s27, 1
      %p312 = por %p310, %p311
      %p313 = scmp.ne.s32.totalorder %s304, %s305
      %p314 = scmp.eq.s32.totalorder %s27, 0
      %p315 = por %p313, %p314
      %p316 = scmp.ne.s32.totalorder %s304, %s305
      %p317 = scmp.eq.s32.totalorder %s28, 1
      %p318 = por %p316, %p317
      %p320 = scmp.ne.s32.totalorder %s305, %s319
      %p321 = scmp.eq.s32.totalorder %s28, 0
      %p322 = por %p320, %p321
      %s324 = sadd.s32 %s323, 1
      %p327 = scmp.eq.s32.totalorder %s22, 1
      %p328 = scmp.ne.s32.totalorder %s323, %s325
      %p329 = scmp.eq.s32.totalorder %s22, 0
      %p330 = por %p328, %p329
      %p331 = scmp.ne.s32.totalorder %s323, %s325
      %p332 = scmp.eq.s32.totalorder %s27, 1
      %p333 = por %p331, %p332
      %p334 = scmp.ne.s32.totalorder %s325, %s326
      %p335 = scmp.eq.s32.totalorder %s27, 0
      %p336 = por %p334, %p335
      %p337 = scmp.ne.s32.totalorder %s325, %s326
      %p338 = scmp.eq.s32.totalorder %s28, 1
      %p339 = por %p337, %p338
      %p341 = scmp.ne.s32.totalorder %s326, %s340
      %p342 = scmp.eq.s32.totalorder %s28, 0
      %p343 = por %p341, %p342
      %s345 = sadd.s32 %s344, 1
      %p348 = scmp.eq.s32.totalorder %s22, 1
      %p349 = scmp.ne.s32.totalorder %s344, %s346
      %p350 = scmp.eq.s32.totalorder %s22, 0
      %p351 = por %p349, %p350
      %p352 = scmp.ne.s32.totalorder %s344, %s346
      %p353 = scmp.eq.s32.totalorder %s27, 1
      %p354 = por %p352, %p353
      %p355 = scmp.ne.s32.totalorder %s346, %s347
      %p356 = scmp.eq.s32.totalorder %s27, 0
      %p357 = por %p355, %p356
      %p358 = scmp.ne.s32.totalorder %s346, %s347
      %p359 = scmp.eq.s32.totalorder %s28, 1
      %p360 = por %p358, %p359
      %p362 = scmp.ne.s32.totalorder %s347, %s361
      %p363 = scmp.eq.s32.totalorder %s28, 0
      %p364 = por %p362, %p363
      %p365 = scmp.le.s32.totalorder 1, %s22
      %p366 = scmp.lt.s32.totalorder %s22, 3
      %p367 = pnand %p365, %p366
      %p368 = pneg %p367
      // Predicated region
      $region9: #{inpainting_loss_forward.1} parent=5 // pred_check
        _
      $region10: #{inpainting_loss_forward.1} parent=5 // pred_check_branch
        %370 = sbr.rel (%p367) target = $region12
      $region11: #{inpainting_loss_forward.1} parent=5 // pred_region
        %s371 = ssub.s32 %s22, 1
        // Predicated region
        $region13: #{inpainting_loss_forward.1} parent=11 // pred_check
          %p372 = pneg %p147
        $region14: #{inpainting_loss_forward.1} parent=11 // pred_check_branch
          %374 = sbr.rel (%p372) target = $region16
        $region15: #{inpainting_loss_forward.1} parent=11 // pred_region
          _
        $region16: #{inpainting_loss_forward.1} parent=11 // pred_fallthru
          _
        // Predicated region
        $region17: #{inpainting_loss_forward.1} parent=11 // pred_check
          %p375 = pneg %p168
        $region18: #{inpainting_loss_forward.1} parent=11 // pred_check_branch
          %377 = sbr.rel (%p375) target = $region20
        $region19: #{inpainting_loss_forward.1} parent=11 // pred_region
          _
        $region20: #{inpainting_loss_forward.1} parent=11 // pred_fallthru
          _
        // Predicated region
        $region21: #{inpainting_loss_forward.1} parent=11 // pred_check
          %p378 = pneg %p189
        $region22: #{inpainting_loss_forward.1} parent=11 // pred_check_branch
          %380 = sbr.rel (%p378) target = $region24
        $region23: #{inpainting_loss_forward.1} parent=11 // pred_region
          _
        $region24: #{inpainting_loss_forward.1} parent=11 // pred_fallthru
          _
        // Predicated region
        $region25: #{inpainting_loss_forward.1} parent=11 // pred_check
          %p381 = pneg %p210
        $region26: #{inpainting_loss_forward.1} parent=11 // pred_check_branch
          %383 = sbr.rel (%p381) target = $region28
        $region27: #{inpainting_loss_forward.1} parent=11 // pred_region
          _
        $region28: #{inpainting_loss_forward.1} parent=11 // pred_fallthru
          _
        // Predicated region
        $region29: #{inpainting_loss_forward.1} parent=11 // pred_check
          %p384 = pneg %p231
        $region30: #{inpainting_loss_forward.1} parent=11 // pred_check_branch
          %386 = sbr.rel (%p384) target = $region32
        $region31: #{inpainting_loss_forward.1} parent=11 // pred_region
          _
        $region32: #{inpainting_loss_forward.1} parent=11 // pred_fallthru
          _
        // Predicated region
        $region33: #{inpainting_loss_forward.1} parent=11 // pred_check
          %p387 = pneg %p252
        $region34: #{inpainting_loss_forward.1} parent=11 // pred_check_branch
          %389 = sbr.rel (%p387) target = $region36
        $region35: #{inpainting_loss_forward.1} parent=11 // pred_region
          _
        $region36: #{inpainting_loss_forward.1} parent=11 // pred_fallthru
          _
        // Predicated region
        $region37: #{inpainting_loss_forward.1} parent=11 // pred_check
          %p390 = pneg %p273
        $region38: #{inpainting_loss_forward.1} parent=11 // pred_check_branch
          %392 = sbr.rel (%p390) target = $region40
        $region39: #{inpainting_loss_forward.1} parent=11 // pred_region
          %s394 = ssub.s32 1024, 1024
          %395 = vsyncadd [#allocation4], %s394
          %s396 = sshll.u32 [#allocation3], 4
          %s397 = int_to_ptr.vmem [resolvable:$true] %s396
          %402 = dma.hbm_to_vmem [thread:$0]  %s10, 1024, %s397, [#allocation4], 128, 128, 8
        $region40: #{inpainting_loss_forward.1} parent=11 // pred_fallthru
          _
        // Predicated region
        $region41: #{inpainting_loss_forward.1} parent=11 // pred_check
          %p403 = pneg %p294
        $region42: #{inpainting_loss_forward.1} parent=11 // pred_check_branch
          %405 = sbr.rel (%p403) target = $region44
        $region43: #{inpainting_loss_forward.1} parent=11 // pred_region
          _
        $region44: #{inpainting_loss_forward.1} parent=11 // pred_fallthru
          _
        // Predicated region
        $region45: #{inpainting_loss_forward.1} parent=11 // pred_check
          %p406 = pneg %p315
        $region46: #{inpainting_loss_forward.1} parent=11 // pred_check_branch
          %408 = sbr.rel (%p406) target = $region48
        $region47: #{inpainting_loss_forward.1} parent=11 // pred_region
          _
        $region48: #{inpainting_loss_forward.1} parent=11 // pred_fallthru
          _
        // Predicated region
        $region49: #{inpainting_loss_forward.1} parent=11 // pred_check
          %p409 = pneg %p336
        $region50: #{inpainting_loss_forward.1} parent=11 // pred_check_branch
          %411 = sbr.rel (%p409) target = $region52
        $region51: #{inpainting_loss_forward.1} parent=11 // pred_region
          _
        $region52: #{inpainting_loss_forward.1} parent=11 // pred_fallthru
          _
      $region12: #{inpainting_loss_forward.1} parent=5 // pred_fallthru
        _
      %p412 = scmp.lt.s32.totalorder %s22, 2
      // Predicated region
      $region53: #{inpainting_loss_forward.1} parent=5 // pred_check
        %p413 = pneg %p412
      $region54: #{inpainting_loss_forward.1} parent=5 // pred_check_branch
        %415 = sbr.rel (%p413) target = $region56
      $region55: #{inpainting_loss_forward.1} parent=5 // pred_region
        // Predicated region
        $region57: #{inpainting_loss_forward.1} parent=55 // pred_check
          %p416 = pneg %p42
        $region58: #{inpainting_loss_forward.1} parent=55 // pred_check_branch
          %418 = sbr.rel (%p416) target = $region60
        $region59: #{inpainting_loss_forward.1} parent=55 // pred_region
          %p419 = scmp.lt.s32.totalorder %s22, 1
          %s420 = scalar_select %p419, %s22, 1
          %s421 = smul.addr %s420, 2
          %s422 = smul.addr %s421, 4
          %s423 = scalar_lea.vmem %s0, %s422
        $region60: #{inpainting_loss_forward.1} parent=55 // pred_fallthru
          _
        // Predicated region
        $region61: #{inpainting_loss_forward.1} parent=55 // pred_check
          %p424 = pneg %p68
        $region62: #{inpainting_loss_forward.1} parent=55 // pred_check_branch
          %426 = sbr.rel (%p424) target = $region64
        $region63: #{inpainting_loss_forward.1} parent=55 // pred_region
          %p427 = scmp.lt.s32.totalorder %s22, 1
          %s428 = scalar_select %p427, %s22, 1
          %s429 = smul.addr %s428, 2
          %s430 = smul.addr %s429, 4
          %s431 = scalar_lea.vmem %s1, %s430
        $region64: #{inpainting_loss_forward.1} parent=55 // pred_fallthru
          _
        // Predicated region
        $region65: #{inpainting_loss_forward.1} parent=55 // pred_check
          %p432 = pneg %p94
        $region66: #{inpainting_loss_forward.1} parent=55 // pred_check_branch
          %434 = sbr.rel (%p432) target = $region68
        $region67: #{inpainting_loss_forward.1} parent=55 // pred_region
          %p435 = scmp.lt.s32.totalorder %s22, 1
          %s436 = scalar_select %p435, %s22, 1
          %s437 = smul.addr %s436, 2
          %s438 = smul.addr %s437, 4
          %s439 = scalar_lea.vmem %s2, %s438
        $region68: #{inpainting_loss_forward.1} parent=55 // pred_fallthru
          _
        // Predicated region
        $region69: #{inpainting_loss_forward.1} parent=55 // pred_check
          %p440 = pneg %p120
        $region70: #{inpainting_loss_forward.1} parent=55 // pred_check_branch
          %442 = sbr.rel (%p440) target = $region72
        $region71: #{inpainting_loss_forward.1} parent=55 // pred_region
          %p443 = scmp.lt.s32.totalorder %s22, 1
          %s444 = scalar_select %p443, %s22, 1
          %s445 = smul.addr %s444, 2
          %s446 = smul.addr %s445, 4
          %s447 = scalar_lea.vmem %s3, %s446
        $region72: #{inpainting_loss_forward.1} parent=55 // pred_fallthru
          _
      $region56: #{inpainting_loss_forward.1} parent=5 // pred_fallthru
        _
      %p448 = scmp.le.s32.totalorder 1, %s22
      %p449 = scmp.lt.s32.totalorder %s22, 3
      %p450 = pnand %p448, %p449
      %p451 = pneg %p450
      // Predicated region
      $region73: #{inpainting_loss_forward.1} parent=5 // pred_check
        _
      $region74: #{inpainting_loss_forward.1} parent=5 // pred_check_branch
        %453 = sbr.rel (%p450) target = $region76
      $region75: #{inpainting_loss_forward.1} parent=5 // pred_region
        %s454 = ssub.s32 %s22, 1
        // Predicated region
        $region77: #{inpainting_loss_forward.1} parent=75 // pred_check
          %p455 = pneg %p273
        $region78: #{inpainting_loss_forward.1} parent=75 // pred_check_branch
          %457 = sbr.rel (%p455) target = $region80
        $region79: #{inpainting_loss_forward.1} parent=75 // pred_region
          %458 = dma.done [#allocation4], 1024
        $region80: #{inpainting_loss_forward.1} parent=75 // pred_fallthru
          _
        %p459 = scmp.lt.s32.totalorder %s27, 1
        %s460 = scalar_select %p459, %s27, 1
        %s461 = smul.addr %s460, 2
        %s462 = smul.addr %s461, 4
        %s463 = scalar_lea.vmem %s0, %s462
        %p464 = pneg %p48
        %p465 = pneg %p45
        %p466 = scmp.lt.s32.totalorder %s27, 1
        %s467 = scalar_select %p466, %s27, 1
        %s468 = smul.addr %s467, 2
        %s469 = smul.addr %s468, 4
        %s470 = scalar_lea.vmem %s1, %s469
        %p471 = pneg %p74
        %p472 = pneg %p71
        %p473 = scmp.lt.s32.totalorder %s27, 1
        %s474 = scalar_select %p473, %s27, 1
        %s475 = smul.addr %s474, 2
        %s476 = smul.addr %s475, 4
        %s477 = scalar_lea.vmem %s2, %s476
        %p478 = pneg %p100
        %p479 = pneg %p97
        %p480 = scmp.lt.s32.totalorder %s27, 1
        %s481 = scalar_select %p480, %s27, 1
        %s482 = smul.addr %s481, 2
        %s483 = smul.addr %s482, 4
        %s484 = scalar_lea.vmem %s3, %s483
        %p485 = pneg %p126
        %p486 = pneg %p123
        %p487 = pneg %p147
        %p488 = pneg %p144
        %p489 = pneg %p168
        %p490 = pneg %p165
        %p491 = pneg %p189
        %p492 = pneg %p186
        %p493 = pneg %p210
        %p494 = pneg %p207
        %p495 = pneg %p231
        %p496 = pneg %p228
        %p497 = pneg %p252
        %p498 = pneg %p249
        %p499 = pneg %p273
        %p500 = pneg %p270
        %p501 = pneg %p294
        %p502 = pneg %p291
        %p503 = pneg %p315
        %p504 = pneg %p312
        %p505 = pneg %p336
        %p506 = pneg %p333
        %p507 = pneg %p357
        %p508 = pneg %p354
        %p509 = scmp.lt.s32.totalorder %s27, 1
        %s510 = scalar_select %p509, %s27, 1
        %s511 = smul.addr %s510, 2
        %s512 = smul.addr %s511, 4
        %s513 = scalar_lea.vmem %s0, %s512
        %p514 = scmp.lt.s32.totalorder %s27, 1
        %s515 = scalar_select %p514, %s27, 1
        %s516 = smul.addr %s515, 2
        %s517 = smul.addr %s516, 4
        %s518 = scalar_lea.vmem %s1, %s517
        %p519 = scmp.lt.s32.totalorder %s27, 1
        %s520 = scalar_select %p519, %s27, 1
        %s521 = smul.addr %s520, 2
        %s522 = smul.addr %s521, 4
        %s523 = scalar_lea.vmem %s2, %s522
        %p524 = scmp.lt.s32.totalorder %s27, 1
        %s525 = scalar_select %p524, %s27, 1
        %s526 = smul.addr %s525, 2
        %s527 = smul.addr %s526, 4
        %s528 = scalar_lea.vmem %s3, %s527
        %p529 = scmp.eq.s32.totalorder %s27, 0
        // Predicated region
        $region81: #{inpainting_loss_forward.1} parent=75 // pred_check
          %p530 = pneg %p529
        $region82: #{inpainting_loss_forward.1} parent=75 // pred_check_branch
          %532 = sbr.rel (%p530) target = $region84
        $region83: #{inpainting_loss_forward.1} parent=75 // pred_region
          %s533 = scalar_lea.smem [#allocation2], 0
          %534 = sst [smem:[%s533]] 0.0
          %s535 = scalar_lea.smem [#allocation2], 1
          %536 = sst [smem:[%s535]] 0.0
          %s537 = scalar_lea.smem [#allocation2], 2
          %538 = sst [smem:[%s537]] 0.0
          %s539 = scalar_lea.smem [#allocation2], 3
          %540 = sst [smem:[%s539]] 0.0
          %s541 = scalar_lea.smem [#allocation2], 4
          %542 = sst [smem:[%s541]] 0.0
        $region84: #{inpainting_loss_forward.1} parent=75 // pred_fallthru
          _
        %v543 = vld [vmem:[%s513] sm:$0x77]
        %v544 = vld [vmem:[%s518] sm:$0x77]
        %v545 = vld [vmem:[%s523] sm:$0x77]
        %v546 = vld [vmem:[%s528] sm:$0x77]
        %v547 = vld [vmem:[%s4] sm:$0x3]
        %v548 = vmul.f32 %v544, %v543
        %v549 = vsub.f32 1.0, %v544
        %v550 = vmul.f32 %v549, %v545
        %v551 = vadd.f32 %v548, %v550
        %v552 = vmul.f32 %v549, %v546
        %v553 = vsub.f32 %v550, %v552
        %v554 = vand.u32 2147483647, %v553
        %v556 = vcombine.high %v554, %v554
        %vm558 = vcmask 1042432
        %v559 = vsel %vm558, %v554, 0.0
        %v560 = vsel %vm558, %v556, 0.0
        %v561 = vadd.f32 %v559, %v560
        %562 = vadd.xlane.f32.xlu0 %v561
        %v563 = vpop.xlane.xlu0 %562
        %v564 = vrot.slane %v563, 4
        %v565 = vadd.f32 %v563, %v564
        %v566 = vrot.slane %v565, 2
        %v567 = vadd.f32 %v565, %v566
        %v568 = vrot.slane %v567, 1
        %v569 = vadd.f32 %v567, %v568
        %s570 = vtos %v569
        %s571 = smul.f32 %s570, 0.0006510417
        %v572 = vmul.f32 %v544, %v545
        %v573 = vmul.f32 %v544, %v546
        %v574 = vsub.f32 %v572, %v573
        %v575 = vand.u32 2147483647, %v574
        %v577 = vcombine.high %v575, %v575
        %v579 = vsel %vm558, %v575, 0.0
        %v580 = vsel %vm558, %v577, 0.0
        %v581 = vadd.f32 %v579, %v580
        %582 = vadd.xlane.f32.xlu0 %v581
        %v583 = vpop.xlane.xlu0 %582
        %v584 = vrot.slane %v583, 4
        %v585 = vadd.f32 %v583, %v584
        %v586 = vrot.slane %v585, 2
        %v587 = vadd.f32 %v585, %v586
        %v588 = vrot.slane %v587, 1
        %v589 = vadd.f32 %v587, %v588
        %s590 = vtos %v589
        %s591 = smul.f32 %s590, 0.0006510417
        %593 = vrot.lane.b32.xlu0 %v551, 127
        %v594 = vpop.permute.xlu0 %593
        %v595 = vrot.slane %v594, 4
        %vm596 = vcmask 1039360
        %v597 = vsel %vm596, %v594, %v595
        %v599 = vsub.f32 %v551, %v597
        %v600 = vand.u32 2147483647, %v599
        %v602 = vlaneseq
        %v603 = vshrl.u32 %v602, 7
        %v604 = vsub.s32 0, %v603
        %v605 = vrot.slane %v547, %v604
        %v606 = vlaneseq
        %v607 = vshrl.u32 %v606, 7
        %v608 = vsub.s32 1, %v607
        %v609 = vrot.slane %v547, %v608
        %v610 = vcombine.low %v605, %v609
        %v612 = vmul.f32 %v600, %v610
        %v614 = vcombine.high %v612, %v612
        %v616 = vsel %vm558, %v612, 0.0
        %vm617 = vcmask 1034240
        %v618 = vsel %vm617, %v614, 0.0
        %v619 = vadd.f32 %v616, %v618
        %620 = vadd.xlane.f32.xlu0 %v619
        %v621 = vpop.xlane.xlu0 %620
        %v622 = vrot.slane %v621, 4
        %v623 = vadd.f32 %v621, %v622
        %v624 = vrot.slane %v623, 2
        %v625 = vadd.f32 %v623, %v624
        %v626 = vrot.slane %v625, 1
        %v627 = vadd.f32 %v625, %v626
        %s628 = vtos %v627
        %629 = vrot.lane.b32.xlu0 %v551, 112
        %v630 = vpop.permute.xlu0 %629
        %v631 = vrot.slane %v630, 4
        %vm632 = vcmask 916480
        %v633 = vsel %vm632, %v630, %v631
        %v635 = vsub.f32 %v551, %v633
        %v636 = vand.u32 2147483647, %v635
        %v638 = vcombine.high %v636, %v636
        %v640 = vsel %vm558, %v636, 0.0
        %vm641 = vcmask 911360
        %v642 = vsel %vm641, %v638, 0.0
        %v643 = vadd.f32 %v640, %v642
        %644 = vadd.xlane.f32.xlu0 %v643
        %v645 = vpop.xlane.xlu0 %644
        %v646 = vrot.slane %v645, 4
        %v647 = vadd.f32 %v645, %v646
        %v648 = vrot.slane %v647, 2
        %v649 = vadd.f32 %v647, %v648
        %v650 = vrot.slane %v649, 1
        %v651 = vadd.f32 %v649, %v650
        %s652 = vtos %v651
        %v653 = vrcp.pop 1440.0
        %s654 = vtos %v653
        %s655 = smul.f32 %s628, %s654
        %v656 = vrcp.pop 1440.0
        %s657 = vtos %v656
        %s658 = smul.f32 %s652, %s657
        %s659 = sadd.f32 %s655, %s658
        %v660 = vld [vmem:[%s5] sm:$0xff]
        %v661 = vld [vmem:[%s6] sm:$0xff]
        %v662 = vld [vmem:[%s7] sm:$0xff]
        %v663 = vld [vmem:[%s7 + $0x8] sm:$0xff]
        %v664 = vld [vmem:[%s7 + $0x10] sm:$0xff]
        %v665 = vld [vmem:[%s7 + $0x18] sm:$0xff]
        %v666 = vld [vmem:[%s7 + $0x20] sm:$0xff]
        %v667 = vld [vmem:[%s7 + $0x28] sm:$0xff]
        %v668 = vld [vmem:[%s7 + $0x30] sm:$0xff]
        %v669 = vld [vmem:[%s7 + $0x38] sm:$0xff]
        %v670 = vld [vmem:[%s7 + $0x40] sm:$0xff]
        %v671 = vld [vmem:[%s7 + $0x48] sm:$0xff]
        %v672 = vld [vmem:[%s7 + $0x50] sm:$0xff]
        %v673 = vld [vmem:[%s7 + $0x58] sm:$0xff]
        %v674 = vld [vmem:[%s7 + $0x60] sm:$0xff]
        %v675 = vld [vmem:[%s7 + $0x68] sm:$0xff]
        %v676 = vld [vmem:[%s7 + $0x70] sm:$0xff]
        %v677 = vld [vmem:[%s7 + $0x78] sm:$0xff]
        %v678 = vld [vmem:[%s7 + $0x80] sm:$0xff]
        %v679 = vld [vmem:[%s7 + $0x88] sm:$0xff]
        %v680 = vld [vmem:[%s7 + $0x90] sm:$0xff]
        %v681 = vld [vmem:[%s7 + $0x98] sm:$0xff]
        %v682 = vld [vmem:[%s7 + $0xa0] sm:$0xff]
        %v683 = vld [vmem:[%s7 + $0xa8] sm:$0xff]
        %v684 = vld [vmem:[%s7 + $0xb0] sm:$0xff]
        %v685 = vld [vmem:[%s7 + $0xb8] sm:$0xff]
        %v686 = vld [vmem:[%s7 + $0xc0] sm:$0xff]
        %v687 = vld [vmem:[%s7 + $0xc8] sm:$0xff]
        %v688 = vld [vmem:[%s7 + $0xd0] sm:$0xff]
        %v689 = vld [vmem:[%s7 + $0xd8] sm:$0xff]
        %v690 = vld [vmem:[%s7 + $0xe0] sm:$0xff]
        %v691 = vld [vmem:[%s7 + $0xe8] sm:$0xff]
        %v692 = vld [vmem:[%s7 + $0xf0] sm:$0xff]
        %v693 = vld [vmem:[%s7 + $0xf8] sm:$0xff]
        %695 = vset.pattern.permute.xlu0 0
        %696 = vperm.xlu0 %695, %v661
        %v697 = vpop.permute.xlu0 %696
        %v699 = vcombine.high %v551, %v551
        %vm700 = vcmask 23552
        %v702 = vsel %vm700, %v660, 0
        %v704 = vsel %vm558, %v551, 0
        %v706 = vsel %vm558, %v699, 0
        %708 = vmatprep.subr.mxu0 0.0
        %709 = vmatpush1.msra.mxu0 0.0
        %710 = vmatprep.subr.mxu0 0.0
        %711 = vmatpush1.msra.mxu0 0.0
        %712 = vmatprep.subr.mxu0 0.0
        %713 = vmatpush1.msra.mxu0 0.0
        %714 = vmatprep.subr.mxu0 0.0
        %715 = vmatpush1.msra.mxu0 0.0
        %716 = vmatprep.subr.mxu0 0.0
        %717 = vmatpush1.msra.mxu0 0.0
        %718 = vmatprep.subr.mxu0 0.0
        %719 = vmatpush1.msra.mxu0 0.0
        %720 = vmatprep.subr.mxu0 0.0
        %721 = vmatpush1.msra.mxu0 0.0
        %722 = vmatprep.subr.mxu0 0.0
        %723 = vmatpush1.msra.mxu0 0.0
        %724 = vmatprep.subr.mxu0 0.0
        %725 = vmatpush1.msra.mxu0 0.0
        %726 = vmatprep.subr.mxu0 0.0
        %727 = vmatpush1.msra.mxu0 0.0
        %728 = vmatprep.subr.mxu0 0.0
        %729 = vmatpush1.msra.mxu0 0.0
        %730 = vmatprep.subr.mxu0 0.0
        %731 = vmatpush1.msra.mxu0 0.0
        %732 = vmatprep.subr.mxu0 0.0
        %733 = vmatpush1.msra.mxu0 0.0
        %734 = vmatprep.subr.mxu0 0.0
        %735 = vmatpush1.msra.mxu0 0.0
        %736 = vmatprep.subr.mxu0 0.0
        %737 = vmatpush1.msra.mxu0 0.0
        %738 = vmatprep.subr.mxu0 %v706
        %739 = vmatpush1.msra.mxu0 %v704
        %740 = vmatprep.subr.mxu0 0.0
        %741 = vmatpush2.msra.mxu0 0.0
        %742 = vmatprep.subr.mxu0 0.0
        %743 = vmatpush2.msra.mxu0 0.0
        %744 = vmatprep.subr.mxu0 0.0
        %745 = vmatpush2.msra.mxu0 0.0
        %746 = vmatprep.subr.mxu0 0.0
        %747 = vmatpush2.msra.mxu0 0.0
        %748 = vmatprep.subr.mxu0 0.0
        %749 = vmatpush2.msra.mxu0 0.0
        %750 = vmatprep.subr.mxu0 0.0
        %751 = vmatpush2.msra.mxu0 0.0
        %752 = vmatprep.subr.mxu0 0.0
        %753 = vmatpush2.msra.mxu0 0.0
        %754 = vmatprep.subr.mxu0 0.0
        %755 = vmatpush2.msra.mxu0 0.0
        %756 = vmatprep.subr.mxu0 0.0
        %757 = vmatpush2.msra.mxu0 0.0
        %758 = vmatprep.subr.mxu0 0.0
        %759 = vmatpush2.msra.mxu0 0.0
        %760 = vmatprep.subr.mxu0 0.0
        %761 = vmatpush2.msra.mxu0 0.0
        %762 = vmatprep.subr.mxu0 0.0
        %763 = vmatpush2.msra.mxu0 0.0
        %764 = vmatprep.subr.mxu0 0.0
        %765 = vmatpush2.msra.mxu0 0.0
        %766 = vmatprep.subr.mxu0 0.0
        %767 = vmatpush2.msra.mxu0 0.0
        %768 = vmatprep.subr.mxu0 0.0
        %769 = vmatpush2.msra.mxu0 0.0
        %770 = vmatprep.subr.mxu0 0.0
        %771 = vmatpush2.msra.mxu0 0.0
        %772 = vmatprep.mubr.f32.mxu0 0.0
        %773 = vmatmul.mubr.f32.gmra.mxu0 %v702
        %v774 = vpop.f32.mrf.mxu0
        %v775 = vadd.f32 %v697, %v774
        %v776 = vpop.f32.mrf.mxu0
        %v777 = vadd.f32 %v697, %v776
        %778 = vdwg.mxu0
        %v779 = vmax.f32 %v775, 0.0
        %v780 = vmax.f32 %v777, 0.0
        %781 = vmatprep.subr.mxu0 0.0
        %782 = vmatpush1.msra.mxu0 %v677
        %783 = vmatprep.subr.mxu0 0.0
        %784 = vmatpush1.msra.mxu0 %v676
        %785 = vmatprep.subr.mxu0 0.0
        %786 = vmatpush1.msra.mxu0 %v675
        %787 = vmatprep.subr.mxu0 0.0
        %788 = vmatpush1.msra.mxu0 %v674
        %789 = vmatprep.subr.mxu0 0.0
        %790 = vmatpush1.msra.mxu0 %v673
        %791 = vmatprep.subr.mxu0 0.0
        %792 = vmatpush1.msra.mxu0 %v672
        %793 = vmatprep.subr.mxu0 0.0
        %794 = vmatpush1.msra.mxu0 %v671
        %795 = vmatprep.subr.mxu0 0.0
        %796 = vmatpush1.msra.mxu0 %v670
        %797 = vmatprep.subr.mxu0 0.0
        %798 = vmatpush1.msra.mxu0 %v669
        %799 = vmatprep.subr.mxu0 0.0
        %800 = vmatpush1.msra.mxu0 %v668
        %801 = vmatprep.subr.mxu0 0.0
        %802 = vmatpush1.msra.mxu0 %v667
        %803 = vmatprep.subr.mxu0 0.0
        %804 = vmatpush1.msra.mxu0 %v666
        %805 = vmatprep.subr.mxu0 0.0
        %806 = vmatpush1.msra.mxu0 %v665
        %807 = vmatprep.subr.mxu0 0.0
        %808 = vmatpush1.msra.mxu0 %v664
        %809 = vmatprep.subr.mxu0 0.0
        %810 = vmatpush1.msra.mxu0 %v663
        %811 = vmatprep.subr.mxu0 0.0
        %812 = vmatpush1.msra.mxu0 %v662
        %813 = vmatprep.subr.mxu0 0.0
        %814 = vmatpush2.msra.mxu0 %v693
        %815 = vmatprep.subr.mxu0 0.0
        %816 = vmatpush2.msra.mxu0 %v692
        %817 = vmatprep.subr.mxu0 0.0
        %818 = vmatpush2.msra.mxu0 %v691
        %819 = vmatprep.subr.mxu0 0.0
        %820 = vmatpush2.msra.mxu0 %v690
        %821 = vmatprep.subr.mxu0 0.0
        %822 = vmatpush2.msra.mxu0 %v689
        %823 = vmatprep.subr.mxu0 0.0
        %824 = vmatpush2.msra.mxu0 %v688
        %825 = vmatprep.subr.mxu0 0.0
        %826 = vmatpush2.msra.mxu0 %v687
        %827 = vmatprep.subr.mxu0 0.0
        %828 = vmatpush2.msra.mxu0 %v686
        %829 = vmatprep.subr.mxu0 0.0
        %830 = vmatpush2.msra.mxu0 %v685
        %831 = vmatprep.subr.mxu0 0.0
        %832 = vmatpush2.msra.mxu0 %v684
        %833 = vmatprep.subr.mxu0 0.0
        %834 = vmatpush2.msra.mxu0 %v683
        %835 = vmatprep.subr.mxu0 0.0
        %836 = vmatpush2.msra.mxu0 %v682
        %837 = vmatprep.subr.mxu0 0.0
        %838 = vmatpush2.msra.mxu0 %v681
        %839 = vmatprep.subr.mxu0 0.0
        %840 = vmatpush2.msra.mxu0 %v680
        %841 = vmatprep.subr.mxu0 0.0
        %842 = vmatpush2.msra.mxu0 %v679
        %843 = vmatprep.subr.mxu0 0.0
        %844 = vmatpush2.msra.mxu0 %v678
        %845 = vmatprep.mubr.f32.mxu0 %v780
        %846 = vmatmul.mubr.f32.gmra.mxu0 %v779
        %v847 = vpop.f32.mrf.mxu0
        %v848 = vadd.f32 0.0, %v847
        %v849 = vpop.f32.mrf.mxu0
        %850 = vdwg.mxu0
        %v852 = vcombine.high %v545, %v545
        %v853 = vsel %vm558, %v545, 0
        %v855 = vsel %vm558, %v852, 0
        %857 = vmatprep.subr.mxu0 0.0
        %858 = vmatpush1.msra.mxu0 0.0
        %859 = vmatprep.subr.mxu0 0.0
        %860 = vmatpush1.msra.mxu0 0.0
        %861 = vmatprep.subr.mxu0 0.0
        %862 = vmatpush1.msra.mxu0 0.0
        %863 = vmatprep.subr.mxu0 0.0
        %864 = vmatpush1.msra.mxu0 0.0
        %865 = vmatprep.subr.mxu0 0.0
        %866 = vmatpush1.msra.mxu0 0.0
        %867 = vmatprep.subr.mxu0 0.0
        %868 = vmatpush1.msra.mxu0 0.0
        %869 = vmatprep.subr.mxu0 0.0
        %870 = vmatpush1.msra.mxu0 0.0
        %871 = vmatprep.subr.mxu0 0.0
        %872 = vmatpush1.msra.mxu0 0.0
        %873 = vmatprep.subr.mxu0 0.0
        %874 = vmatpush1.msra.mxu0 0.0
        %875 = vmatprep.subr.mxu0 0.0
        %876 = vmatpush1.msra.mxu0 0.0
        %877 = vmatprep.subr.mxu0 0.0
        %878 = vmatpush1.msra.mxu0 0.0
        %879 = vmatprep.subr.mxu0 0.0
        %880 = vmatpush1.msra.mxu0 0.0
        %881 = vmatprep.subr.mxu0 0.0
        %882 = vmatpush1.msra.mxu0 0.0
        %883 = vmatprep.subr.mxu0 0.0
        %884 = vmatpush1.msra.mxu0 0.0
        %885 = vmatprep.subr.mxu0 0.0
        %886 = vmatpush1.msra.mxu0 0.0
        %887 = vmatprep.subr.mxu0 %v855
        %888 = vmatpush1.msra.mxu0 %v853
        %889 = vmatprep.subr.mxu0 0.0
        %890 = vmatpush2.msra.mxu0 0.0
        %891 = vmatprep.subr.mxu0 0.0
        %892 = vmatpush2.msra.mxu0 0.0
        %893 = vmatprep.subr.mxu0 0.0
        %894 = vmatpush2.msra.mxu0 0.0
        %895 = vmatprep.subr.mxu0 0.0
        %896 = vmatpush2.msra.mxu0 0.0
        %897 = vmatprep.subr.mxu0 0.0
        %898 = vmatpush2.msra.mxu0 0.0
        %899 = vmatprep.subr.mxu0 0.0
        %900 = vmatpush2.msra.mxu0 0.0
        %901 = vmatprep.subr.mxu0 0.0
        %902 = vmatpush2.msra.mxu0 0.0
        %903 = vmatprep.subr.mxu0 0.0
        %904 = vmatpush2.msra.mxu0 0.0
        %905 = vmatprep.subr.mxu0 0.0
        %906 = vmatpush2.msra.mxu0 0.0
        %907 = vmatprep.subr.mxu0 0.0
        %908 = vmatpush2.msra.mxu0 0.0
        %909 = vmatprep.subr.mxu0 0.0
        %910 = vmatpush2.msra.mxu0 0.0
        %911 = vmatprep.subr.mxu0 0.0
        %912 = vmatpush2.msra.mxu0 0.0
        %913 = vmatprep.subr.mxu0 0.0
        %914 = vmatpush2.msra.mxu0 0.0
        %915 = vmatprep.subr.mxu0 0.0
        %916 = vmatpush2.msra.mxu0 0.0
        %917 = vmatprep.subr.mxu0 0.0
        %918 = vmatpush2.msra.mxu0 0.0
        %919 = vmatprep.subr.mxu0 0.0
        %920 = vmatpush2.msra.mxu0 0.0
        %921 = vmatprep.mubr.f32.mxu0 0.0
        %922 = vmatmul.mubr.f32.gmra.mxu0 %v702
        %v923 = vpop.f32.mrf.mxu0
        %v924 = vadd.f32 %v697, %v923
        %v925 = vpop.f32.mrf.mxu0
        %v926 = vadd.f32 %v697, %v925
        %927 = vdwg.mxu0
        %v928 = vmax.f32 %v924, 0.0
        %v929 = vmax.f32 %v926, 0.0
        %930 = vmatprep.subr.mxu0 0.0
        %931 = vmatpush1.msra.mxu0 %v677
        %932 = vmatprep.subr.mxu0 0.0
        %933 = vmatpush1.msra.mxu0 %v676
        %934 = vmatprep.subr.mxu0 0.0
        %935 = vmatpush1.msra.mxu0 %v675
        %936 = vmatprep.subr.mxu0 0.0
        %937 = vmatpush1.msra.mxu0 %v674
        %938 = vmatprep.subr.mxu0 0.0
        %939 = vmatpush1.msra.mxu0 %v673
        %940 = vmatprep.subr.mxu0 0.0
        %941 = vmatpush1.msra.mxu0 %v672
        %942 = vmatprep.subr.mxu0 0.0
        %943 = vmatpush1.msra.mxu0 %v671
        %944 = vmatprep.subr.mxu0 0.0
        %945 = vmatpush1.msra.mxu0 %v670
        %946 = vmatprep.subr.mxu0 0.0
        %947 = vmatpush1.msra.mxu0 %v669
        %948 = vmatprep.subr.mxu0 0.0
        %949 = vmatpush1.msra.mxu0 %v668
        %950 = vmatprep.subr.mxu0 0.0
        %951 = vmatpush1.msra.mxu0 %v667
        %952 = vmatprep.subr.mxu0 0.0
        %953 = vmatpush1.msra.mxu0 %v666
        %954 = vmatprep.subr.mxu0 0.0
        %955 = vmatpush1.msra.mxu0 %v665
        %956 = vmatprep.subr.mxu0 0.0
        %957 = vmatpush1.msra.mxu0 %v664
        %958 = vmatprep.subr.mxu0 0.0
        %959 = vmatpush1.msra.mxu0 %v663
        %960 = vmatprep.subr.mxu0 0.0
        %961 = vmatpush1.msra.mxu0 %v662
        %962 = vmatprep.subr.mxu0 0.0
        %963 = vmatpush2.msra.mxu0 %v693
        %964 = vmatprep.subr.mxu0 0.0
        %965 = vmatpush2.msra.mxu0 %v692
        %966 = vmatprep.subr.mxu0 0.0
        %967 = vmatpush2.msra.mxu0 %v691
        %968 = vmatprep.subr.mxu0 0.0
        %969 = vmatpush2.msra.mxu0 %v690
        %970 = vmatprep.subr.mxu0 0.0
        %971 = vmatpush2.msra.mxu0 %v689
        %972 = vmatprep.subr.mxu0 0.0
        %973 = vmatpush2.msra.mxu0 %v688
        %974 = vmatprep.subr.mxu0 0.0
        %975 = vmatpush2.msra.mxu0 %v687
        %976 = vmatprep.subr.mxu0 0.0
        %977 = vmatpush2.msra.mxu0 %v686
        %978 = vmatprep.subr.mxu0 0.0
        %979 = vmatpush2.msra.mxu0 %v685
        %980 = vmatprep.subr.mxu0 0.0
        %981 = vmatpush2.msra.mxu0 %v684
        %982 = vmatprep.subr.mxu0 0.0
        %983 = vmatpush2.msra.mxu0 %v683
        %984 = vmatprep.subr.mxu0 0.0
        %985 = vmatpush2.msra.mxu0 %v682
        %986 = vmatprep.subr.mxu0 0.0
        %987 = vmatpush2.msra.mxu0 %v681
        %988 = vmatprep.subr.mxu0 0.0
        %989 = vmatpush2.msra.mxu0 %v680
        %990 = vmatprep.subr.mxu0 0.0
        %991 = vmatpush2.msra.mxu0 %v679
        %992 = vmatprep.subr.mxu0 0.0
        %993 = vmatpush2.msra.mxu0 %v678
        %994 = vmatprep.mubr.f32.mxu0 %v929
        %995 = vmatmul.mubr.f32.gmra.mxu0 %v928
        %v996 = vpop.f32.mrf.mxu0
        %v997 = vadd.f32 0.0, %v996
        %v998 = vpop.f32.mrf.mxu0
        %999 = vdwg.mxu0
        %v1001 = vcombine.high %v546, %v546
        %v1002 = vsel %vm558, %v546, 0
        %v1004 = vsel %vm558, %v1001, 0
        %1006 = vmatprep.subr.mxu0 0.0
        %1007 = vmatpush1.msra.mxu0 0.0
        %1008 = vmatprep.subr.mxu0 0.0
        %1009 = vmatpush1.msra.mxu0 0.0
        %1010 = vmatprep.subr.mxu0 0.0
        %1011 = vmatpush1.msra.mxu0 0.0
        %1012 = vmatprep.subr.mxu0 0.0
        %1013 = vmatpush1.msra.mxu0 0.0
        %1014 = vmatprep.subr.mxu0 0.0
        %1015 = vmatpush1.msra.mxu0 0.0
        %1016 = vmatprep.subr.mxu0 0.0
        %1017 = vmatpush1.msra.mxu0 0.0
        %1018 = vmatprep.subr.mxu0 0.0
        %1019 = vmatpush1.msra.mxu0 0.0
        %1020 = vmatprep.subr.mxu0 0.0
        %1021 = vmatpush1.msra.mxu0 0.0
        %1022 = vmatprep.subr.mxu0 0.0
        %1023 = vmatpush1.msra.mxu0 0.0
        %1024 = vmatprep.subr.mxu0 0.0
        %1025 = vmatpush1.msra.mxu0 0.0
        %1026 = vmatprep.subr.mxu0 0.0
        %1027 = vmatpush1.msra.mxu0 0.0
        %1028 = vmatprep.subr.mxu0 0.0
        %1029 = vmatpush1.msra.mxu0 0.0
        %1030 = vmatprep.subr.mxu0 0.0
        %1031 = vmatpush1.msra.mxu0 0.0
        %1032 = vmatprep.subr.mxu0 0.0
        %1033 = vmatpush1.msra.mxu0 0.0
        %1034 = vmatprep.subr.mxu0 0.0
        %1035 = vmatpush1.msra.mxu0 0.0
        %1036 = vmatprep.subr.mxu0 %v1004
        %1037 = vmatpush1.msra.mxu0 %v1002
        %1038 = vmatprep.subr.mxu0 0.0
        %1039 = vmatpush2.msra.mxu0 0.0
        %1040 = vmatprep.subr.mxu0 0.0
        %1041 = vmatpush2.msra.mxu0 0.0
        %1042 = vmatprep.subr.mxu0 0.0
        %1043 = vmatpush2.msra.mxu0 0.0
        %1044 = vmatprep.subr.mxu0 0.0
        %1045 = vmatpush2.msra.mxu0 0.0
        %1046 = vmatprep.subr.mxu0 0.0
        %1047 = vmatpush2.msra.mxu0 0.0
        %1048 = vmatprep.subr.mxu0 0.0
        %1049 = vmatpush2.msra.mxu0 0.0
        %1050 = vmatprep.subr.mxu0 0.0
        %1051 = vmatpush2.msra.mxu0 0.0
        %1052 = vmatprep.subr.mxu0 0.0
        %1053 = vmatpush2.msra.mxu0 0.0
        %1054 = vmatprep.subr.mxu0 0.0
        %1055 = vmatpush2.msra.mxu0 0.0
        %1056 = vmatprep.subr.mxu0 0.0
        %1057 = vmatpush2.msra.mxu0 0.0
        %1058 = vmatprep.subr.mxu0 0.0
        %1059 = vmatpush2.msra.mxu0 0.0
        %1060 = vmatprep.subr.mxu0 0.0
        %1061 = vmatpush2.msra.mxu0 0.0
        %1062 = vmatprep.subr.mxu0 0.0
        %1063 = vmatpush2.msra.mxu0 0.0
        %1064 = vmatprep.subr.mxu0 0.0
        %1065 = vmatpush2.msra.mxu0 0.0
        %1066 = vmatprep.subr.mxu0 0.0
        %1067 = vmatpush2.msra.mxu0 0.0
        %1068 = vmatprep.subr.mxu0 0.0
        %1069 = vmatpush2.msra.mxu0 0.0
        %1070 = vmatprep.mubr.f32.mxu0 0.0
        %1071 = vmatmul.mubr.f32.gmra.mxu0 %v702
        %v1072 = vpop.f32.mrf.mxu0
        %v1073 = vadd.f32 %v697, %v1072
        %v1074 = vpop.f32.mrf.mxu0
        %v1075 = vadd.f32 %v697, %v1074
        %1076 = vdwg.mxu0
        %v1077 = vmax.f32 %v1073, 0.0
        %v1078 = vmax.f32 %v1075, 0.0
        %1079 = vmatprep.subr.mxu0 0.0
        %1080 = vmatpush1.msra.mxu0 %v677
        %1081 = vmatprep.subr.mxu0 0.0
        %1082 = vmatpush1.msra.mxu0 %v676
        %1083 = vmatprep.subr.mxu0 0.0
        %1084 = vmatpush1.msra.mxu0 %v675
        %1085 = vmatprep.subr.mxu0 0.0
        %1086 = vmatpush1.msra.mxu0 %v674
        %1087 = vmatprep.subr.mxu0 0.0
        %1088 = vmatpush1.msra.mxu0 %v673
        %1089 = vmatprep.subr.mxu0 0.0
        %1090 = vmatpush1.msra.mxu0 %v672
        %1091 = vmatprep.subr.mxu0 0.0
        %1092 = vmatpush1.msra.mxu0 %v671
        %1093 = vmatprep.subr.mxu0 0.0
        %1094 = vmatpush1.msra.mxu0 %v670
        %1095 = vmatprep.subr.mxu0 0.0
        %1096 = vmatpush1.msra.mxu0 %v669
        %1097 = vmatprep.subr.mxu0 0.0
        %1098 = vmatpush1.msra.mxu0 %v668
        %1099 = vmatprep.subr.mxu0 0.0
        %1100 = vmatpush1.msra.mxu0 %v667
        %1101 = vmatprep.subr.mxu0 0.0
        %1102 = vmatpush1.msra.mxu0 %v666
        %1103 = vmatprep.subr.mxu0 0.0
        %1104 = vmatpush1.msra.mxu0 %v665
        %1105 = vmatprep.subr.mxu0 0.0
        %1106 = vmatpush1.msra.mxu0 %v664
        %1107 = vmatprep.subr.mxu0 0.0
        %1108 = vmatpush1.msra.mxu0 %v663
        %1109 = vmatprep.subr.mxu0 0.0
        %1110 = vmatpush1.msra.mxu0 %v662
        %1111 = vmatprep.subr.mxu0 0.0
        %1112 = vmatpush2.msra.mxu0 %v693
        %1113 = vmatprep.subr.mxu0 0.0
        %1114 = vmatpush2.msra.mxu0 %v692
        %1115 = vmatprep.subr.mxu0 0.0
        %1116 = vmatpush2.msra.mxu0 %v691
        %1117 = vmatprep.subr.mxu0 0.0
        %1118 = vmatpush2.msra.mxu0 %v690
        %1119 = vmatprep.subr.mxu0 0.0
        %1120 = vmatpush2.msra.mxu0 %v689
        %1121 = vmatprep.subr.mxu0 0.0
        %1122 = vmatpush2.msra.mxu0 %v688
        %1123 = vmatprep.subr.mxu0 0.0
        %1124 = vmatpush2.msra.mxu0 %v687
        %1125 = vmatprep.subr.mxu0 0.0
        %1126 = vmatpush2.msra.mxu0 %v686
        %1127 = vmatprep.subr.mxu0 0.0
        %1128 = vmatpush2.msra.mxu0 %v685
        %1129 = vmatprep.subr.mxu0 0.0
        %1130 = vmatpush2.msra.mxu0 %v684
        %1131 = vmatprep.subr.mxu0 0.0
        %1132 = vmatpush2.msra.mxu0 %v683
        %1133 = vmatprep.subr.mxu0 0.0
        %1134 = vmatpush2.msra.mxu0 %v682
        %1135 = vmatprep.subr.mxu0 0.0
        %1136 = vmatpush2.msra.mxu0 %v681
        %1137 = vmatprep.subr.mxu0 0.0
        %1138 = vmatpush2.msra.mxu0 %v680
        %1139 = vmatprep.subr.mxu0 0.0
        %1140 = vmatpush2.msra.mxu0 %v679
        %1141 = vmatprep.subr.mxu0 0.0
        %1142 = vmatpush2.msra.mxu0 %v678
        %1143 = vmatprep.mubr.f32.mxu0 %v1078
        %1144 = vmatmul.mubr.f32.gmra.mxu0 %v1077
        %v1145 = vpop.f32.mrf.mxu0
        %v1146 = vadd.f32 0.0, %v1145
        %v1147 = vpop.f32.mrf.mxu0
        %1148 = vdwg.mxu0
        %v1149 = vsub.f32 %v997, %v1146
        %v1150 = vand.u32 2147483647, %v1149
        %vm1151 = vcmask 523264
        %v1152 = vsel %vm1151, %v1150, 0.0
        %1153 = vadd.xlane.f32.xlu0 %v1152
        %v1154 = vpop.xlane.xlu0 %1153
        %v1155 = vrot.slane %v1154, 4
        %v1156 = vadd.f32 %v1154, %v1155
        %v1157 = vrot.slane %v1156, 2
        %v1158 = vadd.f32 %v1156, %v1157
        %v1159 = vrot.slane %v1158, 1
        %v1160 = vadd.f32 %v1158, %v1159
        %s1161 = vtos %v1160
        %v1162 = vrcp.pop 1024.0
        %s1163 = vtos %v1162
        %s1164 = smul.f32 %s1161, %s1163
        %s1165 = sadd.f32 %s1164, 0.0
        %v1166 = vsub.f32 %v848, %v1146
        %v1167 = vand.u32 2147483647, %v1166
        %v1168 = vsel %vm1151, %v1167, 0.0
        %1169 = vadd.xlane.f32.xlu0 %v1168
        %v1170 = vpop.xlane.xlu0 %1169
        %v1171 = vrot.slane %v1170, 4
        %v1172 = vadd.f32 %v1170, %v1171
        %v1173 = vrot.slane %v1172, 2
        %v1174 = vadd.f32 %v1172, %v1173
        %v1175 = vrot.slane %v1174, 1
        %v1176 = vadd.f32 %v1174, %v1175
        %s1177 = vtos %v1176
        %v1178 = vrcp.pop 1024.0
        %s1179 = vtos %v1178
        %s1180 = smul.f32 %s1177, %s1179
        %s1181 = sadd.f32 %s1165, %s1180
        %v1183 = vsel %vm1151, %v848, 0
        %1185 = vmatprep.subr.mxu0 0.0
        %1186 = vmatpush1.xpose.msra.mxu0 0.0
        %1187 = vmatprep.subr.mxu0 0.0
        %1188 = vmatpush1.xpose.msra.mxu0 0.0
        %1189 = vmatprep.subr.mxu0 0.0
        %1190 = vmatpush1.xpose.msra.mxu0 0.0
        %1191 = vmatprep.subr.mxu0 0.0
        %1192 = vmatpush1.xpose.msra.mxu0 0.0
        %1193 = vmatprep.subr.mxu0 0.0
        %1194 = vmatpush1.xpose.msra.mxu0 0.0
        %1195 = vmatprep.subr.mxu0 0.0
        %1196 = vmatpush1.xpose.msra.mxu0 0.0
        %1197 = vmatprep.subr.mxu0 0.0
        %1198 = vmatpush1.xpose.msra.mxu0 0.0
        %1199 = vmatprep.subr.mxu0 0.0
        %1200 = vmatpush1.xpose.msra.mxu0 0.0
        %1201 = vmatprep.subr.mxu0 0.0
        %1202 = vmatpush1.xpose.msra.mxu0 0.0
        %1203 = vmatprep.subr.mxu0 0.0
        %1204 = vmatpush1.xpose.msra.mxu0 0.0
        %1205 = vmatprep.subr.mxu0 0.0
        %1206 = vmatpush1.xpose.msra.mxu0 0.0
        %1207 = vmatprep.subr.mxu0 0.0
        %1208 = vmatpush1.xpose.msra.mxu0 0.0
        %1209 = vmatprep.subr.mxu0 0.0
        %1210 = vmatpush1.xpose.msra.mxu0 0.0
        %1211 = vmatprep.subr.mxu0 0.0
        %1212 = vmatpush1.xpose.msra.mxu0 0.0
        %1213 = vmatprep.subr.mxu0 0.0
        %1214 = vmatpush1.xpose.msra.mxu0 0.0
        %1215 = vmatprep.subr.mxu0 0.0
        %1216 = vmatpush1.xpose.msra.mxu0 %v1183
        %1217 = vmatprep.subr.mxu0 0.0
        %1218 = vmatpush2.xpose.msra.mxu0 0.0
        %1219 = vmatprep.subr.mxu0 0.0
        %1220 = vmatpush2.xpose.msra.mxu0 0.0
        %1221 = vmatprep.subr.mxu0 0.0
        %1222 = vmatpush2.xpose.msra.mxu0 0.0
        %1223 = vmatprep.subr.mxu0 0.0
        %1224 = vmatpush2.xpose.msra.mxu0 0.0
        %1225 = vmatprep.subr.mxu0 0.0
        %1226 = vmatpush2.xpose.msra.mxu0 0.0
        %1227 = vmatprep.subr.mxu0 0.0
        %1228 = vmatpush2.xpose.msra.mxu0 0.0
        %1229 = vmatprep.subr.mxu0 0.0
        %1230 = vmatpush2.xpose.msra.mxu0 0.0
        %1231 = vmatprep.subr.mxu0 0.0
        %1232 = vmatpush2.xpose.msra.mxu0 0.0
        %1233 = vmatprep.subr.mxu0 0.0
        %1234 = vmatpush2.xpose.msra.mxu0 0.0
        %1235 = vmatprep.subr.mxu0 0.0
        %1236 = vmatpush2.xpose.msra.mxu0 0.0
        %1237 = vmatprep.subr.mxu0 0.0
        %1238 = vmatpush2.xpose.msra.mxu0 0.0
        %1239 = vmatprep.subr.mxu0 0.0
        %1240 = vmatpush2.xpose.msra.mxu0 0.0
        %1241 = vmatprep.subr.mxu0 0.0
        %1242 = vmatpush2.xpose.msra.mxu0 0.0
        %1243 = vmatprep.subr.mxu0 0.0
        %1244 = vmatpush2.xpose.msra.mxu0 0.0
        %1245 = vmatprep.subr.mxu0 0.0
        %1246 = vmatpush2.xpose.msra.mxu0 0.0
        %1247 = vmatprep.subr.mxu0 0.0
        %1248 = vmatpush2.xpose.msra.mxu0 0.0
        %1249 = vmatprep.mubr.f32.mxu0 0.0
        %1250 = vmatmul.mubr.f32.gmra.mxu0 %v1183
        %v1251 = vpop.f32.mrf.mxu0
        %v1252 = vadd.f32 0.0, %v1251
        %v1253 = vpop.f32.mrf.mxu0
        %1254 = vdwg.mxu0
        %v1255 = vrcp.pop 512.0
        %v1256 = vmul.f32 %v1252, %v1255
        %v1258 = vsel %vm1151, %v997, 0
        %1260 = vmatprep.subr.mxu0 0.0
        %1261 = vmatpush1.xpose.msra.mxu0 0.0
        %1262 = vmatprep.subr.mxu0 0.0
        %1263 = vmatpush1.xpose.msra.mxu0 0.0
        %1264 = vmatprep.subr.mxu0 0.0
        %1265 = vmatpush1.xpose.msra.mxu0 0.0
        %1266 = vmatprep.subr.mxu0 0.0
        %1267 = vmatpush1.xpose.msra.mxu0 0.0
        %1268 = vmatprep.subr.mxu0 0.0
        %1269 = vmatpush1.xpose.msra.mxu0 0.0
        %1270 = vmatprep.subr.mxu0 0.0
        %1271 = vmatpush1.xpose.msra.mxu0 0.0
        %1272 = vmatprep.subr.mxu0 0.0
        %1273 = vmatpush1.xpose.msra.mxu0 0.0
        %1274 = vmatprep.subr.mxu0 0.0
        %1275 = vmatpush1.xpose.msra.mxu0 0.0
        %1276 = vmatprep.subr.mxu0 0.0
        %1277 = vmatpush1.xpose.msra.mxu0 0.0
        %1278 = vmatprep.subr.mxu0 0.0
        %1279 = vmatpush1.xpose.msra.mxu0 0.0
        %1280 = vmatprep.subr.mxu0 0.0
        %1281 = vmatpush1.xpose.msra.mxu0 0.0
        %1282 = vmatprep.subr.mxu0 0.0
        %1283 = vmatpush1.xpose.msra.mxu0 0.0
        %1284 = vmatprep.subr.mxu0 0.0
        %1285 = vmatpush1.xpose.msra.mxu0 0.0
        %1286 = vmatprep.subr.mxu0 0.0
        %1287 = vmatpush1.xpose.msra.mxu0 0.0
        %1288 = vmatprep.subr.mxu0 0.0
        %1289 = vmatpush1.xpose.msra.mxu0 0.0
        %1290 = vmatprep.subr.mxu0 0.0
        %1291 = vmatpush1.xpose.msra.mxu0 %v1258
        %1292 = vmatprep.subr.mxu0 0.0
        %1293 = vmatpush2.xpose.msra.mxu0 0.0
        %1294 = vmatprep.subr.mxu0 0.0
        %1295 = vmatpush2.xpose.msra.mxu0 0.0
        %1296 = vmatprep.subr.mxu0 0.0
        %1297 = vmatpush2.xpose.msra.mxu0 0.0
        %1298 = vmatprep.subr.mxu0 0.0
        %1299 = vmatpush2.xpose.msra.mxu0 0.0
        %1300 = vmatprep.subr.mxu0 0.0
        %1301 = vmatpush2.xpose.msra.mxu0 0.0
        %1302 = vmatprep.subr.mxu0 0.0
        %1303 = vmatpush2.xpose.msra.mxu0 0.0
        %1304 = vmatprep.subr.mxu0 0.0
        %1305 = vmatpush2.xpose.msra.mxu0 0.0
        %1306 = vmatprep.subr.mxu0 0.0
        %1307 = vmatpush2.xpose.msra.mxu0 0.0
        %1308 = vmatprep.subr.mxu0 0.0
        %1309 = vmatpush2.xpose.msra.mxu0 0.0
        %1310 = vmatprep.subr.mxu0 0.0
        %1311 = vmatpush2.xpose.msra.mxu0 0.0
        %1312 = vmatprep.subr.mxu0 0.0
        %1313 = vmatpush2.xpose.msra.mxu0 0.0
        %1314 = vmatprep.subr.mxu0 0.0
        %1315 = vmatpush2.xpose.msra.mxu0 0.0
        %1316 = vmatprep.subr.mxu0 0.0
        %1317 = vmatpush2.xpose.msra.mxu0 0.0
        %1318 = vmatprep.subr.mxu0 0.0
        %1319 = vmatpush2.xpose.msra.mxu0 0.0
        %1320 = vmatprep.subr.mxu0 0.0
        %1321 = vmatpush2.xpose.msra.mxu0 0.0
        %1322 = vmatprep.subr.mxu0 0.0
        %1323 = vmatpush2.xpose.msra.mxu0 0.0
        %1324 = vmatprep.mubr.f32.mxu0 0.0
        %1325 = vmatmul.mubr.f32.gmra.mxu0 %v1258
        %v1326 = vpop.f32.mrf.mxu0
        %v1327 = vadd.f32 0.0, %v1326
        %v1328 = vpop.f32.mrf.mxu0
        %1329 = vdwg.mxu0
        %v1330 = vmul.f32 %v1327, %v1255
        %v1332 = vsel %vm1151, %v1146, 0
        %1334 = vmatprep.subr.mxu0 0.0
        %1335 = vmatpush1.xpose.msra.mxu0 0.0
        %1336 = vmatprep.subr.mxu0 0.0
        %1337 = vmatpush1.xpose.msra.mxu0 0.0
        %1338 = vmatprep.subr.mxu0 0.0
        %1339 = vmatpush1.xpose.msra.mxu0 0.0
        %1340 = vmatprep.subr.mxu0 0.0
        %1341 = vmatpush1.xpose.msra.mxu0 0.0
        %1342 = vmatprep.subr.mxu0 0.0
        %1343 = vmatpush1.xpose.msra.mxu0 0.0
        %1344 = vmatprep.subr.mxu0 0.0
        %1345 = vmatpush1.xpose.msra.mxu0 0.0
        %1346 = vmatprep.subr.mxu0 0.0
        %1347 = vmatpush1.xpose.msra.mxu0 0.0
        %1348 = vmatprep.subr.mxu0 0.0
        %1349 = vmatpush1.xpose.msra.mxu0 0.0
        %1350 = vmatprep.subr.mxu0 0.0
        %1351 = vmatpush1.xpose.msra.mxu0 0.0
        %1352 = vmatprep.subr.mxu0 0.0
        %1353 = vmatpush1.xpose.msra.mxu0 0.0
        %1354 = vmatprep.subr.mxu0 0.0
        %1355 = vmatpush1.xpose.msra.mxu0 0.0
        %1356 = vmatprep.subr.mxu0 0.0
        %1357 = vmatpush1.xpose.msra.mxu0 0.0
        %1358 = vmatprep.subr.mxu0 0.0
        %1359 = vmatpush1.xpose.msra.mxu0 0.0
        %1360 = vmatprep.subr.mxu0 0.0
        %1361 = vmatpush1.xpose.msra.mxu0 0.0
        %1362 = vmatprep.subr.mxu0 0.0
        %1363 = vmatpush1.xpose.msra.mxu0 0.0
        %1364 = vmatprep.subr.mxu0 0.0
        %1365 = vmatpush1.xpose.msra.mxu0 %v1332
        %1366 = vmatprep.subr.mxu0 0.0
        %1367 = vmatpush2.xpose.msra.mxu0 0.0
        %1368 = vmatprep.subr.mxu0 0.0
        %1369 = vmatpush2.xpose.msra.mxu0 0.0
        %1370 = vmatprep.subr.mxu0 0.0
        %1371 = vmatpush2.xpose.msra.mxu0 0.0
        %1372 = vmatprep.subr.mxu0 0.0
        %1373 = vmatpush2.xpose.msra.mxu0 0.0
        %1374 = vmatprep.subr.mxu0 0.0
        %1375 = vmatpush2.xpose.msra.mxu0 0.0
        %1376 = vmatprep.subr.mxu0 0.0
        %1377 = vmatpush2.xpose.msra.mxu0 0.0
        %1378 = vmatprep.subr.mxu0 0.0
        %1379 = vmatpush2.xpose.msra.mxu0 0.0
        %1380 = vmatprep.subr.mxu0 0.0
        %1381 = vmatpush2.xpose.msra.mxu0 0.0
        %1382 = vmatprep.subr.mxu0 0.0
        %1383 = vmatpush2.xpose.msra.mxu0 0.0
        %1384 = vmatprep.subr.mxu0 0.0
        %1385 = vmatpush2.xpose.msra.mxu0 0.0
        %1386 = vmatprep.subr.mxu0 0.0
        %1387 = vmatpush2.xpose.msra.mxu0 0.0
        %1388 = vmatprep.subr.mxu0 0.0
        %1389 = vmatpush2.xpose.msra.mxu0 0.0
        %1390 = vmatprep.subr.mxu0 0.0
        %1391 = vmatpush2.xpose.msra.mxu0 0.0
        %1392 = vmatprep.subr.mxu0 0.0
        %1393 = vmatpush2.xpose.msra.mxu0 0.0
        %1394 = vmatprep.subr.mxu0 0.0
        %1395 = vmatpush2.xpose.msra.mxu0 0.0
        %1396 = vmatprep.subr.mxu0 0.0
        %1397 = vmatpush2.xpose.msra.mxu0 0.0
        %1398 = vmatprep.mubr.f32.mxu0 0.0
        %1399 = vmatmul.mubr.f32.gmra.mxu0 %v1332
        %v1400 = vpop.f32.mrf.mxu0
        %v1401 = vadd.f32 0.0, %v1400
        %v1402 = vpop.f32.mrf.mxu0
        %1403 = vdwg.mxu0
        %v1404 = vmul.f32 %v1401, %v1255
        %v1405 = vsub.f32 %v1330, %v1404
        %v1406 = vand.u32 2147483647, %v1405
        %vm1407 = vcmask 64512
        %v1408 = vsel %vm1407, %v1406, 0.0
        %1409 = vadd.xlane.f32.xlu0 %v1408
        %v1410 = vpop.xlane.xlu0 %1409
        %v1411 = vrot.slane %v1410, 4
        %v1412 = vadd.f32 %v1410, %v1411
        %v1413 = vrot.slane %v1412, 2
        %v1414 = vadd.f32 %v1412, %v1413
        %v1415 = vrot.slane %v1414, 1
        %v1416 = vadd.f32 %v1414, %v1415
        %s1417 = vtos %v1416
        %v1418 = vrcp.pop 128.0
        %s1419 = vtos %v1418
        %s1420 = smul.f32 %s1417, %s1419
        %s1421 = sadd.f32 %s1420, 0.0
        %v1422 = vsub.f32 %v1256, %v1404
        %v1423 = vand.u32 2147483647, %v1422
        %v1424 = vsel %vm1407, %v1423, 0.0
        %1425 = vadd.xlane.f32.xlu0 %v1424
        %v1426 = vpop.xlane.xlu0 %1425
        %v1427 = vrot.slane %v1426, 4
        %v1428 = vadd.f32 %v1426, %v1427
        %v1429 = vrot.slane %v1428, 2
        %v1430 = vadd.f32 %v1428, %v1429
        %v1431 = vrot.slane %v1430, 1
        %v1432 = vadd.f32 %v1430, %v1431
        %s1433 = vtos %v1432
        %v1434 = vrcp.pop 128.0
        %s1435 = vtos %v1434
        %s1436 = smul.f32 %s1433, %s1435
        %s1437 = sadd.f32 %s1421, %s1436
        %v1438 = vld [vmem:[%s8] sm:$0xff]
        %v1439 = vld [vmem:[%s8 + $0x8] sm:$0xff]
        %v1440 = vld [vmem:[%s9] sm:$0xff]
        %v1441 = vld [vmem:[%s9 + $0x8] sm:$0xff]
        %v1442 = vld [vmem:[#allocation3] sm:$0xff]
        %v1443 = vld [vmem:[#allocation3 + $0x8] sm:$0xff]
        %v1444 = vld [vmem:[#allocation3 + $0x10] sm:$0xff]
        %v1445 = vld [vmem:[#allocation3 + $0x18] sm:$0xff]
        %v1446 = vld [vmem:[#allocation3 + $0x20] sm:$0xff]
        %v1447 = vld [vmem:[#allocation3 + $0x28] sm:$0xff]
        %v1448 = vld [vmem:[#allocation3 + $0x30] sm:$0xff]
        %v1449 = vld [vmem:[#allocation3 + $0x38] sm:$0xff]
        %1451 = vset.pattern.permute.xlu0 0
        %1452 = vperm.xlu0 %1451, %v1440
        %v1453 = vpop.permute.xlu0 %1452
        %1456 = vset.pattern.permute.xlu0 0
        %1457 = vperm.xlu0 %1456, %v1441
        %v1458 = vpop.permute.xlu0 %1457
        %v1461 = vsel %vm1407, %v1438, 0
        %v1464 = vsel %vm1407, %v1439, 0
        %1466 = vmatprep.subr.mxu0 0.0
        %1467 = vmatpush1.msra.mxu0 0.0
        %1468 = vmatprep.subr.mxu0 0.0
        %1469 = vmatpush1.msra.mxu0 0.0
        %1470 = vmatprep.subr.mxu0 0.0
        %1471 = vmatpush1.msra.mxu0 0.0
        %1472 = vmatprep.subr.mxu0 0.0
        %1473 = vmatpush1.msra.mxu0 0.0
        %1474 = vmatprep.subr.mxu0 0.0
        %1475 = vmatpush1.msra.mxu0 0.0
        %1476 = vmatprep.subr.mxu0 0.0
        %1477 = vmatpush1.msra.mxu0 0.0
        %1478 = vmatprep.subr.mxu0 0.0
        %1479 = vmatpush1.msra.mxu0 0.0
        %1480 = vmatprep.subr.mxu0 0.0
        %1481 = vmatpush1.msra.mxu0 0.0
        %1482 = vmatprep.subr.mxu0 0.0
        %1483 = vmatpush1.msra.mxu0 0.0
        %1484 = vmatprep.subr.mxu0 0.0
        %1485 = vmatpush1.msra.mxu0 0.0
        %1486 = vmatprep.subr.mxu0 0.0
        %1487 = vmatpush1.msra.mxu0 0.0
        %1488 = vmatprep.subr.mxu0 0.0
        %1489 = vmatpush1.msra.mxu0 0.0
        %1490 = vmatprep.subr.mxu0 0.0
        %1491 = vmatpush1.msra.mxu0 0.0
        %1492 = vmatprep.subr.mxu0 0.0
        %1493 = vmatpush1.msra.mxu0 0.0
        %1494 = vmatprep.subr.mxu0 0.0
        %1495 = vmatpush1.msra.mxu0 0.0
        %1496 = vmatprep.subr.mxu0 0.0
        %1497 = vmatpush1.msra.mxu0 %v848
        %1498 = vmatprep.subr.mxu0 0.0
        %1499 = vmatpush2.msra.mxu0 0.0
        %1500 = vmatprep.subr.mxu0 0.0
        %1501 = vmatpush2.msra.mxu0 0.0
        %1502 = vmatprep.subr.mxu0 0.0
        %1503 = vmatpush2.msra.mxu0 0.0
        %1504 = vmatprep.subr.mxu0 0.0
        %1505 = vmatpush2.msra.mxu0 0.0
        %1506 = vmatprep.subr.mxu0 0.0
        %1507 = vmatpush2.msra.mxu0 0.0
        %1508 = vmatprep.subr.mxu0 0.0
        %1509 = vmatpush2.msra.mxu0 0.0
        %1510 = vmatprep.subr.mxu0 0.0
        %1511 = vmatpush2.msra.mxu0 0.0
        %1512 = vmatprep.subr.mxu0 0.0
        %1513 = vmatpush2.msra.mxu0 0.0
        %1514 = vmatprep.subr.mxu0 0.0
        %1515 = vmatpush2.msra.mxu0 0.0
        %1516 = vmatprep.subr.mxu0 0.0
        %1517 = vmatpush2.msra.mxu0 0.0
        %1518 = vmatprep.subr.mxu0 0.0
        %1519 = vmatpush2.msra.mxu0 0.0
        %1520 = vmatprep.subr.mxu0 0.0
        %1521 = vmatpush2.msra.mxu0 0.0
        %1522 = vmatprep.subr.mxu0 0.0
        %1523 = vmatpush2.msra.mxu0 0.0
        %1524 = vmatprep.subr.mxu0 0.0
        %1525 = vmatpush2.msra.mxu0 0.0
        %1526 = vmatprep.subr.mxu0 0.0
        %1527 = vmatpush2.msra.mxu0 0.0
        %1528 = vmatprep.subr.mxu0 0.0
        %1529 = vmatpush2.msra.mxu0 0.0
        %1530 = vmatprep.mubr.f32.mxu0 0.0
        %1531 = vmatmul.mubr.f32.gmra.mxu0 %v1461
        %v1532 = vpop.f32.mrf.mxu0
        %v1533 = vadd.f32 %v1453, %v1532
        %v1534 = vpop.f32.mrf.mxu0
        %1535 = vmatprep.mubr.f32.mxu0 0.0
        %1536 = vmatmul.mubr.f32.gmra.mxu0 %v1464
        %v1537 = vpop.f32.mrf.mxu0
        %v1538 = vadd.f32 %v1458, %v1537
        %v1539 = vpop.f32.mrf.mxu0
        %1540 = vdwg.mxu0
        %v1541 = vmax.f32 %v1533, 0.0
        %v1542 = vmax.f32 %v1538, 0.0
        %v1544 = vsel %vm1151, %v1541, 0
        %v1547 = vsel %vm1151, %v1542, 0
        %1549 = vmatprep.subr.mxu0 0.0
        %1550 = vmatpush1.msra.mxu0 0.0
        %1551 = vmatprep.subr.mxu0 0.0
        %1552 = vmatpush1.msra.mxu0 0.0
        %1553 = vmatprep.subr.mxu0 0.0
        %1554 = vmatpush1.msra.mxu0 0.0
        %1555 = vmatprep.subr.mxu0 0.0
        %1556 = vmatpush1.msra.mxu0 0.0
        %1557 = vmatprep.subr.mxu0 0.0
        %1558 = vmatpush1.msra.mxu0 0.0
        %1559 = vmatprep.subr.mxu0 0.0
        %1560 = vmatpush1.msra.mxu0 0.0
        %1561 = vmatprep.subr.mxu0 0.0
        %1562 = vmatpush1.msra.mxu0 0.0
        %1563 = vmatprep.subr.mxu0 0.0
        %1564 = vmatpush1.msra.mxu0 0.0
        %1565 = vmatprep.subr.mxu0 0.0
        %1566 = vmatpush1.msra.mxu0 %v1449
        %1567 = vmatprep.subr.mxu0 0.0
        %1568 = vmatpush1.msra.mxu0 %v1448
        %1569 = vmatprep.subr.mxu0 0.0
        %1570 = vmatpush1.msra.mxu0 %v1447
        %1571 = vmatprep.subr.mxu0 0.0
        %1572 = vmatpush1.msra.mxu0 %v1446
        %1573 = vmatprep.subr.mxu0 0.0
        %1574 = vmatpush1.msra.mxu0 %v1445
        %1575 = vmatprep.subr.mxu0 0.0
        %1576 = vmatpush1.msra.mxu0 %v1444
        %1577 = vmatprep.subr.mxu0 0.0
        %1578 = vmatpush1.msra.mxu0 %v1443
        %1579 = vmatprep.subr.mxu0 0.0
        %1580 = vmatpush1.msra.mxu0 %v1442
        %1581 = vmatprep.subr.mxu0 0.0
        %1582 = vmatpush2.msra.mxu0 0.0
        %1583 = vmatprep.subr.mxu0 0.0
        %1584 = vmatpush2.msra.mxu0 0.0
        %1585 = vmatprep.subr.mxu0 0.0
        %1586 = vmatpush2.msra.mxu0 0.0
        %1587 = vmatprep.subr.mxu0 0.0
        %1588 = vmatpush2.msra.mxu0 0.0
        %1589 = vmatprep.subr.mxu0 0.0
        %1590 = vmatpush2.msra.mxu0 0.0
        %1591 = vmatprep.subr.mxu0 0.0
        %1592 = vmatpush2.msra.mxu0 0.0
        %1593 = vmatprep.subr.mxu0 0.0
        %1594 = vmatpush2.msra.mxu0 0.0
        %1595 = vmatprep.subr.mxu0 0.0
        %1596 = vmatpush2.msra.mxu0 0.0
        %1597 = vmatprep.subr.mxu0 0.0
        %1598 = vmatpush2.msra.mxu0 0.0
        %1599 = vmatprep.subr.mxu0 0.0
        %1600 = vmatpush2.msra.mxu0 0.0
        %1601 = vmatprep.subr.mxu0 0.0
        %1602 = vmatpush2.msra.mxu0 0.0
        %1603 = vmatprep.subr.mxu0 0.0
        %1604 = vmatpush2.msra.mxu0 0.0
        %1605 = vmatprep.subr.mxu0 0.0
        %1606 = vmatpush2.msra.mxu0 0.0
        %1607 = vmatprep.subr.mxu0 0.0
        %1608 = vmatpush2.msra.mxu0 0.0
        %1609 = vmatprep.subr.mxu0 0.0
        %1610 = vmatpush2.msra.mxu0 0.0
        %1611 = vmatprep.subr.mxu0 0.0
        %1612 = vmatpush2.msra.mxu0 0.0
        %1613 = vmatprep.mubr.f32.mxu0 0.0
        %1614 = vmatmul.mubr.f32.gmra.mxu0 %v1544
        %v1615 = vpop.f32.mrf.mxu0
        %v1616 = vadd.f32 0.0, %v1615
        %v1617 = vpop.f32.mrf.mxu0
        %1618 = vmatprep.mubr.f32.mxu0 0.0
        %1619 = vmatmul.mubr.f32.gmra.mxu0 %v1547
        %v1620 = vpop.f32.mrf.mxu0
        %v1621 = vadd.f32 0.0, %v1620
        %v1622 = vpop.f32.mrf.mxu0
        %1623 = vdwg.mxu0
        %1624 = vmatprep.subr.mxu0 0.0
        %1625 = vmatpush1.msra.mxu0 0.0
        %1626 = vmatprep.subr.mxu0 0.0
        %1627 = vmatpush1.msra.mxu0 0.0
        %1628 = vmatprep.subr.mxu0 0.0
        %1629 = vmatpush1.msra.mxu0 0.0
        %1630 = vmatprep.subr.mxu0 0.0
        %1631 = vmatpush1.msra.mxu0 0.0
        %1632 = vmatprep.subr.mxu0 0.0
        %1633 = vmatpush1.msra.mxu0 0.0
        %1634 = vmatprep.subr.mxu0 0.0
        %1635 = vmatpush1.msra.mxu0 0.0
        %1636 = vmatprep.subr.mxu0 0.0
        %1637 = vmatpush1.msra.mxu0 0.0
        %1638 = vmatprep.subr.mxu0 0.0
        %1639 = vmatpush1.msra.mxu0 0.0
        %1640 = vmatprep.subr.mxu0 0.0
        %1641 = vmatpush1.msra.mxu0 0.0
        %1642 = vmatprep.subr.mxu0 0.0
        %1643 = vmatpush1.msra.mxu0 0.0
        %1644 = vmatprep.subr.mxu0 0.0
        %1645 = vmatpush1.msra.mxu0 0.0
        %1646 = vmatprep.subr.mxu0 0.0
        %1647 = vmatpush1.msra.mxu0 0.0
        %1648 = vmatprep.subr.mxu0 0.0
        %1649 = vmatpush1.msra.mxu0 0.0
        %1650 = vmatprep.subr.mxu0 0.0
        %1651 = vmatpush1.msra.mxu0 0.0
        %1652 = vmatprep.subr.mxu0 0.0
        %1653 = vmatpush1.msra.mxu0 0.0
        %1654 = vmatprep.subr.mxu0 0.0
        %1655 = vmatpush1.msra.mxu0 %v997
        %1656 = vmatprep.subr.mxu0 0.0
        %1657 = vmatpush2.msra.mxu0 0.0
        %1658 = vmatprep.subr.mxu0 0.0
        %1659 = vmatpush2.msra.mxu0 0.0
        %1660 = vmatprep.subr.mxu0 0.0
        %1661 = vmatpush2.msra.mxu0 0.0
        %1662 = vmatprep.subr.mxu0 0.0
        %1663 = vmatpush2.msra.mxu0 0.0
        %1664 = vmatprep.subr.mxu0 0.0
        %1665 = vmatpush2.msra.mxu0 0.0
        %1666 = vmatprep.subr.mxu0 0.0
        %1667 = vmatpush2.msra.mxu0 0.0
        %1668 = vmatprep.subr.mxu0 0.0
        %1669 = vmatpush2.msra.mxu0 0.0
        %1670 = vmatprep.subr.mxu0 0.0
        %1671 = vmatpush2.msra.mxu0 0.0
        %1672 = vmatprep.subr.mxu0 0.0
        %1673 = vmatpush2.msra.mxu0 0.0
        %1674 = vmatprep.subr.mxu0 0.0
        %1675 = vmatpush2.msra.mxu0 0.0
        %1676 = vmatprep.subr.mxu0 0.0
        %1677 = vmatpush2.msra.mxu0 0.0
        %1678 = vmatprep.subr.mxu0 0.0
        %1679 = vmatpush2.msra.mxu0 0.0
        %1680 = vmatprep.subr.mxu0 0.0
        %1681 = vmatpush2.msra.mxu0 0.0
        %1682 = vmatprep.subr.mxu0 0.0
        %1683 = vmatpush2.msra.mxu0 0.0
        %1684 = vmatprep.subr.mxu0 0.0
        %1685 = vmatpush2.msra.mxu0 0.0
        %1686 = vmatprep.subr.mxu0 0.0
        %1687 = vmatpush2.msra.mxu0 0.0
        %1688 = vmatprep.mubr.f32.mxu0 0.0
        %1689 = vmatmul.mubr.f32.gmra.mxu0 %v1461
        %v1690 = vpop.f32.mrf.mxu0
        %v1691 = vadd.f32 %v1453, %v1690
        %v1692 = vpop.f32.mrf.mxu0
        %1693 = vmatprep.mubr.f32.mxu0 0.0
        %1694 = vmatmul.mubr.f32.gmra.mxu0 %v1464
        %v1695 = vpop.f32.mrf.mxu0
        %v1696 = vadd.f32 %v1458, %v1695
        %v1697 = vpop.f32.mrf.mxu0
        %1698 = vdwg.mxu0
        %v1699 = vmax.f32 %v1691, 0.0
        %v1700 = vmax.f32 %v1696, 0.0
        %v1702 = vsel %vm1151, %v1699, 0
        %v1705 = vsel %vm1151, %v1700, 0
        %1707 = vmatprep.subr.mxu0 0.0
        %1708 = vmatpush1.msra.mxu0 0.0
        %1709 = vmatprep.subr.mxu0 0.0
        %1710 = vmatpush1.msra.mxu0 0.0
        %1711 = vmatprep.subr.mxu0 0.0
        %1712 = vmatpush1.msra.mxu0 0.0
        %1713 = vmatprep.subr.mxu0 0.0
        %1714 = vmatpush1.msra.mxu0 0.0
        %1715 = vmatprep.subr.mxu0 0.0
        %1716 = vmatpush1.msra.mxu0 0.0
        %1717 = vmatprep.subr.mxu0 0.0
        %1718 = vmatpush1.msra.mxu0 0.0
        %1719 = vmatprep.subr.mxu0 0.0
        %1720 = vmatpush1.msra.mxu0 0.0
        %1721 = vmatprep.subr.mxu0 0.0
        %1722 = vmatpush1.msra.mxu0 0.0
        %1723 = vmatprep.subr.mxu0 0.0
        %1724 = vmatpush1.msra.mxu0 %v1449
        %1725 = vmatprep.subr.mxu0 0.0
        %1726 = vmatpush1.msra.mxu0 %v1448
        %1727 = vmatprep.subr.mxu0 0.0
        %1728 = vmatpush1.msra.mxu0 %v1447
        %1729 = vmatprep.subr.mxu0 0.0
        %1730 = vmatpush1.msra.mxu0 %v1446
        %1731 = vmatprep.subr.mxu0 0.0
        %1732 = vmatpush1.msra.mxu0 %v1445
        %1733 = vmatprep.subr.mxu0 0.0
        %1734 = vmatpush1.msra.mxu0 %v1444
        %1735 = vmatprep.subr.mxu0 0.0
        %1736 = vmatpush1.msra.mxu0 %v1443
        %1737 = vmatprep.subr.mxu0 0.0
        %1738 = vmatpush1.msra.mxu0 %v1442
        %1739 = vmatprep.subr.mxu0 0.0
        %1740 = vmatpush2.msra.mxu0 0.0
        %1741 = vmatprep.subr.mxu0 0.0
        %1742 = vmatpush2.msra.mxu0 0.0
        %1743 = vmatprep.subr.mxu0 0.0
        %1744 = vmatpush2.msra.mxu0 0.0
        %1745 = vmatprep.subr.mxu0 0.0
        %1746 = vmatpush2.msra.mxu0 0.0
        %1747 = vmatprep.subr.mxu0 0.0
        %1748 = vmatpush2.msra.mxu0 0.0
        %1749 = vmatprep.subr.mxu0 0.0
        %1750 = vmatpush2.msra.mxu0 0.0
        %1751 = vmatprep.subr.mxu0 0.0
        %1752 = vmatpush2.msra.mxu0 0.0
        %1753 = vmatprep.subr.mxu0 0.0
        %1754 = vmatpush2.msra.mxu0 0.0
        %1755 = vmatprep.subr.mxu0 0.0
        %1756 = vmatpush2.msra.mxu0 0.0
        %1757 = vmatprep.subr.mxu0 0.0
        %1758 = vmatpush2.msra.mxu0 0.0
        %1759 = vmatprep.subr.mxu0 0.0
        %1760 = vmatpush2.msra.mxu0 0.0
        %1761 = vmatprep.subr.mxu0 0.0
        %1762 = vmatpush2.msra.mxu0 0.0
        %1763 = vmatprep.subr.mxu0 0.0
        %1764 = vmatpush2.msra.mxu0 0.0
        %1765 = vmatprep.subr.mxu0 0.0
        %1766 = vmatpush2.msra.mxu0 0.0
        %1767 = vmatprep.subr.mxu0 0.0
        %1768 = vmatpush2.msra.mxu0 0.0
        %1769 = vmatprep.subr.mxu0 0.0
        %1770 = vmatpush2.msra.mxu0 0.0
        %1771 = vmatprep.mubr.f32.mxu0 0.0
        %1772 = vmatmul.mubr.f32.gmra.mxu0 %v1702
        %v1773 = vpop.f32.mrf.mxu0
        %v1774 = vadd.f32 0.0, %v1773
        %v1775 = vpop.f32.mrf.mxu0
        %1776 = vmatprep.mubr.f32.mxu0 0.0
        %1777 = vmatmul.mubr.f32.gmra.mxu0 %v1705
        %v1778 = vpop.f32.mrf.mxu0
        %v1779 = vadd.f32 0.0, %v1778
        %v1780 = vpop.f32.mrf.mxu0
        %1781 = vdwg.mxu0
        %1782 = vmatprep.subr.mxu0 0.0
        %1783 = vmatpush1.msra.mxu0 0.0
        %1784 = vmatprep.subr.mxu0 0.0
        %1785 = vmatpush1.msra.mxu0 0.0
        %1786 = vmatprep.subr.mxu0 0.0
        %1787 = vmatpush1.msra.mxu0 0.0
        %1788 = vmatprep.subr.mxu0 0.0
        %1789 = vmatpush1.msra.mxu0 0.0
        %1790 = vmatprep.subr.mxu0 0.0
        %1791 = vmatpush1.msra.mxu0 0.0
        %1792 = vmatprep.subr.mxu0 0.0
        %1793 = vmatpush1.msra.mxu0 0.0
        %1794 = vmatprep.subr.mxu0 0.0
        %1795 = vmatpush1.msra.mxu0 0.0
        %1796 = vmatprep.subr.mxu0 0.0
        %1797 = vmatpush1.msra.mxu0 0.0
        %1798 = vmatprep.subr.mxu0 0.0
        %1799 = vmatpush1.msra.mxu0 0.0
        %1800 = vmatprep.subr.mxu0 0.0
        %1801 = vmatpush1.msra.mxu0 0.0
        %1802 = vmatprep.subr.mxu0 0.0
        %1803 = vmatpush1.msra.mxu0 0.0
        %1804 = vmatprep.subr.mxu0 0.0
        %1805 = vmatpush1.msra.mxu0 0.0
        %1806 = vmatprep.subr.mxu0 0.0
        %1807 = vmatpush1.msra.mxu0 0.0
        %1808 = vmatprep.subr.mxu0 0.0
        %1809 = vmatpush1.msra.mxu0 0.0
        %1810 = vmatprep.subr.mxu0 0.0
        %1811 = vmatpush1.msra.mxu0 0.0
        %1812 = vmatprep.subr.mxu0 0.0
        %1813 = vmatpush1.msra.mxu0 %v1146
        %1814 = vmatprep.subr.mxu0 0.0
        %1815 = vmatpush2.msra.mxu0 0.0
        %1816 = vmatprep.subr.mxu0 0.0
        %1817 = vmatpush2.msra.mxu0 0.0
        %1818 = vmatprep.subr.mxu0 0.0
        %1819 = vmatpush2.msra.mxu0 0.0
        %1820 = vmatprep.subr.mxu0 0.0
        %1821 = vmatpush2.msra.mxu0 0.0
        %1822 = vmatprep.subr.mxu0 0.0
        %1823 = vmatpush2.msra.mxu0 0.0
        %1824 = vmatprep.subr.mxu0 0.0
        %1825 = vmatpush2.msra.mxu0 0.0
        %1826 = vmatprep.subr.mxu0 0.0
        %1827 = vmatpush2.msra.mxu0 0.0
        %1828 = vmatprep.subr.mxu0 0.0
        %1829 = vmatpush2.msra.mxu0 0.0
        %1830 = vmatprep.subr.mxu0 0.0
        %1831 = vmatpush2.msra.mxu0 0.0
        %1832 = vmatprep.subr.mxu0 0.0
        %1833 = vmatpush2.msra.mxu0 0.0
        %1834 = vmatprep.subr.mxu0 0.0
        %1835 = vmatpush2.msra.mxu0 0.0
        %1836 = vmatprep.subr.mxu0 0.0
        %1837 = vmatpush2.msra.mxu0 0.0
        %1838 = vmatprep.subr.mxu0 0.0
        %1839 = vmatpush2.msra.mxu0 0.0
        %1840 = vmatprep.subr.mxu0 0.0
        %1841 = vmatpush2.msra.mxu0 0.0
        %1842 = vmatprep.subr.mxu0 0.0
        %1843 = vmatpush2.msra.mxu0 0.0
        %1844 = vmatprep.subr.mxu0 0.0
        %1845 = vmatpush2.msra.mxu0 0.0
        %1846 = vmatprep.mubr.f32.mxu0 0.0
        %1847 = vmatmul.mubr.f32.gmra.mxu0 %v1461
        %v1848 = vpop.f32.mrf.mxu0
        %v1849 = vadd.f32 %v1453, %v1848
        %v1850 = vpop.f32.mrf.mxu0
        %1851 = vmatprep.mubr.f32.mxu0 0.0
        %1852 = vmatmul.mubr.f32.gmra.mxu0 %v1464
        %v1853 = vpop.f32.mrf.mxu0
        %v1854 = vadd.f32 %v1458, %v1853
        %v1855 = vpop.f32.mrf.mxu0
        %1856 = vdwg.mxu0
        %v1857 = vmax.f32 %v1849, 0.0
        %v1858 = vmax.f32 %v1854, 0.0
        %v1860 = vsel %vm1151, %v1857, 0
        %v1863 = vsel %vm1151, %v1858, 0
        %1865 = vmatprep.subr.mxu0 0.0
        %1866 = vmatpush1.msra.mxu0 0.0
        %1867 = vmatprep.subr.mxu0 0.0
        %1868 = vmatpush1.msra.mxu0 0.0
        %1869 = vmatprep.subr.mxu0 0.0
        %1870 = vmatpush1.msra.mxu0 0.0
        %1871 = vmatprep.subr.mxu0 0.0
        %1872 = vmatpush1.msra.mxu0 0.0
        %1873 = vmatprep.subr.mxu0 0.0
        %1874 = vmatpush1.msra.mxu0 0.0
        %1875 = vmatprep.subr.mxu0 0.0
        %1876 = vmatpush1.msra.mxu0 0.0
        %1877 = vmatprep.subr.mxu0 0.0
        %1878 = vmatpush1.msra.mxu0 0.0
        %1879 = vmatprep.subr.mxu0 0.0
        %1880 = vmatpush1.msra.mxu0 0.0
        %1881 = vmatprep.subr.mxu0 0.0
        %1882 = vmatpush1.msra.mxu0 %v1449
        %1883 = vmatprep.subr.mxu0 0.0
        %1884 = vmatpush1.msra.mxu0 %v1448
        %1885 = vmatprep.subr.mxu0 0.0
        %1886 = vmatpush1.msra.mxu0 %v1447
        %1887 = vmatprep.subr.mxu0 0.0
        %1888 = vmatpush1.msra.mxu0 %v1446
        %1889 = vmatprep.subr.mxu0 0.0
        %1890 = vmatpush1.msra.mxu0 %v1445
        %1891 = vmatprep.subr.mxu0 0.0
        %1892 = vmatpush1.msra.mxu0 %v1444
        %1893 = vmatprep.subr.mxu0 0.0
        %1894 = vmatpush1.msra.mxu0 %v1443
        %1895 = vmatprep.subr.mxu0 0.0
        %1896 = vmatpush1.msra.mxu0 %v1442
        %1897 = vmatprep.subr.mxu0 0.0
        %1898 = vmatpush2.msra.mxu0 0.0
        %1899 = vmatprep.subr.mxu0 0.0
        %1900 = vmatpush2.msra.mxu0 0.0
        %1901 = vmatprep.subr.mxu0 0.0
        %1902 = vmatpush2.msra.mxu0 0.0
        %1903 = vmatprep.subr.mxu0 0.0
        %1904 = vmatpush2.msra.mxu0 0.0
        %1905 = vmatprep.subr.mxu0 0.0
        %1906 = vmatpush2.msra.mxu0 0.0
        %1907 = vmatprep.subr.mxu0 0.0
        %1908 = vmatpush2.msra.mxu0 0.0
        %1909 = vmatprep.subr.mxu0 0.0
        %1910 = vmatpush2.msra.mxu0 0.0
        %1911 = vmatprep.subr.mxu0 0.0
        %1912 = vmatpush2.msra.mxu0 0.0
        %1913 = vmatprep.subr.mxu0 0.0
        %1914 = vmatpush2.msra.mxu0 0.0
        %1915 = vmatprep.subr.mxu0 0.0
        %1916 = vmatpush2.msra.mxu0 0.0
        %1917 = vmatprep.subr.mxu0 0.0
        %1918 = vmatpush2.msra.mxu0 0.0
        %1919 = vmatprep.subr.mxu0 0.0
        %1920 = vmatpush2.msra.mxu0 0.0
        %1921 = vmatprep.subr.mxu0 0.0
        %1922 = vmatpush2.msra.mxu0 0.0
        %1923 = vmatprep.subr.mxu0 0.0
        %1924 = vmatpush2.msra.mxu0 0.0
        %1925 = vmatprep.subr.mxu0 0.0
        %1926 = vmatpush2.msra.mxu0 0.0
        %1927 = vmatprep.subr.mxu0 0.0
        %1928 = vmatpush2.msra.mxu0 0.0
        %1929 = vmatprep.mubr.f32.mxu0 0.0
        %1930 = vmatmul.mubr.f32.gmra.mxu0 %v1860
        %v1931 = vpop.f32.mrf.mxu0
        %v1932 = vadd.f32 0.0, %v1931
        %v1933 = vpop.f32.mrf.mxu0
        %1934 = vmatprep.mubr.f32.mxu0 0.0
        %1935 = vmatmul.mubr.f32.gmra.mxu0 %v1863
        %v1936 = vpop.f32.mrf.mxu0
        %v1937 = vadd.f32 0.0, %v1936
        %v1938 = vpop.f32.mrf.mxu0
        %1939 = vdwg.mxu0
        %v1940 = vsub.f32 %v1774, %v1932
        %v1941 = vsub.f32 %v1779, %v1937
        %v1942 = vand.u32 2147483647, %v1940
        %v1943 = vand.u32 2147483647, %v1941
        %vm1944 = vcmask 130048
        %v1945 = vsel %vm1944, %v1942, 0.0
        %v1946 = vsel %vm1944, %v1943, 0.0
        %v1947 = vadd.f32 %v1945, %v1946
        %1948 = vadd.xlane.f32.xlu0 %v1947
        %v1949 = vpop.xlane.xlu0 %1948
        %v1950 = vrot.slane %v1949, 4
        %v1951 = vadd.f32 %v1949, %v1950
        %v1952 = vrot.slane %v1951, 2
        %v1953 = vadd.f32 %v1951, %v1952
        %v1954 = vrot.slane %v1953, 1
        %v1955 = vadd.f32 %v1953, %v1954
        %s1956 = vtos %v1955
        %v1957 = vrcp.pop 512.0
        %s1958 = vtos %v1957
        %s1959 = smul.f32 %s1956, %s1958
        %s1960 = sadd.f32 %s1181, %s1959
        %v1961 = vsub.f32 %v1616, %v1932
        %v1962 = vsub.f32 %v1621, %v1937
        %v1963 = vand.u32 2147483647, %v1961
        %v1964 = vand.u32 2147483647, %v1962
        %v1965 = vsel %vm1944, %v1963, 0.0
        %v1966 = vsel %vm1944, %v1964, 0.0
        %v1967 = vadd.f32 %v1965, %v1966
        %1968 = vadd.xlane.f32.xlu0 %v1967
        %v1969 = vpop.xlane.xlu0 %1968
        %v1970 = vrot.slane %v1969, 4
        %v1971 = vadd.f32 %v1969, %v1970
        %v1972 = vrot.slane %v1971, 2
        %v1973 = vadd.f32 %v1971, %v1972
        %v1974 = vrot.slane %v1973, 1
        %v1975 = vadd.f32 %v1973, %v1974
        %s1976 = vtos %v1975
        %v1977 = vrcp.pop 512.0
        %s1978 = vtos %v1977
        %s1979 = smul.f32 %s1976, %s1978
        %s1980 = sadd.f32 %s1960, %s1979
        %v1982 = vsel %vm1944, %v1616, 0
        %v1985 = vsel %vm1944, %v1621, 0
        %1987 = vmatprep.subr.mxu0 0.0
        %1988 = vmatpush1.xpose.msra.mxu0 0.0
        %1989 = vmatprep.subr.mxu0 0.0
        %1990 = vmatpush1.xpose.msra.mxu0 0.0
        %1991 = vmatprep.subr.mxu0 0.0
        %1992 = vmatpush1.xpose.msra.mxu0 0.0
        %1993 = vmatprep.subr.mxu0 0.0
        %1994 = vmatpush1.xpose.msra.mxu0 0.0
        %1995 = vmatprep.subr.mxu0 0.0
        %1996 = vmatpush1.xpose.msra.mxu0 0.0
        %1997 = vmatprep.subr.mxu0 0.0
        %1998 = vmatpush1.xpose.msra.mxu0 0.0
        %1999 = vmatprep.subr.mxu0 0.0
        %2000 = vmatpush1.xpose.msra.mxu0 0.0
        %2001 = vmatprep.subr.mxu0 0.0
        %2002 = vmatpush1.xpose.msra.mxu0 0.0
        %2003 = vmatprep.subr.mxu0 0.0
        %2004 = vmatpush1.xpose.msra.mxu0 0.0
        %2005 = vmatprep.subr.mxu0 0.0
        %2006 = vmatpush1.xpose.msra.mxu0 0.0
        %2007 = vmatprep.subr.mxu0 0.0
        %2008 = vmatpush1.xpose.msra.mxu0 0.0
        %2009 = vmatprep.subr.mxu0 0.0
        %2010 = vmatpush1.xpose.msra.mxu0 0.0
        %2011 = vmatprep.subr.mxu0 0.0
        %2012 = vmatpush1.xpose.msra.mxu0 0.0
        %2013 = vmatprep.subr.mxu0 0.0
        %2014 = vmatpush1.xpose.msra.mxu0 0.0
        %2015 = vmatprep.subr.mxu0 0.0
        %2016 = vmatpush1.xpose.msra.mxu0 %v1985
        %2017 = vmatprep.subr.mxu0 0.0
        %2018 = vmatpush1.xpose.msra.mxu0 %v1982
        %2019 = vmatprep.subr.mxu0 0.0
        %2020 = vmatpush2.xpose.msra.mxu0 0.0
        %2021 = vmatprep.subr.mxu0 0.0
        %2022 = vmatpush2.xpose.msra.mxu0 0.0
        %2023 = vmatprep.subr.mxu0 0.0
        %2024 = vmatpush2.xpose.msra.mxu0 0.0
        %2025 = vmatprep.subr.mxu0 0.0
        %2026 = vmatpush2.xpose.msra.mxu0 0.0
        %2027 = vmatprep.subr.mxu0 0.0
        %2028 = vmatpush2.xpose.msra.mxu0 0.0
        %2029 = vmatprep.subr.mxu0 0.0
        %2030 = vmatpush2.xpose.msra.mxu0 0.0
        %2031 = vmatprep.subr.mxu0 0.0
        %2032 = vmatpush2.xpose.msra.mxu0 0.0
        %2033 = vmatprep.subr.mxu0 0.0
        %2034 = vmatpush2.xpose.msra.mxu0 0.0
        %2035 = vmatprep.subr.mxu0 0.0
        %2036 = vmatpush2.xpose.msra.mxu0 0.0
        %2037 = vmatprep.subr.mxu0 0.0
        %2038 = vmatpush2.xpose.msra.mxu0 0.0
        %2039 = vmatprep.subr.mxu0 0.0
        %2040 = vmatpush2.xpose.msra.mxu0 0.0
        %2041 = vmatprep.subr.mxu0 0.0
        %2042 = vmatpush2.xpose.msra.mxu0 0.0
        %2043 = vmatprep.subr.mxu0 0.0
        %2044 = vmatpush2.xpose.msra.mxu0 0.0
        %2045 = vmatprep.subr.mxu0 0.0
        %2046 = vmatpush2.xpose.msra.mxu0 0.0
        %2047 = vmatprep.subr.mxu0 0.0
        %2048 = vmatpush2.xpose.msra.mxu0 0.0
        %2049 = vmatprep.subr.mxu0 0.0
        %2050 = vmatpush2.xpose.msra.mxu0 0.0
        %2051 = vmatprep.mubr.f32.mxu0 0.0
        %2052 = vmatmul.mubr.f32.gmra.mxu0 %v1982
        %v2053 = vpop.f32.mrf.mxu0
        %v2054 = vadd.f32 0.0, %v2053
        %v2055 = vpop.f32.mrf.mxu0
        %2056 = vmatprep.mubr.f32.mxu0 0.0
        %2057 = vmatmul.mubr.f32.gmra.mxu0 %v1985
        %v2058 = vpop.f32.mrf.mxu0
        %v2059 = vadd.f32 0.0, %v2058
        %v2060 = vpop.f32.mrf.mxu0
        %2061 = vdwg.mxu0
        %v2062 = vrcp.pop 256.0
        %v2063 = vmul.f32 %v2054, %v2062
        %v2064 = vmul.f32 %v2059, %v2062
        %v2066 = vsel %vm1944, %v1774, 0
        %v2069 = vsel %vm1944, %v1779, 0
        %2071 = vmatprep.subr.mxu0 0.0
        %2072 = vmatpush1.xpose.msra.mxu0 0.0
        %2073 = vmatprep.subr.mxu0 0.0
        %2074 = vmatpush1.xpose.msra.mxu0 0.0
        %2075 = vmatprep.subr.mxu0 0.0
        %2076 = vmatpush1.xpose.msra.mxu0 0.0
        %2077 = vmatprep.subr.mxu0 0.0
        %2078 = vmatpush1.xpose.msra.mxu0 0.0
        %2079 = vmatprep.subr.mxu0 0.0
        %2080 = vmatpush1.xpose.msra.mxu0 0.0
        %2081 = vmatprep.subr.mxu0 0.0
        %2082 = vmatpush1.xpose.msra.mxu0 0.0
        %2083 = vmatprep.subr.mxu0 0.0
        %2084 = vmatpush1.xpose.msra.mxu0 0.0
        %2085 = vmatprep.subr.mxu0 0.0
        %2086 = vmatpush1.xpose.msra.mxu0 0.0
        %2087 = vmatprep.subr.mxu0 0.0
        %2088 = vmatpush1.xpose.msra.mxu0 0.0
        %2089 = vmatprep.subr.mxu0 0.0
        %2090 = vmatpush1.xpose.msra.mxu0 0.0
        %2091 = vmatprep.subr.mxu0 0.0
        %2092 = vmatpush1.xpose.msra.mxu0 0.0
        %2093 = vmatprep.subr.mxu0 0.0
        %2094 = vmatpush1.xpose.msra.mxu0 0.0
        %2095 = vmatprep.subr.mxu0 0.0
        %2096 = vmatpush1.xpose.msra.mxu0 0.0
        %2097 = vmatprep.subr.mxu0 0.0
        %2098 = vmatpush1.xpose.msra.mxu0 0.0
        %2099 = vmatprep.subr.mxu0 0.0
        %2100 = vmatpush1.xpose.msra.mxu0 %v2069
        %2101 = vmatprep.subr.mxu0 0.0
        %2102 = vmatpush1.xpose.msra.mxu0 %v2066
        %2103 = vmatprep.subr.mxu0 0.0
        %2104 = vmatpush2.xpose.msra.mxu0 0.0
        %2105 = vmatprep.subr.mxu0 0.0
        %2106 = vmatpush2.xpose.msra.mxu0 0.0
        %2107 = vmatprep.subr.mxu0 0.0
        %2108 = vmatpush2.xpose.msra.mxu0 0.0
        %2109 = vmatprep.subr.mxu0 0.0
        %2110 = vmatpush2.xpose.msra.mxu0 0.0
        %2111 = vmatprep.subr.mxu0 0.0
        %2112 = vmatpush2.xpose.msra.mxu0 0.0
        %2113 = vmatprep.subr.mxu0 0.0
        %2114 = vmatpush2.xpose.msra.mxu0 0.0
        %2115 = vmatprep.subr.mxu0 0.0
        %2116 = vmatpush2.xpose.msra.mxu0 0.0
        %2117 = vmatprep.subr.mxu0 0.0
        %2118 = vmatpush2.xpose.msra.mxu0 0.0
        %2119 = vmatprep.subr.mxu0 0.0
        %2120 = vmatpush2.xpose.msra.mxu0 0.0
        %2121 = vmatprep.subr.mxu0 0.0
        %2122 = vmatpush2.xpose.msra.mxu0 0.0
        %2123 = vmatprep.subr.mxu0 0.0
        %2124 = vmatpush2.xpose.msra.mxu0 0.0
        %2125 = vmatprep.subr.mxu0 0.0
        %2126 = vmatpush2.xpose.msra.mxu0 0.0
        %2127 = vmatprep.subr.mxu0 0.0
        %2128 = vmatpush2.xpose.msra.mxu0 0.0
        %2129 = vmatprep.subr.mxu0 0.0
        %2130 = vmatpush2.xpose.msra.mxu0 0.0
        %2131 = vmatprep.subr.mxu0 0.0
        %2132 = vmatpush2.xpose.msra.mxu0 0.0
        %2133 = vmatprep.subr.mxu0 0.0
        %2134 = vmatpush2.xpose.msra.mxu0 0.0
        %2135 = vmatprep.mubr.f32.mxu0 0.0
        %2136 = vmatmul.mubr.f32.gmra.mxu0 %v2066
        %v2137 = vpop.f32.mrf.mxu0
        %v2138 = vadd.f32 0.0, %v2137
        %v2139 = vpop.f32.mrf.mxu0
        %2140 = vmatprep.mubr.f32.mxu0 0.0
        %2141 = vmatmul.mubr.f32.gmra.mxu0 %v2069
        %v2142 = vpop.f32.mrf.mxu0
        %v2143 = vadd.f32 0.0, %v2142
        %v2144 = vpop.f32.mrf.mxu0
        %2145 = vdwg.mxu0
        %v2146 = vmul.f32 %v2138, %v2062
        %v2147 = vmul.f32 %v2143, %v2062
        %v2149 = vsel %vm1944, %v1932, 0
        %v2152 = vsel %vm1944, %v1937, 0
        %2154 = vmatprep.subr.mxu0 0.0
        %2155 = vmatpush1.xpose.msra.mxu0 0.0
        %2156 = vmatprep.subr.mxu0 0.0
        %2157 = vmatpush1.xpose.msra.mxu0 0.0
        %2158 = vmatprep.subr.mxu0 0.0
        %2159 = vmatpush1.xpose.msra.mxu0 0.0
        %2160 = vmatprep.subr.mxu0 0.0
        %2161 = vmatpush1.xpose.msra.mxu0 0.0
        %2162 = vmatprep.subr.mxu0 0.0
        %2163 = vmatpush1.xpose.msra.mxu0 0.0
        %2164 = vmatprep.subr.mxu0 0.0
        %2165 = vmatpush1.xpose.msra.mxu0 0.0
        %2166 = vmatprep.subr.mxu0 0.0
        %2167 = vmatpush1.xpose.msra.mxu0 0.0
        %2168 = vmatprep.subr.mxu0 0.0
        %2169 = vmatpush1.xpose.msra.mxu0 0.0
        %2170 = vmatprep.subr.mxu0 0.0
        %2171 = vmatpush1.xpose.msra.mxu0 0.0
        %2172 = vmatprep.subr.mxu0 0.0
        %2173 = vmatpush1.xpose.msra.mxu0 0.0
        %2174 = vmatprep.subr.mxu0 0.0
        %2175 = vmatpush1.xpose.msra.mxu0 0.0
        %2176 = vmatprep.subr.mxu0 0.0
        %2177 = vmatpush1.xpose.msra.mxu0 0.0
        %2178 = vmatprep.subr.mxu0 0.0
        %2179 = vmatpush1.xpose.msra.mxu0 0.0
        %2180 = vmatprep.subr.mxu0 0.0
        %2181 = vmatpush1.xpose.msra.mxu0 0.0
        %2182 = vmatprep.subr.mxu0 0.0
        %2183 = vmatpush1.xpose.msra.mxu0 %v2152
        %2184 = vmatprep.subr.mxu0 0.0
        %2185 = vmatpush1.xpose.msra.mxu0 %v2149
        %2186 = vmatprep.subr.mxu0 0.0
        %2187 = vmatpush2.xpose.msra.mxu0 0.0
        %2188 = vmatprep.subr.mxu0 0.0
        %2189 = vmatpush2.xpose.msra.mxu0 0.0
        %2190 = vmatprep.subr.mxu0 0.0
        %2191 = vmatpush2.xpose.msra.mxu0 0.0
        %2192 = vmatprep.subr.mxu0 0.0
        %2193 = vmatpush2.xpose.msra.mxu0 0.0
        %2194 = vmatprep.subr.mxu0 0.0
        %2195 = vmatpush2.xpose.msra.mxu0 0.0
        %2196 = vmatprep.subr.mxu0 0.0
        %2197 = vmatpush2.xpose.msra.mxu0 0.0
        %2198 = vmatprep.subr.mxu0 0.0
        %2199 = vmatpush2.xpose.msra.mxu0 0.0
        %2200 = vmatprep.subr.mxu0 0.0
        %2201 = vmatpush2.xpose.msra.mxu0 0.0
        %2202 = vmatprep.subr.mxu0 0.0
        %2203 = vmatpush2.xpose.msra.mxu0 0.0
        %2204 = vmatprep.subr.mxu0 0.0
        %2205 = vmatpush2.xpose.msra.mxu0 0.0
        %2206 = vmatprep.subr.mxu0 0.0
        %2207 = vmatpush2.xpose.msra.mxu0 0.0
        %2208 = vmatprep.subr.mxu0 0.0
        %2209 = vmatpush2.xpose.msra.mxu0 0.0
        %2210 = vmatprep.subr.mxu0 0.0
        %2211 = vmatpush2.xpose.msra.mxu0 0.0
        %2212 = vmatprep.subr.mxu0 0.0
        %2213 = vmatpush2.xpose.msra.mxu0 0.0
        %2214 = vmatprep.subr.mxu0 0.0
        %2215 = vmatpush2.xpose.msra.mxu0 0.0
        %2216 = vmatprep.subr.mxu0 0.0
        %2217 = vmatpush2.xpose.msra.mxu0 0.0
        %2218 = vmatprep.mubr.f32.mxu0 0.0
        %2219 = vmatmul.mubr.f32.gmra.mxu0 %v2149
        %v2220 = vpop.f32.mrf.mxu0
        %v2221 = vadd.f32 0.0, %v2220
        %v2222 = vpop.f32.mrf.mxu0
        %2223 = vmatprep.mubr.f32.mxu0 0.0
        %2224 = vmatmul.mubr.f32.gmra.mxu0 %v2152
        %v2225 = vpop.f32.mrf.mxu0
        %v2226 = vadd.f32 0.0, %v2225
        %v2227 = vpop.f32.mrf.mxu0
        %2228 = vdwg.mxu0
        %v2229 = vmul.f32 %v2221, %v2062
        %v2230 = vmul.f32 %v2226, %v2062
        %v2231 = vsub.f32 %v2146, %v2229
        %v2232 = vsub.f32 %v2147, %v2230
        %v2233 = vand.u32 2147483647, %v2231
        %v2234 = vand.u32 2147483647, %v2232
        %v2235 = vsel %vm1944, %v2233, 0.0
        %v2236 = vsel %vm1944, %v2234, 0.0
        %v2237 = vadd.f32 %v2235, %v2236
        %2238 = vadd.xlane.f32.xlu0 %v2237
        %v2239 = vpop.xlane.xlu0 %2238
        %v2240 = vrot.slane %v2239, 4
        %v2241 = vadd.f32 %v2239, %v2240
        %v2242 = vrot.slane %v2241, 2
        %v2243 = vadd.f32 %v2241, %v2242
        %v2244 = vrot.slane %v2243, 1
        %v2245 = vadd.f32 %v2243, %v2244
        %s2246 = vtos %v2245
        %v2247 = vrcp.pop 512.0
        %s2248 = vtos %v2247
        %s2249 = smul.f32 %s2246, %s2248
        %s2250 = sadd.f32 %s1437, %s2249
        %v2251 = vsub.f32 %v2063, %v2229
        %v2252 = vsub.f32 %v2064, %v2230
        %v2253 = vand.u32 2147483647, %v2251
        %v2254 = vand.u32 2147483647, %v2252
        %v2255 = vsel %vm1944, %v2253, 0.0
        %v2256 = vsel %vm1944, %v2254, 0.0
        %v2257 = vadd.f32 %v2255, %v2256
        %2258 = vadd.xlane.f32.xlu0 %v2257
        %v2259 = vpop.xlane.xlu0 %2258
        %v2260 = vrot.slane %v2259, 4
        %v2261 = vadd.f32 %v2259, %v2260
        %v2262 = vrot.slane %v2261, 2
        %v2263 = vadd.f32 %v2261, %v2262
        %v2264 = vrot.slane %v2263, 1
        %v2265 = vadd.f32 %v2263, %v2264
        %s2266 = vtos %v2265
        %v2267 = vrcp.pop 512.0
        %s2268 = vtos %v2267
        %s2269 = smul.f32 %s2266, %s2268
        %s2270 = sadd.f32 %s2250, %s2269
        %v2271 = vld [vmem:[%s11] sm:$0xff]
        %v2272 = vld [vmem:[%s11 + $0x8] sm:$0xff]
        %v2273 = vld [vmem:[%s11 + $0x10] sm:$0xff]
        %v2274 = vld [vmem:[%s11 + $0x18] sm:$0xff]
        %v2275 = vld [vmem:[%s12] sm:$0xff]
        %v2276 = vld [vmem:[%s12 + $0x8] sm:$0xff]
        %v2277 = vld [vmem:[%s12 + $0x10] sm:$0xff]
        %v2278 = vld [vmem:[%s12 + $0x18] sm:$0xff]
        %v2279 = vld [vmem:[%s13] sm:$0xff]
        %v2280 = vld [vmem:[%s13 + $0x8] sm:$0xff]
        %2282 = vset.pattern.permute.xlu0 0
        %2283 = vperm.xlu0 %2282, %v2275
        %v2284 = vpop.permute.xlu0 %2283
        %2287 = vset.pattern.permute.xlu0 0
        %2288 = vperm.xlu0 %2287, %v2276
        %v2289 = vpop.permute.xlu0 %2288
        %2292 = vset.pattern.permute.xlu0 0
        %2293 = vperm.xlu0 %2292, %v2277
        %v2294 = vpop.permute.xlu0 %2293
        %2297 = vset.pattern.permute.xlu0 0
        %2298 = vperm.xlu0 %2297, %v2278
        %v2299 = vpop.permute.xlu0 %2298
        %v2302 = vsel %vm1944, %v2271, 0
        %v2305 = vsel %vm1944, %v2272, 0
        %v2308 = vsel %vm1944, %v2273, 0
        %v2311 = vsel %vm1944, %v2274, 0
        %2313 = vmatprep.subr.mxu0 0.0
        %2314 = vmatpush1.msra.mxu0 0.0
        %2315 = vmatprep.subr.mxu0 0.0
        %2316 = vmatpush1.msra.mxu0 0.0
        %2317 = vmatprep.subr.mxu0 0.0
        %2318 = vmatpush1.msra.mxu0 0.0
        %2319 = vmatprep.subr.mxu0 0.0
        %2320 = vmatpush1.msra.mxu0 0.0
        %2321 = vmatprep.subr.mxu0 0.0
        %2322 = vmatpush1.msra.mxu0 0.0
        %2323 = vmatprep.subr.mxu0 0.0
        %2324 = vmatpush1.msra.mxu0 0.0
        %2325 = vmatprep.subr.mxu0 0.0
        %2326 = vmatpush1.msra.mxu0 0.0
        %2327 = vmatprep.subr.mxu0 0.0
        %2328 = vmatpush1.msra.mxu0 0.0
        %2329 = vmatprep.subr.mxu0 0.0
        %2330 = vmatpush1.msra.mxu0 0.0
        %2331 = vmatprep.subr.mxu0 0.0
        %2332 = vmatpush1.msra.mxu0 0.0
        %2333 = vmatprep.subr.mxu0 0.0
        %2334 = vmatpush1.msra.mxu0 0.0
        %2335 = vmatprep.subr.mxu0 0.0
        %2336 = vmatpush1.msra.mxu0 0.0
        %2337 = vmatprep.subr.mxu0 0.0
        %2338 = vmatpush1.msra.mxu0 0.0
        %2339 = vmatprep.subr.mxu0 0.0
        %2340 = vmatpush1.msra.mxu0 0.0
        %2341 = vmatprep.subr.mxu0 0.0
        %2342 = vmatpush1.msra.mxu0 %v1621
        %2343 = vmatprep.subr.mxu0 0.0
        %2344 = vmatpush1.msra.mxu0 %v1616
        %2345 = vmatprep.subr.mxu0 0.0
        %2346 = vmatpush2.msra.mxu0 0.0
        %2347 = vmatprep.subr.mxu0 0.0
        %2348 = vmatpush2.msra.mxu0 0.0
        %2349 = vmatprep.subr.mxu0 0.0
        %2350 = vmatpush2.msra.mxu0 0.0
        %2351 = vmatprep.subr.mxu0 0.0
        %2352 = vmatpush2.msra.mxu0 0.0
        %2353 = vmatprep.subr.mxu0 0.0
        %2354 = vmatpush2.msra.mxu0 0.0
        %2355 = vmatprep.subr.mxu0 0.0
        %2356 = vmatpush2.msra.mxu0 0.0
        %2357 = vmatprep.subr.mxu0 0.0
        %2358 = vmatpush2.msra.mxu0 0.0
        %2359 = vmatprep.subr.mxu0 0.0
        %2360 = vmatpush2.msra.mxu0 0.0
        %2361 = vmatprep.subr.mxu0 0.0
        %2362 = vmatpush2.msra.mxu0 0.0
        %2363 = vmatprep.subr.mxu0 0.0
        %2364 = vmatpush2.msra.mxu0 0.0
        %2365 = vmatprep.subr.mxu0 0.0
        %2366 = vmatpush2.msra.mxu0 0.0
        %2367 = vmatprep.subr.mxu0 0.0
        %2368 = vmatpush2.msra.mxu0 0.0
        %2369 = vmatprep.subr.mxu0 0.0
        %2370 = vmatpush2.msra.mxu0 0.0
        %2371 = vmatprep.subr.mxu0 0.0
        %2372 = vmatpush2.msra.mxu0 0.0
        %2373 = vmatprep.subr.mxu0 0.0
        %2374 = vmatpush2.msra.mxu0 0.0
        %2375 = vmatprep.subr.mxu0 0.0
        %2376 = vmatpush2.msra.mxu0 0.0
        %2377 = vmatprep.mubr.f32.mxu0 0.0
        %2378 = vmatmul.mubr.f32.gmra.mxu0 %v2302
        %v2379 = vpop.f32.mrf.mxu0
        %v2380 = vadd.f32 %v2284, %v2379
        %v2381 = vpop.f32.mrf.mxu0
        %2382 = vmatprep.mubr.f32.mxu0 0.0
        %2383 = vmatmul.mubr.f32.gmra.mxu0 %v2305
        %v2384 = vpop.f32.mrf.mxu0
        %v2385 = vadd.f32 %v2289, %v2384
        %v2386 = vpop.f32.mrf.mxu0
        %2387 = vmatprep.mubr.f32.mxu0 0.0
        %2388 = vmatmul.mubr.f32.gmra.mxu0 %v2308
        %v2389 = vpop.f32.mrf.mxu0
        %v2390 = vadd.f32 %v2294, %v2389
        %v2391 = vpop.f32.mrf.mxu0
        %2392 = vmatprep.mubr.f32.mxu0 0.0
        %2393 = vmatmul.mubr.f32.gmra.mxu0 %v2311
        %v2394 = vpop.f32.mrf.mxu0
        %v2395 = vadd.f32 %v2299, %v2394
        %v2396 = vpop.f32.mrf.mxu0
        %2397 = vdwg.mxu0
        %v2398 = vmax.f32 %v2380, 0.0
        %v2399 = vmax.f32 %v2385, 0.0
        %v2400 = vmax.f32 %v2390, 0.0
        %v2401 = vmax.f32 %v2395, 0.0
        %v2403 = vsel %vm1944, %v2398, 0
        %v2406 = vsel %vm1944, %v2399, 0
        %v2409 = vsel %vm1944, %v2400, 0
        %v2412 = vsel %vm1944, %v2401, 0
        %2414 = vmatprep.subr.mxu0 0.0
        %2415 = vmatpush1.msra.mxu0 0.0
        %2416 = vmatprep.subr.mxu0 0.0
        %2417 = vmatpush1.msra.mxu0 0.0
        %2418 = vmatprep.subr.mxu0 0.0
        %2419 = vmatpush1.msra.mxu0 0.0
        %2420 = vmatprep.subr.mxu0 0.0
        %2421 = vmatpush1.msra.mxu0 0.0
        %2422 = vmatprep.subr.mxu0 0.0
        %2423 = vmatpush1.msra.mxu0 0.0
        %2424 = vmatprep.subr.mxu0 0.0
        %2425 = vmatpush1.msra.mxu0 0.0
        %2426 = vmatprep.subr.mxu0 0.0
        %2427 = vmatpush1.msra.mxu0 0.0
        %2428 = vmatprep.subr.mxu0 0.0
        %2429 = vmatpush1.msra.mxu0 0.0
        %2430 = vmatprep.subr.mxu0 0.0
        %2431 = vmatpush1.msra.mxu0 0.0
        %2432 = vmatprep.subr.mxu0 0.0
        %2433 = vmatpush1.msra.mxu0 0.0
        %2434 = vmatprep.subr.mxu0 0.0
        %2435 = vmatpush1.msra.mxu0 0.0
        %2436 = vmatprep.subr.mxu0 0.0
        %2437 = vmatpush1.msra.mxu0 0.0
        %2438 = vmatprep.subr.mxu0 0.0
        %2439 = vmatpush1.msra.mxu0 0.0
        %2440 = vmatprep.subr.mxu0 0.0
        %2441 = vmatpush1.msra.mxu0 0.0
        %2442 = vmatprep.subr.mxu0 0.0
        %2443 = vmatpush1.msra.mxu0 %v2280
        %2444 = vmatprep.subr.mxu0 0.0
        %2445 = vmatpush1.msra.mxu0 %v2279
        %2446 = vmatprep.subr.mxu0 0.0
        %2447 = vmatpush2.msra.mxu0 0.0
        %2448 = vmatprep.subr.mxu0 0.0
        %2449 = vmatpush2.msra.mxu0 0.0
        %2450 = vmatprep.subr.mxu0 0.0
        %2451 = vmatpush2.msra.mxu0 0.0
        %2452 = vmatprep.subr.mxu0 0.0
        %2453 = vmatpush2.msra.mxu0 0.0
        %2454 = vmatprep.subr.mxu0 0.0
        %2455 = vmatpush2.msra.mxu0 0.0
        %2456 = vmatprep.subr.mxu0 0.0
        %2457 = vmatpush2.msra.mxu0 0.0
        %2458 = vmatprep.subr.mxu0 0.0
        %2459 = vmatpush2.msra.mxu0 0.0
        %2460 = vmatprep.subr.mxu0 0.0
        %2461 = vmatpush2.msra.mxu0 0.0
        %2462 = vmatprep.subr.mxu0 0.0
        %2463 = vmatpush2.msra.mxu0 0.0
        %2464 = vmatprep.subr.mxu0 0.0
        %2465 = vmatpush2.msra.mxu0 0.0
        %2466 = vmatprep.subr.mxu0 0.0
        %2467 = vmatpush2.msra.mxu0 0.0
        %2468 = vmatprep.subr.mxu0 0.0
        %2469 = vmatpush2.msra.mxu0 0.0
        %2470 = vmatprep.subr.mxu0 0.0
        %2471 = vmatpush2.msra.mxu0 0.0
        %2472 = vmatprep.subr.mxu0 0.0
        %2473 = vmatpush2.msra.mxu0 0.0
        %2474 = vmatprep.subr.mxu0 0.0
        %2475 = vmatpush2.msra.mxu0 0.0
        %2476 = vmatprep.subr.mxu0 0.0
        %2477 = vmatpush2.msra.mxu0 0.0
        %2478 = vmatprep.mubr.f32.mxu0 0.0
        %2479 = vmatmul.mubr.f32.gmra.mxu0 %v2403
        %v2480 = vpop.f32.mrf.mxu0
        %v2481 = vadd.f32 0.0, %v2480
        %v2482 = vpop.f32.mrf.mxu0
        %2483 = vmatprep.mubr.f32.mxu0 0.0
        %2484 = vmatmul.mubr.f32.gmra.mxu0 %v2406
        %v2485 = vpop.f32.mrf.mxu0
        %v2486 = vadd.f32 0.0, %v2485
        %v2487 = vpop.f32.mrf.mxu0
        %2488 = vmatprep.mubr.f32.mxu0 0.0
        %2489 = vmatmul.mubr.f32.gmra.mxu0 %v2409
        %v2490 = vpop.f32.mrf.mxu0
        %v2491 = vadd.f32 0.0, %v2490
        %v2492 = vpop.f32.mrf.mxu0
        %2493 = vmatprep.mubr.f32.mxu0 0.0
        %2494 = vmatmul.mubr.f32.gmra.mxu0 %v2412
        %v2495 = vpop.f32.mrf.mxu0
        %v2496 = vadd.f32 0.0, %v2495
        %v2497 = vpop.f32.mrf.mxu0
        %2498 = vdwg.mxu0
        %2499 = vmatprep.subr.mxu0 0.0
        %2500 = vmatpush1.msra.mxu0 0.0
        %2501 = vmatprep.subr.mxu0 0.0
        %2502 = vmatpush1.msra.mxu0 0.0
        %2503 = vmatprep.subr.mxu0 0.0
        %2504 = vmatpush1.msra.mxu0 0.0
        %2505 = vmatprep.subr.mxu0 0.0
        %2506 = vmatpush1.msra.mxu0 0.0
        %2507 = vmatprep.subr.mxu0 0.0
        %2508 = vmatpush1.msra.mxu0 0.0
        %2509 = vmatprep.subr.mxu0 0.0
        %2510 = vmatpush1.msra.mxu0 0.0
        %2511 = vmatprep.subr.mxu0 0.0
        %2512 = vmatpush1.msra.mxu0 0.0
        %2513 = vmatprep.subr.mxu0 0.0
        %2514 = vmatpush1.msra.mxu0 0.0
        %2515 = vmatprep.subr.mxu0 0.0
        %2516 = vmatpush1.msra.mxu0 0.0
        %2517 = vmatprep.subr.mxu0 0.0
        %2518 = vmatpush1.msra.mxu0 0.0
        %2519 = vmatprep.subr.mxu0 0.0
        %2520 = vmatpush1.msra.mxu0 0.0
        %2521 = vmatprep.subr.mxu0 0.0
        %2522 = vmatpush1.msra.mxu0 0.0
        %2523 = vmatprep.subr.mxu0 0.0
        %2524 = vmatpush1.msra.mxu0 0.0
        %2525 = vmatprep.subr.mxu0 0.0
        %2526 = vmatpush1.msra.mxu0 0.0
        %2527 = vmatprep.subr.mxu0 0.0
        %2528 = vmatpush1.msra.mxu0 %v1779
        %2529 = vmatprep.subr.mxu0 0.0
        %2530 = vmatpush1.msra.mxu0 %v1774
        %2531 = vmatprep.subr.mxu0 0.0
        %2532 = vmatpush2.msra.mxu0 0.0
        %2533 = vmatprep.subr.mxu0 0.0
        %2534 = vmatpush2.msra.mxu0 0.0
        %2535 = vmatprep.subr.mxu0 0.0
        %2536 = vmatpush2.msra.mxu0 0.0
        %2537 = vmatprep.subr.mxu0 0.0
        %2538 = vmatpush2.msra.mxu0 0.0
        %2539 = vmatprep.subr.mxu0 0.0
        %2540 = vmatpush2.msra.mxu0 0.0
        %2541 = vmatprep.subr.mxu0 0.0
        %2542 = vmatpush2.msra.mxu0 0.0
        %2543 = vmatprep.subr.mxu0 0.0
        %2544 = vmatpush2.msra.mxu0 0.0
        %2545 = vmatprep.subr.mxu0 0.0
        %2546 = vmatpush2.msra.mxu0 0.0
        %2547 = vmatprep.subr.mxu0 0.0
        %2548 = vmatpush2.msra.mxu0 0.0
        %2549 = vmatprep.subr.mxu0 0.0
        %2550 = vmatpush2.msra.mxu0 0.0
        %2551 = vmatprep.subr.mxu0 0.0
        %2552 = vmatpush2.msra.mxu0 0.0
        %2553 = vmatprep.subr.mxu0 0.0
        %2554 = vmatpush2.msra.mxu0 0.0
        %2555 = vmatprep.subr.mxu0 0.0
        %2556 = vmatpush2.msra.mxu0 0.0
        %2557 = vmatprep.subr.mxu0 0.0
        %2558 = vmatpush2.msra.mxu0 0.0
        %2559 = vmatprep.subr.mxu0 0.0
        %2560 = vmatpush2.msra.mxu0 0.0
        %2561 = vmatprep.subr.mxu0 0.0
        %2562 = vmatpush2.msra.mxu0 0.0
        %2563 = vmatprep.mubr.f32.mxu0 0.0
        %2564 = vmatmul.mubr.f32.gmra.mxu0 %v2302
        %v2565 = vpop.f32.mrf.mxu0
        %v2566 = vadd.f32 %v2284, %v2565
        %v2567 = vpop.f32.mrf.mxu0
        %2568 = vmatprep.mubr.f32.mxu0 0.0
        %2569 = vmatmul.mubr.f32.gmra.mxu0 %v2305
        %v2570 = vpop.f32.mrf.mxu0
        %v2571 = vadd.f32 %v2289, %v2570
        %v2572 = vpop.f32.mrf.mxu0
        %2573 = vmatprep.mubr.f32.mxu0 0.0
        %2574 = vmatmul.mubr.f32.gmra.mxu0 %v2308
        %v2575 = vpop.f32.mrf.mxu0
        %v2576 = vadd.f32 %v2294, %v2575
        %v2577 = vpop.f32.mrf.mxu0
        %2578 = vmatprep.mubr.f32.mxu0 0.0
        %2579 = vmatmul.mubr.f32.gmra.mxu0 %v2311
        %v2580 = vpop.f32.mrf.mxu0
        %v2581 = vadd.f32 %v2299, %v2580
        %v2582 = vpop.f32.mrf.mxu0
        %2583 = vdwg.mxu0
        %v2584 = vmax.f32 %v2566, 0.0
        %v2585 = vmax.f32 %v2571, 0.0
        %v2586 = vmax.f32 %v2576, 0.0
        %v2587 = vmax.f32 %v2581, 0.0
        %v2589 = vsel %vm1944, %v2584, 0
        %v2592 = vsel %vm1944, %v2585, 0
        %v2595 = vsel %vm1944, %v2586, 0
        %v2598 = vsel %vm1944, %v2587, 0
        %2600 = vmatprep.subr.mxu0 0.0
        %2601 = vmatpush1.msra.mxu0 0.0
        %2602 = vmatprep.subr.mxu0 0.0
        %2603 = vmatpush1.msra.mxu0 0.0
        %2604 = vmatprep.subr.mxu0 0.0
        %2605 = vmatpush1.msra.mxu0 0.0
        %2606 = vmatprep.subr.mxu0 0.0
        %2607 = vmatpush1.msra.mxu0 0.0
        %2608 = vmatprep.subr.mxu0 0.0
        %2609 = vmatpush1.msra.mxu0 0.0
        %2610 = vmatprep.subr.mxu0 0.0
        %2611 = vmatpush1.msra.mxu0 0.0
        %2612 = vmatprep.subr.mxu0 0.0
        %2613 = vmatpush1.msra.mxu0 0.0
        %2614 = vmatprep.subr.mxu0 0.0
        %2615 = vmatpush1.msra.mxu0 0.0
        %2616 = vmatprep.subr.mxu0 0.0
        %2617 = vmatpush1.msra.mxu0 0.0
        %2618 = vmatprep.subr.mxu0 0.0
        %2619 = vmatpush1.msra.mxu0 0.0
        %2620 = vmatprep.subr.mxu0 0.0
        %2621 = vmatpush1.msra.mxu0 0.0
        %2622 = vmatprep.subr.mxu0 0.0
        %2623 = vmatpush1.msra.mxu0 0.0
        %2624 = vmatprep.subr.mxu0 0.0
        %2625 = vmatpush1.msra.mxu0 0.0
        %2626 = vmatprep.subr.mxu0 0.0
        %2627 = vmatpush1.msra.mxu0 0.0
        %2628 = vmatprep.subr.mxu0 0.0
        %2629 = vmatpush1.msra.mxu0 %v2280
        %2630 = vmatprep.subr.mxu0 0.0
        %2631 = vmatpush1.msra.mxu0 %v2279
        %2632 = vmatprep.subr.mxu0 0.0
        %2633 = vmatpush2.msra.mxu0 0.0
        %2634 = vmatprep.subr.mxu0 0.0
        %2635 = vmatpush2.msra.mxu0 0.0
        %2636 = vmatprep.subr.mxu0 0.0
        %2637 = vmatpush2.msra.mxu0 0.0
        %2638 = vmatprep.subr.mxu0 0.0
        %2639 = vmatpush2.msra.mxu0 0.0
        %2640 = vmatprep.subr.mxu0 0.0
        %2641 = vmatpush2.msra.mxu0 0.0
        %2642 = vmatprep.subr.mxu0 0.0
        %2643 = vmatpush2.msra.mxu0 0.0
        %2644 = vmatprep.subr.mxu0 0.0
        %2645 = vmatpush2.msra.mxu0 0.0
        %2646 = vmatprep.subr.mxu0 0.0
        %2647 = vmatpush2.msra.mxu0 0.0
        %2648 = vmatprep.subr.mxu0 0.0
        %2649 = vmatpush2.msra.mxu0 0.0
        %2650 = vmatprep.subr.mxu0 0.0
        %2651 = vmatpush2.msra.mxu0 0.0
        %2652 = vmatprep.subr.mxu0 0.0
        %2653 = vmatpush2.msra.mxu0 0.0
        %2654 = vmatprep.subr.mxu0 0.0
        %2655 = vmatpush2.msra.mxu0 0.0
        %2656 = vmatprep.subr.mxu0 0.0
        %2657 = vmatpush2.msra.mxu0 0.0
        %2658 = vmatprep.subr.mxu0 0.0
        %2659 = vmatpush2.msra.mxu0 0.0
        %2660 = vmatprep.subr.mxu0 0.0
        %2661 = vmatpush2.msra.mxu0 0.0
        %2662 = vmatprep.subr.mxu0 0.0
        %2663 = vmatpush2.msra.mxu0 0.0
        %2664 = vmatprep.mubr.f32.mxu0 0.0
        %2665 = vmatmul.mubr.f32.gmra.mxu0 %v2589
        %v2666 = vpop.f32.mrf.mxu0
        %v2667 = vadd.f32 0.0, %v2666
        %v2668 = vpop.f32.mrf.mxu0
        %2669 = vmatprep.mubr.f32.mxu0 0.0
        %2670 = vmatmul.mubr.f32.gmra.mxu0 %v2592
        %v2671 = vpop.f32.mrf.mxu0
        %v2672 = vadd.f32 0.0, %v2671
        %v2673 = vpop.f32.mrf.mxu0
        %2674 = vmatprep.mubr.f32.mxu0 0.0
        %2675 = vmatmul.mubr.f32.gmra.mxu0 %v2595
        %v2676 = vpop.f32.mrf.mxu0
        %v2677 = vadd.f32 0.0, %v2676
        %v2678 = vpop.f32.mrf.mxu0
        %2679 = vmatprep.mubr.f32.mxu0 0.0
        %2680 = vmatmul.mubr.f32.gmra.mxu0 %v2598
        %v2681 = vpop.f32.mrf.mxu0
        %v2682 = vadd.f32 0.0, %v2681
        %v2683 = vpop.f32.mrf.mxu0
        %2684 = vdwg.mxu0
        %2685 = vmatprep.subr.mxu0 0.0
        %2686 = vmatpush1.msra.mxu0 0.0
        %2687 = vmatprep.subr.mxu0 0.0
        %2688 = vmatpush1.msra.mxu0 0.0
        %2689 = vmatprep.subr.mxu0 0.0
        %2690 = vmatpush1.msra.mxu0 0.0
        %2691 = vmatprep.subr.mxu0 0.0
        %2692 = vmatpush1.msra.mxu0 0.0
        %2693 = vmatprep.subr.mxu0 0.0
        %2694 = vmatpush1.msra.mxu0 0.0
        %2695 = vmatprep.subr.mxu0 0.0
        %2696 = vmatpush1.msra.mxu0 0.0
        %2697 = vmatprep.subr.mxu0 0.0
        %2698 = vmatpush1.msra.mxu0 0.0
        %2699 = vmatprep.subr.mxu0 0.0
        %2700 = vmatpush1.msra.mxu0 0.0
        %2701 = vmatprep.subr.mxu0 0.0
        %2702 = vmatpush1.msra.mxu0 0.0
        %2703 = vmatprep.subr.mxu0 0.0
        %2704 = vmatpush1.msra.mxu0 0.0
        %2705 = vmatprep.subr.mxu0 0.0
        %2706 = vmatpush1.msra.mxu0 0.0
        %2707 = vmatprep.subr.mxu0 0.0
        %2708 = vmatpush1.msra.mxu0 0.0
        %2709 = vmatprep.subr.mxu0 0.0
        %2710 = vmatpush1.msra.mxu0 0.0
        %2711 = vmatprep.subr.mxu0 0.0
        %2712 = vmatpush1.msra.mxu0 0.0
        %2713 = vmatprep.subr.mxu0 0.0
        %2714 = vmatpush1.msra.mxu0 %v1937
        %2715 = vmatprep.subr.mxu0 0.0
        %2716 = vmatpush1.msra.mxu0 %v1932
        %2717 = vmatprep.subr.mxu0 0.0
        %2718 = vmatpush2.msra.mxu0 0.0
        %2719 = vmatprep.subr.mxu0 0.0
        %2720 = vmatpush2.msra.mxu0 0.0
        %2721 = vmatprep.subr.mxu0 0.0
        %2722 = vmatpush2.msra.mxu0 0.0
        %2723 = vmatprep.subr.mxu0 0.0
        %2724 = vmatpush2.msra.mxu0 0.0
        %2725 = vmatprep.subr.mxu0 0.0
        %2726 = vmatpush2.msra.mxu0 0.0
        %2727 = vmatprep.subr.mxu0 0.0
        %2728 = vmatpush2.msra.mxu0 0.0
        %2729 = vmatprep.subr.mxu0 0.0
        %2730 = vmatpush2.msra.mxu0 0.0
        %2731 = vmatprep.subr.mxu0 0.0
        %2732 = vmatpush2.msra.mxu0 0.0
        %2733 = vmatprep.subr.mxu0 0.0
        %2734 = vmatpush2.msra.mxu0 0.0
        %2735 = vmatprep.subr.mxu0 0.0
        %2736 = vmatpush2.msra.mxu0 0.0
        %2737 = vmatprep.subr.mxu0 0.0
        %2738 = vmatpush2.msra.mxu0 0.0
        %2739 = vmatprep.subr.mxu0 0.0
        %2740 = vmatpush2.msra.mxu0 0.0
        %2741 = vmatprep.subr.mxu0 0.0
        %2742 = vmatpush2.msra.mxu0 0.0
        %2743 = vmatprep.subr.mxu0 0.0
        %2744 = vmatpush2.msra.mxu0 0.0
        %2745 = vmatprep.subr.mxu0 0.0
        %2746 = vmatpush2.msra.mxu0 0.0
        %2747 = vmatprep.subr.mxu0 0.0
        %2748 = vmatpush2.msra.mxu0 0.0
        %2749 = vmatprep.mubr.f32.mxu0 0.0
        %2750 = vmatmul.mubr.f32.gmra.mxu0 %v2302
        %v2751 = vpop.f32.mrf.mxu0
        %v2752 = vadd.f32 %v2284, %v2751
        %v2753 = vpop.f32.mrf.mxu0
        %2754 = vmatprep.mubr.f32.mxu0 0.0
        %2755 = vmatmul.mubr.f32.gmra.mxu0 %v2305
        %v2756 = vpop.f32.mrf.mxu0
        %v2757 = vadd.f32 %v2289, %v2756
        %v2758 = vpop.f32.mrf.mxu0
        %2759 = vmatprep.mubr.f32.mxu0 0.0
        %2760 = vmatmul.mubr.f32.gmra.mxu0 %v2308
        %v2761 = vpop.f32.mrf.mxu0
        %v2762 = vadd.f32 %v2294, %v2761
        %v2763 = vpop.f32.mrf.mxu0
        %2764 = vmatprep.mubr.f32.mxu0 0.0
        %2765 = vmatmul.mubr.f32.gmra.mxu0 %v2311
        %v2766 = vpop.f32.mrf.mxu0
        %v2767 = vadd.f32 %v2299, %v2766
        %v2768 = vpop.f32.mrf.mxu0
        %2769 = vdwg.mxu0
        %v2770 = vmax.f32 %v2752, 0.0
        %v2771 = vmax.f32 %v2757, 0.0
        %v2772 = vmax.f32 %v2762, 0.0
        %v2773 = vmax.f32 %v2767, 0.0
        %v2775 = vsel %vm1944, %v2770, 0
        %v2778 = vsel %vm1944, %v2771, 0
        %v2781 = vsel %vm1944, %v2772, 0
        %v2784 = vsel %vm1944, %v2773, 0
        %2786 = vmatprep.subr.mxu0 0.0
        %2787 = vmatpush1.msra.mxu0 0.0
        %2788 = vmatprep.subr.mxu0 0.0
        %2789 = vmatpush1.msra.mxu0 0.0
        %2790 = vmatprep.subr.mxu0 0.0
        %2791 = vmatpush1.msra.mxu0 0.0
        %2792 = vmatprep.subr.mxu0 0.0
        %2793 = vmatpush1.msra.mxu0 0.0
        %2794 = vmatprep.subr.mxu0 0.0
        %2795 = vmatpush1.msra.mxu0 0.0
        %2796 = vmatprep.subr.mxu0 0.0
        %2797 = vmatpush1.msra.mxu0 0.0
        %2798 = vmatprep.subr.mxu0 0.0
        %2799 = vmatpush1.msra.mxu0 0.0
        %2800 = vmatprep.subr.mxu0 0.0
        %2801 = vmatpush1.msra.mxu0 0.0
        %2802 = vmatprep.subr.mxu0 0.0
        %2803 = vmatpush1.msra.mxu0 0.0
        %2804 = vmatprep.subr.mxu0 0.0
        %2805 = vmatpush1.msra.mxu0 0.0
        %2806 = vmatprep.subr.mxu0 0.0
        %2807 = vmatpush1.msra.mxu0 0.0
        %2808 = vmatprep.subr.mxu0 0.0
        %2809 = vmatpush1.msra.mxu0 0.0
        %2810 = vmatprep.subr.mxu0 0.0
        %2811 = vmatpush1.msra.mxu0 0.0
        %2812 = vmatprep.subr.mxu0 0.0
        %2813 = vmatpush1.msra.mxu0 0.0
        %2814 = vmatprep.subr.mxu0 0.0
        %2815 = vmatpush1.msra.mxu0 %v2280
        %2816 = vmatprep.subr.mxu0 0.0
        %2817 = vmatpush1.msra.mxu0 %v2279
        %2818 = vmatprep.subr.mxu0 0.0
        %2819 = vmatpush2.msra.mxu0 0.0
        %2820 = vmatprep.subr.mxu0 0.0
        %2821 = vmatpush2.msra.mxu0 0.0
        %2822 = vmatprep.subr.mxu0 0.0
        %2823 = vmatpush2.msra.mxu0 0.0
        %2824 = vmatprep.subr.mxu0 0.0
        %2825 = vmatpush2.msra.mxu0 0.0
        %2826 = vmatprep.subr.mxu0 0.0
        %2827 = vmatpush2.msra.mxu0 0.0
        %2828 = vmatprep.subr.mxu0 0.0
        %2829 = vmatpush2.msra.mxu0 0.0
        %2830 = vmatprep.subr.mxu0 0.0
        %2831 = vmatpush2.msra.mxu0 0.0
        %2832 = vmatprep.subr.mxu0 0.0
        %2833 = vmatpush2.msra.mxu0 0.0
        %2834 = vmatprep.subr.mxu0 0.0
        %2835 = vmatpush2.msra.mxu0 0.0
        %2836 = vmatprep.subr.mxu0 0.0
        %2837 = vmatpush2.msra.mxu0 0.0
        %2838 = vmatprep.subr.mxu0 0.0
        %2839 = vmatpush2.msra.mxu0 0.0
        %2840 = vmatprep.subr.mxu0 0.0
        %2841 = vmatpush2.msra.mxu0 0.0
        %2842 = vmatprep.subr.mxu0 0.0
        %2843 = vmatpush2.msra.mxu0 0.0
        %2844 = vmatprep.subr.mxu0 0.0
        %2845 = vmatpush2.msra.mxu0 0.0
        %2846 = vmatprep.subr.mxu0 0.0
        %2847 = vmatpush2.msra.mxu0 0.0
        %2848 = vmatprep.subr.mxu0 0.0
        %2849 = vmatpush2.msra.mxu0 0.0
        %2850 = vmatprep.mubr.f32.mxu0 0.0
        %2851 = vmatmul.mubr.f32.gmra.mxu0 %v2775
        %v2852 = vpop.f32.mrf.mxu0
        %v2853 = vadd.f32 0.0, %v2852
        %v2854 = vpop.f32.mrf.mxu0
        %2855 = vmatprep.mubr.f32.mxu0 0.0
        %2856 = vmatmul.mubr.f32.gmra.mxu0 %v2778
        %v2857 = vpop.f32.mrf.mxu0
        %v2858 = vadd.f32 0.0, %v2857
        %v2859 = vpop.f32.mrf.mxu0
        %2860 = vmatprep.mubr.f32.mxu0 0.0
        %2861 = vmatmul.mubr.f32.gmra.mxu0 %v2781
        %v2862 = vpop.f32.mrf.mxu0
        %v2863 = vadd.f32 0.0, %v2862
        %v2864 = vpop.f32.mrf.mxu0
        %2865 = vmatprep.mubr.f32.mxu0 0.0
        %2866 = vmatmul.mubr.f32.gmra.mxu0 %v2784
        %v2867 = vpop.f32.mrf.mxu0
        %v2868 = vadd.f32 0.0, %v2867
        %v2869 = vpop.f32.mrf.mxu0
        %2870 = vdwg.mxu0
        %v2871 = vsub.f32 %v2667, %v2853
        %v2872 = vsub.f32 %v2672, %v2858
        %v2873 = vsub.f32 %v2677, %v2863
        %v2874 = vsub.f32 %v2682, %v2868
        %v2875 = vand.u32 2147483647, %v2871
        %v2876 = vand.u32 2147483647, %v2872
        %v2877 = vand.u32 2147483647, %v2873
        %v2878 = vand.u32 2147483647, %v2874
        %vm2879 = vcmask 31744
        %v2880 = vsel %vm2879, %v2875, 0.0
        %v2881 = vsel %vm2879, %v2876, 0.0
        %v2882 = vadd.f32 %v2880, %v2881
        %v2883 = vsel %vm2879, %v2877, 0.0
        %v2884 = vadd.f32 %v2882, %v2883
        %v2885 = vsel %vm2879, %v2878, 0.0
        %v2886 = vadd.f32 %v2884, %v2885
        %2887 = vadd.xlane.f32.xlu0 %v2886
        %v2888 = vpop.xlane.xlu0 %2887
        %v2889 = vrot.slane %v2888, 4
        %v2890 = vadd.f32 %v2888, %v2889
        %v2891 = vrot.slane %v2890, 2
        %v2892 = vadd.f32 %v2890, %v2891
        %v2893 = vrot.slane %v2892, 1
        %v2894 = vadd.f32 %v2892, %v2893
        %s2895 = vtos %v2894
        %v2896 = vrcp.pop 256.0
        %s2897 = vtos %v2896
        %s2898 = smul.f32 %s2895, %s2897
        %s2899 = sadd.f32 %s1980, %s2898
        %v2900 = vsub.f32 %v2481, %v2853
        %v2901 = vsub.f32 %v2486, %v2858
        %v2902 = vsub.f32 %v2491, %v2863
        %v2903 = vsub.f32 %v2496, %v2868
        %v2904 = vand.u32 2147483647, %v2900
        %v2905 = vand.u32 2147483647, %v2901
        %v2906 = vand.u32 2147483647, %v2902
        %v2907 = vand.u32 2147483647, %v2903
        %v2908 = vsel %vm2879, %v2904, 0.0
        %v2909 = vsel %vm2879, %v2905, 0.0
        %v2910 = vadd.f32 %v2908, %v2909
        %v2911 = vsel %vm2879, %v2906, 0.0
        %v2912 = vadd.f32 %v2910, %v2911
        %v2913 = vsel %vm2879, %v2907, 0.0
        %v2914 = vadd.f32 %v2912, %v2913
        %2915 = vadd.xlane.f32.xlu0 %v2914
        %v2916 = vpop.xlane.xlu0 %2915
        %v2917 = vrot.slane %v2916, 4
        %v2918 = vadd.f32 %v2916, %v2917
        %v2919 = vrot.slane %v2918, 2
        %v2920 = vadd.f32 %v2918, %v2919
        %v2921 = vrot.slane %v2920, 1
        %v2922 = vadd.f32 %v2920, %v2921
        %s2923 = vtos %v2922
        %v2924 = vrcp.pop 256.0
        %s2925 = vtos %v2924
        %s2926 = smul.f32 %s2923, %s2925
        %s2927 = sadd.f32 %s2899, %s2926
        %v2929 = vsel %vm2879, %v2481, 0
        %v2932 = vsel %vm2879, %v2486, 0
        %v2935 = vsel %vm2879, %v2491, 0
        %v2938 = vsel %vm2879, %v2496, 0
        %2940 = vmatprep.subr.mxu0 0.0
        %2941 = vmatpush1.xpose.msra.mxu0 0.0
        %2942 = vmatprep.subr.mxu0 0.0
        %2943 = vmatpush1.xpose.msra.mxu0 0.0
        %2944 = vmatprep.subr.mxu0 0.0
        %2945 = vmatpush1.xpose.msra.mxu0 0.0
        %2946 = vmatprep.subr.mxu0 0.0
        %2947 = vmatpush1.xpose.msra.mxu0 0.0
        %2948 = vmatprep.subr.mxu0 0.0
        %2949 = vmatpush1.xpose.msra.mxu0 0.0
        %2950 = vmatprep.subr.mxu0 0.0
        %2951 = vmatpush1.xpose.msra.mxu0 0.0
        %2952 = vmatprep.subr.mxu0 0.0
        %2953 = vmatpush1.xpose.msra.mxu0 0.0
        %2954 = vmatprep.subr.mxu0 0.0
        %2955 = vmatpush1.xpose.msra.mxu0 0.0
        %2956 = vmatprep.subr.mxu0 0.0
        %2957 = vmatpush1.xpose.msra.mxu0 0.0
        %2958 = vmatprep.subr.mxu0 0.0
        %2959 = vmatpush1.xpose.msra.mxu0 0.0
        %2960 = vmatprep.subr.mxu0 0.0
        %2961 = vmatpush1.xpose.msra.mxu0 0.0
        %2962 = vmatprep.subr.mxu0 0.0
        %2963 = vmatpush1.xpose.msra.mxu0 0.0
        %2964 = vmatprep.subr.mxu0 0.0
        %2965 = vmatpush1.xpose.msra.mxu0 %v2938
        %2966 = vmatprep.subr.mxu0 0.0
        %2967 = vmatpush1.xpose.msra.mxu0 %v2935
        %2968 = vmatprep.subr.mxu0 0.0
        %2969 = vmatpush1.xpose.msra.mxu0 %v2932
        %2970 = vmatprep.subr.mxu0 0.0
        %2971 = vmatpush1.xpose.msra.mxu0 %v2929
        %2972 = vmatprep.subr.mxu0 0.0
        %2973 = vmatpush2.xpose.msra.mxu0 0.0
        %2974 = vmatprep.subr.mxu0 0.0
        %2975 = vmatpush2.xpose.msra.mxu0 0.0
        %2976 = vmatprep.subr.mxu0 0.0
        %2977 = vmatpush2.xpose.msra.mxu0 0.0
        %2978 = vmatprep.subr.mxu0 0.0
        %2979 = vmatpush2.xpose.msra.mxu0 0.0
        %2980 = vmatprep.subr.mxu0 0.0
        %2981 = vmatpush2.xpose.msra.mxu0 0.0
        %2982 = vmatprep.subr.mxu0 0.0
        %2983 = vmatpush2.xpose.msra.mxu0 0.0
        %2984 = vmatprep.subr.mxu0 0.0
        %2985 = vmatpush2.xpose.msra.mxu0 0.0
        %2986 = vmatprep.subr.mxu0 0.0
        %2987 = vmatpush2.xpose.msra.mxu0 0.0
        %2988 = vmatprep.subr.mxu0 0.0
        %2989 = vmatpush2.xpose.msra.mxu0 0.0
        %2990 = vmatprep.subr.mxu0 0.0
        %2991 = vmatpush2.xpose.msra.mxu0 0.0
        %2992 = vmatprep.subr.mxu0 0.0
        %2993 = vmatpush2.xpose.msra.mxu0 0.0
        %2994 = vmatprep.subr.mxu0 0.0
        %2995 = vmatpush2.xpose.msra.mxu0 0.0
        %2996 = vmatprep.subr.mxu0 0.0
        %2997 = vmatpush2.xpose.msra.mxu0 0.0
        %2998 = vmatprep.subr.mxu0 0.0
        %2999 = vmatpush2.xpose.msra.mxu0 0.0
        %3000 = vmatprep.subr.mxu0 0.0
        %3001 = vmatpush2.xpose.msra.mxu0 0.0
        %3002 = vmatprep.subr.mxu0 0.0
        %3003 = vmatpush2.xpose.msra.mxu0 0.0
        %3004 = vmatprep.mubr.f32.mxu0 0.0
        %3005 = vmatmul.mubr.f32.gmra.mxu0 %v2929
        %v3006 = vpop.f32.mrf.mxu0
        %v3007 = vadd.f32 0.0, %v3006
        %v3008 = vpop.f32.mrf.mxu0
        %3009 = vmatprep.mubr.f32.mxu0 0.0
        %3010 = vmatmul.mubr.f32.gmra.mxu0 %v2932
        %v3011 = vpop.f32.mrf.mxu0
        %v3012 = vadd.f32 0.0, %v3011
        %v3013 = vpop.f32.mrf.mxu0
        %3014 = vmatprep.mubr.f32.mxu0 0.0
        %3015 = vmatmul.mubr.f32.gmra.mxu0 %v2935
        %v3016 = vpop.f32.mrf.mxu0
        %v3017 = vadd.f32 0.0, %v3016
        %v3018 = vpop.f32.mrf.mxu0
        %3019 = vmatprep.mubr.f32.mxu0 0.0
        %3020 = vmatmul.mubr.f32.gmra.mxu0 %v2938
        %v3021 = vpop.f32.mrf.mxu0
        %v3022 = vadd.f32 0.0, %v3021
        %v3023 = vpop.f32.mrf.mxu0
        %3024 = vdwg.mxu0
        %v3025 = vrcp.pop 128.0
        %v3026 = vmul.f32 %v3007, %v3025
        %v3027 = vmul.f32 %v3012, %v3025
        %v3028 = vmul.f32 %v3017, %v3025
        %v3029 = vmul.f32 %v3022, %v3025
        %v3031 = vsel %vm2879, %v2667, 0
        %v3034 = vsel %vm2879, %v2672, 0
        %v3037 = vsel %vm2879, %v2677, 0
        %v3040 = vsel %vm2879, %v2682, 0
        %3042 = vmatprep.subr.mxu0 0.0
        %3043 = vmatpush1.xpose.msra.mxu0 0.0
        %3044 = vmatprep.subr.mxu0 0.0
        %3045 = vmatpush1.xpose.msra.mxu0 0.0
        %3046 = vmatprep.subr.mxu0 0.0
        %3047 = vmatpush1.xpose.msra.mxu0 0.0
        %3048 = vmatprep.subr.mxu0 0.0
        %3049 = vmatpush1.xpose.msra.mxu0 0.0
        %3050 = vmatprep.subr.mxu0 0.0
        %3051 = vmatpush1.xpose.msra.mxu0 0.0
        %3052 = vmatprep.subr.mxu0 0.0
        %3053 = vmatpush1.xpose.msra.mxu0 0.0
        %3054 = vmatprep.subr.mxu0 0.0
        %3055 = vmatpush1.xpose.msra.mxu0 0.0
        %3056 = vmatprep.subr.mxu0 0.0
        %3057 = vmatpush1.xpose.msra.mxu0 0.0
        %3058 = vmatprep.subr.mxu0 0.0
        %3059 = vmatpush1.xpose.msra.mxu0 0.0
        %3060 = vmatprep.subr.mxu0 0.0
        %3061 = vmatpush1.xpose.msra.mxu0 0.0
        %3062 = vmatprep.subr.mxu0 0.0
        %3063 = vmatpush1.xpose.msra.mxu0 0.0
        %3064 = vmatprep.subr.mxu0 0.0
        %3065 = vmatpush1.xpose.msra.mxu0 0.0
        %3066 = vmatprep.subr.mxu0 0.0
        %3067 = vmatpush1.xpose.msra.mxu0 %v3040
        %3068 = vmatprep.subr.mxu0 0.0
        %3069 = vmatpush1.xpose.msra.mxu0 %v3037
        %3070 = vmatprep.subr.mxu0 0.0
        %3071 = vmatpush1.xpose.msra.mxu0 %v3034
        %3072 = vmatprep.subr.mxu0 0.0
        %3073 = vmatpush1.xpose.msra.mxu0 %v3031
        %3074 = vmatprep.subr.mxu0 0.0
        %3075 = vmatpush2.xpose.msra.mxu0 0.0
        %3076 = vmatprep.subr.mxu0 0.0
        %3077 = vmatpush2.xpose.msra.mxu0 0.0
        %3078 = vmatprep.subr.mxu0 0.0
        %3079 = vmatpush2.xpose.msra.mxu0 0.0
        %3080 = vmatprep.subr.mxu0 0.0
        %3081 = vmatpush2.xpose.msra.mxu0 0.0
        %3082 = vmatprep.subr.mxu0 0.0
        %3083 = vmatpush2.xpose.msra.mxu0 0.0
        %3084 = vmatprep.subr.mxu0 0.0
        %3085 = vmatpush2.xpose.msra.mxu0 0.0
        %3086 = vmatprep.subr.mxu0 0.0
        %3087 = vmatpush2.xpose.msra.mxu0 0.0
        %3088 = vmatprep.subr.mxu0 0.0
        %3089 = vmatpush2.xpose.msra.mxu0 0.0
        %3090 = vmatprep.subr.mxu0 0.0
        %3091 = vmatpush2.xpose.msra.mxu0 0.0
        %3092 = vmatprep.subr.mxu0 0.0
        %3093 = vmatpush2.xpose.msra.mxu0 0.0
        %3094 = vmatprep.subr.mxu0 0.0
        %3095 = vmatpush2.xpose.msra.mxu0 0.0
        %3096 = vmatprep.subr.mxu0 0.0
        %3097 = vmatpush2.xpose.msra.mxu0 0.0
        %3098 = vmatprep.subr.mxu0 0.0
        %3099 = vmatpush2.xpose.msra.mxu0 0.0
        %3100 = vmatprep.subr.mxu0 0.0
        %3101 = vmatpush2.xpose.msra.mxu0 0.0
        %3102 = vmatprep.subr.mxu0 0.0
        %3103 = vmatpush2.xpose.msra.mxu0 0.0
        %3104 = vmatprep.subr.mxu0 0.0
        %3105 = vmatpush2.xpose.msra.mxu0 0.0
        %3106 = vmatprep.mubr.f32.mxu0 0.0
        %3107 = vmatmul.mubr.f32.gmra.mxu0 %v3031
        %v3108 = vpop.f32.mrf.mxu0
        %v3109 = vadd.f32 0.0, %v3108
        %v3110 = vpop.f32.mrf.mxu0
        %3111 = vmatprep.mubr.f32.mxu0 0.0
        %3112 = vmatmul.mubr.f32.gmra.mxu0 %v3034
        %v3113 = vpop.f32.mrf.mxu0
        %v3114 = vadd.f32 0.0, %v3113
        %v3115 = vpop.f32.mrf.mxu0
        %3116 = vmatprep.mubr.f32.mxu0 0.0
        %3117 = vmatmul.mubr.f32.gmra.mxu0 %v3037
        %v3118 = vpop.f32.mrf.mxu0
        %v3119 = vadd.f32 0.0, %v3118
        %v3120 = vpop.f32.mrf.mxu0
        %3121 = vmatprep.mubr.f32.mxu0 0.0
        %3122 = vmatmul.mubr.f32.gmra.mxu0 %v3040
        %v3123 = vpop.f32.mrf.mxu0
        %v3124 = vadd.f32 0.0, %v3123
        %v3125 = vpop.f32.mrf.mxu0
        %3126 = vdwg.mxu0
        %v3127 = vmul.f32 %v3109, %v3025
        %v3128 = vmul.f32 %v3114, %v3025
        %v3129 = vmul.f32 %v3119, %v3025
        %v3130 = vmul.f32 %v3124, %v3025
        %v3132 = vsel %vm2879, %v2853, 0
        %v3135 = vsel %vm2879, %v2858, 0
        %v3138 = vsel %vm2879, %v2863, 0
        %v3141 = vsel %vm2879, %v2868, 0
        %3143 = vmatprep.subr.mxu0 0.0
        %3144 = vmatpush1.xpose.msra.mxu0 0.0
        %3145 = vmatprep.subr.mxu0 0.0
        %3146 = vmatpush1.xpose.msra.mxu0 0.0
        %3147 = vmatprep.subr.mxu0 0.0
        %3148 = vmatpush1.xpose.msra.mxu0 0.0
        %3149 = vmatprep.subr.mxu0 0.0
        %3150 = vmatpush1.xpose.msra.mxu0 0.0
        %3151 = vmatprep.subr.mxu0 0.0
        %3152 = vmatpush1.xpose.msra.mxu0 0.0
        %3153 = vmatprep.subr.mxu0 0.0
        %3154 = vmatpush1.xpose.msra.mxu0 0.0
        %3155 = vmatprep.subr.mxu0 0.0
        %3156 = vmatpush1.xpose.msra.mxu0 0.0
        %3157 = vmatprep.subr.mxu0 0.0
        %3158 = vmatpush1.xpose.msra.mxu0 0.0
        %3159 = vmatprep.subr.mxu0 0.0
        %3160 = vmatpush1.xpose.msra.mxu0 0.0
        %3161 = vmatprep.subr.mxu0 0.0
        %3162 = vmatpush1.xpose.msra.mxu0 0.0
        %3163 = vmatprep.subr.mxu0 0.0
        %3164 = vmatpush1.xpose.msra.mxu0 0.0
        %3165 = vmatprep.subr.mxu0 0.0
        %3166 = vmatpush1.xpose.msra.mxu0 0.0
        %3167 = vmatprep.subr.mxu0 0.0
        %3168 = vmatpush1.xpose.msra.mxu0 %v3141
        %3169 = vmatprep.subr.mxu0 0.0
        %3170 = vmatpush1.xpose.msra.mxu0 %v3138
        %3171 = vmatprep.subr.mxu0 0.0
        %3172 = vmatpush1.xpose.msra.mxu0 %v3135
        %3173 = vmatprep.subr.mxu0 0.0
        %3174 = vmatpush1.xpose.msra.mxu0 %v3132
        %3175 = vmatprep.subr.mxu0 0.0
        %3176 = vmatpush2.xpose.msra.mxu0 0.0
        %3177 = vmatprep.subr.mxu0 0.0
        %3178 = vmatpush2.xpose.msra.mxu0 0.0
        %3179 = vmatprep.subr.mxu0 0.0
        %3180 = vmatpush2.xpose.msra.mxu0 0.0
        %3181 = vmatprep.subr.mxu0 0.0
        %3182 = vmatpush2.xpose.msra.mxu0 0.0
        %3183 = vmatprep.subr.mxu0 0.0
        %3184 = vmatpush2.xpose.msra.mxu0 0.0
        %3185 = vmatprep.subr.mxu0 0.0
        %3186 = vmatpush2.xpose.msra.mxu0 0.0
        %3187 = vmatprep.subr.mxu0 0.0
        %3188 = vmatpush2.xpose.msra.mxu0 0.0
        %3189 = vmatprep.subr.mxu0 0.0
        %3190 = vmatpush2.xpose.msra.mxu0 0.0
        %3191 = vmatprep.subr.mxu0 0.0
        %3192 = vmatpush2.xpose.msra.mxu0 0.0
        %3193 = vmatprep.subr.mxu0 0.0
        %3194 = vmatpush2.xpose.msra.mxu0 0.0
        %3195 = vmatprep.subr.mxu0 0.0
        %3196 = vmatpush2.xpose.msra.mxu0 0.0
        %3197 = vmatprep.subr.mxu0 0.0
        %3198 = vmatpush2.xpose.msra.mxu0 0.0
        %3199 = vmatprep.subr.mxu0 0.0
        %3200 = vmatpush2.xpose.msra.mxu0 0.0
        %3201 = vmatprep.subr.mxu0 0.0
        %3202 = vmatpush2.xpose.msra.mxu0 0.0
        %3203 = vmatprep.subr.mxu0 0.0
        %3204 = vmatpush2.xpose.msra.mxu0 0.0
        %3205 = vmatprep.subr.mxu0 0.0
        %3206 = vmatpush2.xpose.msra.mxu0 0.0
        %3207 = vmatprep.mubr.f32.mxu0 0.0
        %3208 = vmatmul.mubr.f32.gmra.mxu0 %v3132
        %v3209 = vpop.f32.mrf.mxu0
        %v3210 = vadd.f32 0.0, %v3209
        %v3211 = vpop.f32.mrf.mxu0
        %3212 = vmatprep.mubr.f32.mxu0 0.0
        %3213 = vmatmul.mubr.f32.gmra.mxu0 %v3135
        %v3214 = vpop.f32.mrf.mxu0
        %v3215 = vadd.f32 0.0, %v3214
        %v3216 = vpop.f32.mrf.mxu0
        %3217 = vmatprep.mubr.f32.mxu0 0.0
        %3218 = vmatmul.mubr.f32.gmra.mxu0 %v3138
        %v3219 = vpop.f32.mrf.mxu0
        %v3220 = vadd.f32 0.0, %v3219
        %v3221 = vpop.f32.mrf.mxu0
        %3222 = vmatprep.mubr.f32.mxu0 0.0
        %3223 = vmatmul.mubr.f32.gmra.mxu0 %v3141
        %v3224 = vpop.f32.mrf.mxu0
        %v3225 = vadd.f32 0.0, %v3224
        %v3226 = vpop.f32.mrf.mxu0
        %3227 = vdwg.mxu0
        %v3228 = vmul.f32 %v3210, %v3025
        %v3229 = vmul.f32 %v3215, %v3025
        %v3230 = vmul.f32 %v3220, %v3025
        %v3231 = vmul.f32 %v3225, %v3025
        %v3232 = vsub.f32 %v3127, %v3228
        %v3233 = vsub.f32 %v3128, %v3229
        %v3234 = vsub.f32 %v3129, %v3230
        %v3235 = vsub.f32 %v3130, %v3231
        %v3236 = vand.u32 2147483647, %v3232
        %v3237 = vand.u32 2147483647, %v3233
        %v3238 = vand.u32 2147483647, %v3234
        %v3239 = vand.u32 2147483647, %v3235
        %vm3240 = vcmask 261120
        %v3241 = vsel %vm3240, %v3236, 0.0
        %v3242 = vsel %vm3240, %v3237, 0.0
        %v3243 = vadd.f32 %v3241, %v3242
        %v3244 = vsel %vm3240, %v3238, 0.0
        %v3245 = vadd.f32 %v3243, %v3244
        %v3246 = vsel %vm3240, %v3239, 0.0
        %v3247 = vadd.f32 %v3245, %v3246
        %3248 = vadd.xlane.f32.xlu0 %v3247
        %v3249 = vpop.xlane.xlu0 %3248
        %v3250 = vrot.slane %v3249, 4
        %v3251 = vadd.f32 %v3249, %v3250
        %v3252 = vrot.slane %v3251, 2
        %v3253 = vadd.f32 %v3251, %v3252
        %v3254 = vrot.slane %v3253, 1
        %v3255 = vadd.f32 %v3253, %v3254
        %s3256 = vtos %v3255
        %v3257 = vrcp.pop 2048.0
        %s3258 = vtos %v3257
        %s3259 = smul.f32 %s3256, %s3258
        %s3260 = sadd.f32 %s2270, %s3259
        %v3261 = vsub.f32 %v3026, %v3228
        %v3262 = vsub.f32 %v3027, %v3229
        %v3263 = vsub.f32 %v3028, %v3230
        %v3264 = vsub.f32 %v3029, %v3231
        %v3265 = vand.u32 2147483647, %v3261
        %v3266 = vand.u32 2147483647, %v3262
        %v3267 = vand.u32 2147483647, %v3263
        %v3268 = vand.u32 2147483647, %v3264
        %v3269 = vsel %vm3240, %v3265, 0.0
        %v3270 = vsel %vm3240, %v3266, 0.0
        %v3271 = vadd.f32 %v3269, %v3270
        %v3272 = vsel %vm3240, %v3267, 0.0
        %v3273 = vadd.f32 %v3271, %v3272
        %v3274 = vsel %vm3240, %v3268, 0.0
        %v3275 = vadd.f32 %v3273, %v3274
        %3276 = vadd.xlane.f32.xlu0 %v3275
        %v3277 = vpop.xlane.xlu0 %3276
        %v3278 = vrot.slane %v3277, 4
        %v3279 = vadd.f32 %v3277, %v3278
        %v3280 = vrot.slane %v3279, 2
        %v3281 = vadd.f32 %v3279, %v3280
        %v3282 = vrot.slane %v3281, 1
        %v3283 = vadd.f32 %v3281, %v3282
        %s3284 = vtos %v3283
        %v3285 = vrcp.pop 2048.0
        %s3286 = vtos %v3285
        %s3287 = smul.f32 %s3284, %s3286
        %s3288 = sadd.f32 %s3260, %s3287
        %s3289 = sld [smem:[#allocation2]]
        %s3290 = sadd.f32 %s3289, %s571
        %s3291 = scalar_lea.smem [#allocation2], 0
        %3292 = sst [smem:[%s3291]] %s3290
        %s3293 = sld [smem:[#allocation2 + $0x1]]
        %s3294 = sadd.f32 %s3293, %s591
        %s3295 = scalar_lea.smem [#allocation2], 1
        %3296 = sst [smem:[%s3295]] %s3294
        %s3297 = sld [smem:[#allocation2 + $0x2]]
        %s3298 = sadd.f32 %s3297, %s659
        %s3299 = scalar_lea.smem [#allocation2], 2
        %3300 = sst [smem:[%s3299]] %s3298
        %s3301 = sld [smem:[#allocation2 + $0x3]]
        %s3302 = sadd.f32 %s3301, %s2927
        %s3303 = scalar_lea.smem [#allocation2], 3
        %3304 = sst [smem:[%s3303]] %s3302
        %s3305 = sld [smem:[#allocation2 + $0x4]]
        %s3306 = sadd.f32 %s3305, %s3288
        %s3307 = scalar_lea.smem [#allocation2], 4
        %3308 = sst [smem:[%s3307]] %s3306
        %p3309 = scmp.eq.s32.totalorder %s27, 1
        // Predicated region
        $region85: #{inpainting_loss_forward.1} parent=75 // pred_check
          %p3310 = pneg %p3309
        $region86: #{inpainting_loss_forward.1} parent=75 // pred_check_branch
          %3312 = sbr.rel (%p3310) target = $region88
        $region87: #{inpainting_loss_forward.1} parent=75 // pred_region
          %s3313 = sld [smem:[#allocation2]]
          %s3314 = scalar_lea.smem [#allocation6], 0
          %3315 = sst [smem:[%s3314]] %s3313
          %s3316 = sld [smem:[#allocation2 + $0x1]]
          %s3317 = scalar_lea.smem [#allocation6], 1
          %3318 = sst [smem:[%s3317]] %s3316
          %s3319 = sld [smem:[#allocation2 + $0x2]]
          %s3320 = scalar_lea.smem [#allocation6], 2
          %3321 = sst [smem:[%s3320]] %s3319
          %s3322 = sld [smem:[#allocation2 + $0x3]]
          %s3323 = scalar_lea.smem [#allocation6], 3
          %3324 = sst [smem:[%s3323]] %s3322
          %s3325 = sld [smem:[#allocation2 + $0x4]]
          %s3326 = scalar_lea.smem [#allocation6], 4
          %3327 = sst [smem:[%s3326]] %s3325
        $region88: #{inpainting_loss_forward.1} parent=75 // pred_fallthru
          _
        // Predicated region
        $region89: #{inpainting_loss_forward.1} parent=75 // pred_check
          %p3328 = pneg %p354
        $region90: #{inpainting_loss_forward.1} parent=75 // pred_check_branch
          %3330 = sbr.rel (%p3328) target = $region92
        $region91: #{inpainting_loss_forward.1} parent=75 // pred_region
          %s3332 = ssub.s32 16, 16
          %3333 = vsyncadd [#allocation5], %s3332
          %s3335 = sshll.u32 %s14, 4
          %s3336 = int_to_ptr.vmem [resolvable:$true] %s3335
          %3338 = dma.smem_to_vmem [#allocation6], 16, %s3336, [#allocation5]
        $region92: #{inpainting_loss_forward.1} parent=75 // pred_fallthru
          _
        // Predicated region
        $region93: #{inpainting_loss_forward.1} parent=75 // pred_check
          %p3339 = pneg %p354
        $region94: #{inpainting_loss_forward.1} parent=75 // pred_check_branch
          %3341 = sbr.rel (%p3339) target = $region96
        $region95: #{inpainting_loss_forward.1} parent=75 // pred_region
          %3342 = dma.done [#allocation5], 16
        $region96: #{inpainting_loss_forward.1} parent=75 // pred_fallthru
          _
        %3343 = sfence
      $region76: #{inpainting_loss_forward.1} parent=5 // pred_fallthru
        _
      %p3344 = scmp.le.s32.totalorder 2, %s22
      // Predicated region
      $region97: #{inpainting_loss_forward.1} parent=5 // pred_check
        %p3345 = pneg %p3344
      $region98: #{inpainting_loss_forward.1} parent=5 // pred_check_branch
        %3347 = sbr.rel (%p3345) target = $region100
      $region99: #{inpainting_loss_forward.1} parent=5 // pred_region
        %s3348 = ssub.s32 %s22, 2
      $region100: #{inpainting_loss_forward.1} parent=5 // pred_fallthru
        _
    $region6: #{inpainting_loss_forward.1} parent=1 // loop_footer
      %s26 = sadd.s32 1, %s22
    $region7: #{inpainting_loss_forward.1} parent=1 // loop_footer_branch
      %21 = sbr.rel target = $region3
    $region8: #{inpainting_loss_forward.1} parent=1 // loop_exit
      _
    %3349 = vsyncpa [#allocation4], 1
    %s3350 = scalar_lea.sflag [#allocation4], 1
    %3351 = vsyncpa %s3350, 1
    %3352 = vsyncpa [#allocation5], 1
    %s3353 = scalar_lea.sflag [#allocation5], 1
    %3354 = vsyncpa %s3353, 1

</llo_original>
